<compile_context>
chip_gen: v7x
topology: tpu7x:2x2x1
jax: 0.10.0
libtpu: 0.0.40
codegen_flags: <defaults>
</compile_context>

<pallas_src>
import jax
import jax.numpy as jnp
from jax.experimental import pallas as pl
from jax.experimental.pallas import tpu as pltpu

# ----- scaled-down model config (codebert-base -> tiny, lane-dense) -----
B, S = 2, 8            # batch, sequence length
H = 128                # hidden size (768 in codebert) -- multiple of 128 lanes
NH, HD = 2, 64         # attention heads, head dim
I = 256                # FFN intermediate size (3072 in codebert)
P = 128                # projection_dim (matches Config.projection_dim=128)
VOCAB = 256
MAXPOS = 64
NLAYERS = 2
EPS = 1e-5
H3 = 3 * H


# ---------------- in-kernel math helpers (all f32) ----------------

def _layernorm(x, g, b):
    mu = jnp.mean(x, axis=-1, keepdims=True)
    var = jnp.mean((x - mu) ** 2, axis=-1, keepdims=True)
    return (x - mu) * jax.lax.rsqrt(var + EPS) * g + b


def _erf(x):
    # Abramowitz & Stegun 7.1.26 rational approximation (|err| < 1.5e-7).
    # Pure elementwise VPU/EUP ops; the divide rides the EUP reciprocal slot.
    a1, a2, a3, a4, a5 = (0.254829592, -0.284496736, 1.421413741,
                          -1.453152027, 1.061405429)
    p = 0.3275911
    sgn = jnp.where(x >= 0.0, 1.0, -1.0)
    ax = jnp.abs(x)
    t = pl.reciprocal(1.0 + p * ax, approx=True)
    poly = ((((a5 * t + a4) * t + a3) * t + a2) * t + a1) * t
    return sgn * (1.0 - poly * jnp.exp(-ax * ax))


def _gelu_exact(x):
    # exact (erf) GELU, matching HF RoBERTa's "gelu"
    return 0.5 * x * (1.0 + _erf(x * 0.7071067811865476))


# ------------- fused kernel: embeddings + N layers + CLS projection -------------

def fused_kernel(emb_ref, eg_ref, eb_ref, bias_ref,
                 wqkv_ref, bqkv_ref, wo_ref, bo_ref, ln1g_ref, ln1b_ref,
                 wi_ref, bi_ref, wf_ref, bf_ref, ln2g_ref, ln2b_ref,
                 pw_ref, pb_ref, out_ref):
    bf16 = jnp.bfloat16
    scale = 1.0 / (HD ** 0.5)

    # ---- embeddings + LayerNorm (f32) ----
    h = _layernorm(emb_ref[...], eg_ref[...], eb_ref[...])      # (B,S,H) f32

    # additive attention-mask bias, broadcast ONCE (not per head / per layer op)
    bias_full = jnp.broadcast_to(bias_ref[...], (B, S, S))       # (B,Sq,Sk) f32

    # ---- statically unrolled encoder layers ----
    for l in range(NLAYERS):
        hm = h.reshape(B * S, H).astype(bf16)                    # MXU LHS in bf16

        # fused QKV matmul (bf16 x bf16 -> f32 accum)
        qkv = jnp.dot(hm, wqkv_ref[l],
                      preferred_element_type=jnp.float32) + bqkv_ref[l]
        q = qkv[:, 0 * H:1 * H].reshape(B, S, H).astype(bf16)
        k = qkv[:, 1 * H:2 * H].reshape(B, S, H).astype(bf16)
        v = qkv[:, 2 * H:3 * H].reshape(B, S, H).astype(bf16)

        # ---- self-attention, per-head static lane slices ----
        # TODO(synk): at real sizes (NH=12, HD=64, S>=128) switch to batched
        # einsums over a (B,S,NH,HD) layout to halve MXU pushes; kept as a
        # static head loop here since NH=2 and the kernel is latency-bound.
        ctx_heads = []
        for hh in range(NH):
            sl = slice(hh * HD, (hh + 1) * HD)
            s = jnp.einsum('bqd,bkd->bqk', q[:, :, sl], k[:, :, sl],
                           preferred_element_type=jnp.float32) * scale + bias_full
            m = jnp.max(s, axis=-1, keepdims=True)               # f32 stats
            e = jnp.exp(s - m)
            probs = e * pl.reciprocal(jnp.sum(e, axis=-1, keepdims=True),
                                      approx=True)
            ctx_heads.append(
                jnp.einsum('bqk,bkd->bqd', probs.astype(bf16), v[:, :, sl],
                           preferred_element_type=jnp.float32))
        ctx = jnp.concatenate(ctx_heads, axis=-1).reshape(B * S, H)

        attn = jnp.dot(ctx.astype(bf16), wo_ref[l],
                       preferred_element_type=jnp.float32) + bo_ref[l]
        h1 = _layernorm(attn.reshape(B, S, H) + h, ln1g_ref[l], ln1b_ref[l])

        # ---- feed-forward (exact GELU, f32 elementwise) ----
        inter = _gelu_exact(
            jnp.dot(h1.reshape(B * S, H).astype(bf16), wi_ref[l],
                    preferred_element_type=jnp.float32) + bi_ref[l])
        ff = jnp.dot(inter.astype(bf16), wf_ref[l],
                     preferred_element_type=jnp.float32) + bf_ref[l]
        h = _layernorm(ff.reshape(B, S, H) + h1, ln2g_ref[l], ln2b_ref[l])

    # ---- CLS pooling + nn.Linear projection ----
    cls = h[:, 0, :]                                             # (B,H) f32
    out_ref[...] = jnp.dot(cls.astype(bf16), pw_ref[...],
                           preferred_element_type=jnp.float32) + pb_ref[...]


def fused_forward(emb, bias, params):
    c2 = lambda i: (0, 0)
    c3 = lambda i: (0, 0, 0)

    in_specs = [
        pl.BlockSpec((B, S, H), c3),                 # emb
        pl.BlockSpec((1, H), c2),                    # emb_ln_g
        pl.BlockSpec((1, H), c2),                    # emb_ln_b
        pl.BlockSpec((B, 1, S), c3),                 # additive attention-mask bias
        pl.BlockSpec((NLAYERS, H, H3), c3),          # wqkv (stacked, bf16)
        pl.BlockSpec((NLAYERS, 1, H3), c3),          # bqkv
        pl.BlockSpec((NLAYERS, H, H), c3),           # wo (bf16)
        pl.BlockSpec((NLAYERS, 1, H), c3),           # bo
        pl.BlockSpec((NLAYERS, 1, H), c3),           # ln1g
        pl.BlockSpec((NLAYERS, 1, H), c3),           # ln1b
        pl.BlockSpec((NLAYERS, H, I), c3),           # wi (bf16)
        pl.BlockSpec((NLAYERS, 1, I), c3),           # bi
        pl.BlockSpec((NLAYERS, I, H), c3),           # wf (bf16)
        pl.BlockSpec((NLAYERS, 1, H), c3),           # bf
        pl.BlockSpec((NLAYERS, 1, H), c3),           # ln2g
        pl.BlockSpec((NLAYERS, 1, H), c3),           # ln2b
        pl.BlockSpec((H, P), c2),                    # proj_w (bf16)
        pl.BlockSpec((1, P), c2),                    # proj_b
    ]

    # Single grid step: total (bf16) weights ~0.5 MiB, trivially VMEM-resident
    # on v5e/v6e/v7x, so the per-layer streaming grid was pure overhead.
    # TODO(synk): at real codebert sizes (H=768/I=3072) reintroduce a layer /
    # K-tiling grid axis, add a 'parallel' batch axis for v7x's 2 TensorCores,
    # and set vmem_limit_bytes explicitly (per-layer f32 blocks would exceed
    # v7x's 64 MiB VMEM when double-buffered).
    grid_spec = pltpu.PrefetchScalarGridSpec(
        num_scalar_prefetch=0,
        grid=(1,),
        in_specs=in_specs,
        out_specs=pl.BlockSpec((B, P), c2),
    )

    return pl.pallas_call(
        fused_kernel,
        out_shape=jax.ShapeDtypeStruct((B, P), jnp.float32),
        grid_spec=grid_spec,
        compiler_params=pltpu.CompilerParams(
            dimension_semantics=("arbitrary",)),
    )(emb, params['emb_ln_g'], params['emb_ln_b'], bias,
      params['wqkv'], params['bqkv'], params['wo'], params['bo'],
      params['ln1g'], params['ln1b'], params['wi'], params['bi'],
      params['wf'], params['bf'], params['ln2g'], params['ln2b'],
      params['proj_w'], params['proj_b'])


# ---------------- parameters (deterministic synthetic init) ----------------

def init_params(key):
    ks = jax.random.split(key, 8)

    def nrm(k, shape, dtype=jnp.float32):
        return (jax.random.normal(k, shape, jnp.float32) * 0.02).astype(dtype)

    bf16 = jnp.bfloat16
    return {
        'word_emb': nrm(ks[0], (VOCAB, H)),
        'pos_emb':  nrm(ks[1], (MAXPOS, H)),
        'type_emb': nrm(ks[2], (1, 1, H)),
        'emb_ln_g': jnp.ones((1, H), jnp.float32),
        'emb_ln_b': jnp.zeros((1, H), jnp.float32),
        # per-layer weights stacked along a leading NLAYERS axis;
        # matmul weights in bf16 (MXU-native on v5e/v6e/v7x), f32 accumulation.
        'wqkv': nrm(ks[3], (NLAYERS, H, H3), bf16),
        'bqkv': jnp.zeros((NLAYERS, 1, H3), jnp.float32),
        'wo':   nrm(ks[4], (NLAYERS, H, H), bf16),
        'bo':   jnp.zeros((NLAYERS, 1, H), jnp.float32),
        'ln1g': jnp.ones((NLAYERS, 1, H), jnp.float32),
        'ln1b': jnp.zeros((NLAYERS, 1, H), jnp.float32),
        'wi':   nrm(ks[5], (NLAYERS, H, I), bf16),
        'bi':   jnp.zeros((NLAYERS, 1, I), jnp.float32),
        'wf':   nrm(ks[6], (NLAYERS, I, H), bf16),
        'bf':   jnp.zeros((NLAYERS, 1, H), jnp.float32),
        'ln2g': jnp.ones((NLAYERS, 1, H), jnp.float32),
        'ln2b': jnp.zeros((NLAYERS, 1, H), jnp.float32),
        # nn.Linear projection (weight stored transposed), projection_dim=128
        'proj_w': nrm(ks[7], (H, P), bf16),
        'proj_b': jnp.zeros((1, P), jnp.float32),
    }


# ---------------- full forward (== SentenceEmbeddingModel.forward) ----------------

def sentence_embedding_forward(params, input_ids, attention_mask):
    # Glue kept in plain JAX: embedding-table gathers + RoBERTa position ids.
    # TODO(synk): the row gathers could move in-kernel via PrefetchScalarGridSpec
    # + pl.Element row-gather BlockSpecs; left outside for simplicity.
    mask_f = attention_mask.astype(jnp.float32)
    # RoBERTa-style position ids: cumsum over the mask, offset by padding_idx=1.
    pos_ids = jnp.cumsum(attention_mask, axis=-1) * attention_mask + 1
    emb = (params['word_emb'][input_ids]
           + params['pos_emb'][pos_ids]
           + params['type_emb'])                          # (B,S,H) f32
    bias = (1.0 - mask_f)[:, None, :] * -10000.0          # (B,1,S) additive mask
    return fused_forward(emb, bias, params)


if __name__ == "__main__":
    key = jax.random.PRNGKey(0)
    k_ids, k_params = jax.random.split(key)

    input_ids = jax.random.randint(k_ids, (B, S), 0, VOCAB, dtype=jnp.int32)
    attention_mask = jnp.ones((B, S), jnp.int32).at[1, 6:].set(0)  # pad tail of seq 1

    params = init_params(k_params)

    out = sentence_embedding_forward(params, input_ids, attention_mask)
    out = jax.block_until_ready(out)
    assert out.shape == (B, P) and out.dtype == jnp.float32
    print("KERNEL_OK")
</pallas_src>

<mosaic_0001>
module attributes {stable_mosaic.version = 11 : i64} {
  func.func @fused_kernel(%arg0: i32, %arg1: memref<2x8x128xf32, #tpu.memory_space<vmem>>, %arg2: memref<1x128xf32, #tpu.memory_space<vmem>>, %arg3: memref<1x128xf32, #tpu.memory_space<vmem>>, %arg4: memref<2x1x8xf32, #tpu.memory_space<vmem>>, %arg5: memref<2x128x384xbf16, #tpu.memory_space<vmem>>, %arg6: memref<2x1x384xf32, #tpu.memory_space<vmem>>, %arg7: memref<2x128x128xbf16, #tpu.memory_space<vmem>>, %arg8: memref<2x1x128xf32, #tpu.memory_space<vmem>>, %arg9: memref<2x1x128xf32, #tpu.memory_space<vmem>>, %arg10: memref<2x1x128xf32, #tpu.memory_space<vmem>>, %arg11: memref<2x128x256xbf16, #tpu.memory_space<vmem>>, %arg12: memref<2x1x256xf32, #tpu.memory_space<vmem>>, %arg13: memref<2x256x128xbf16, #tpu.memory_space<vmem>>, %arg14: memref<2x1x128xf32, #tpu.memory_space<vmem>>, %arg15: memref<2x1x128xf32, #tpu.memory_space<vmem>>, %arg16: memref<2x1x128xf32, #tpu.memory_space<vmem>>, %arg17: memref<128x128xbf16, #tpu.memory_space<vmem>>, %arg18: memref<1x128xf32, #tpu.memory_space<vmem>>, %arg19: memref<2x128xf32, #tpu.memory_space<vmem>>) attributes {dimension_semantics = [#tpu.dimension_semantics<arbitrary>], iteration_bounds = array<i64: 1>, scalar_prefetch = 0 : i64, scratch_operands = 0 : i64, tpu.core_type = #tpu.core_type<tc>, window_params = [{pipeline_mode = #tpu.pipeline_mode<synchronous>, transform_indices = @transform_0, window_bounds = array<i64: 2, 8, 128>}, {pipeline_mode = #tpu.pipeline_mode<synchronous>, transform_indices = @transform_1, window_bounds = array<i64: 1, 128>}, {pipeline_mode = #tpu.pipeline_mode<synchronous>, transform_indices = @transform_2, window_bounds = array<i64: 1, 128>}, {pipeline_mode = #tpu.pipeline_mode<synchronous>, transform_indices = @transform_3, window_bounds = array<i64: 2, 1, 8>}, {pipeline_mode = #tpu.pipeline_mode<synchronous>, transform_indices = @transform_4, window_bounds = array<i64: 2, 128, 384>}, {pipeline_mode = #tpu.pipeline_mode<synchronous>, transform_indices = @transform_5, window_bounds = array<i64: 2, 1, 384>}, {pipeline_mode = #tpu.pipeline_mode<synchronous>, transform_indices = @transform_6, window_bounds = array<i64: 2, 128, 128>}, {pipeline_mode = #tpu.pipeline_mode<synchronous>, transform_indices = @transform_7, window_bounds = array<i64: 2, 1, 128>}, {pipeline_mode = #tpu.pipeline_mode<synchronous>, transform_indices = @transform_8, window_bounds = array<i64: 2, 1, 128>}, {pipeline_mode = #tpu.pipeline_mode<synchronous>, transform_indices = @transform_9, window_bounds = array<i64: 2, 1, 128>}, {pipeline_mode = #tpu.pipeline_mode<synchronous>, transform_indices = @transform_10, window_bounds = array<i64: 2, 128, 256>}, {pipeline_mode = #tpu.pipeline_mode<synchronous>, transform_indices = @transform_11, window_bounds = array<i64: 2, 1, 256>}, {pipeline_mode = #tpu.pipeline_mode<synchronous>, transform_indices = @transform_12, window_bounds = array<i64: 2, 256, 128>}, {pipeline_mode = #tpu.pipeline_mode<synchronous>, transform_indices = @transform_13, window_bounds = array<i64: 2, 1, 128>}, {pipeline_mode = #tpu.pipeline_mode<synchronous>, transform_indices = @transform_14, window_bounds = array<i64: 2, 1, 128>}, {pipeline_mode = #tpu.pipeline_mode<synchronous>, transform_indices = @transform_15, window_bounds = array<i64: 2, 1, 128>}, {pipeline_mode = #tpu.pipeline_mode<synchronous>, transform_indices = @transform_16, window_bounds = array<i64: 128, 128>}, {pipeline_mode = #tpu.pipeline_mode<synchronous>, transform_indices = @transform_17, window_bounds = array<i64: 1, 128>}, {pipeline_mode = #tpu.pipeline_mode<synchronous>, transform_indices = @transform_18, window_bounds = array<i64: 2, 128>}]} {
    %c0 = arith.constant 0 : index
    %c0_0 = arith.constant 0 : index
    %c0_1 = arith.constant 0 : index
    %0 = vector.load %arg1[%c0, %c0_0, %c0_1] : memref<2x8x128xf32, #tpu.memory_space<vmem>>, vector<2x8x128xf32>
    %c0_2 = arith.constant 0 : index
    %c0_3 = arith.constant 0 : index
    %1 = vector.load %arg2[%c0_2, %c0_3] : memref<1x128xf32, #tpu.memory_space<vmem>>, vector<1x128xf32>
    %c0_4 = arith.constant 0 : index
    %c0_5 = arith.constant 0 : index
    %2 = vector.load %arg3[%c0_4, %c0_5] : memref<1x128xf32, #tpu.memory_space<vmem>>, vector<1x128xf32>
    %cst = arith.constant dense<0.000000e+00> : vector<2x8xf32>
    %3 = vector.multi_reduction <add>, %0, %cst [2] : vector<2x8x128xf32> to vector<2x8xf32>
    %4 = vector.shape_cast %3 : vector<2x8xf32> to vector<2x8x1xf32>
    %cst_6 = arith.constant 1.280000e+02 : f32
    %5 = vector.broadcast %cst_6 : f32 to vector<2x8x1xf32>
    %6 = arith.divf %4, %5 : vector<2x8x1xf32>
    %7 = vector.broadcast %6 : vector<2x8x1xf32> to vector<2x8x128xf32>
    %8 = arith.subf %0, %7 : vector<2x8x128xf32>
    %9 = arith.mulf %8, %8 : vector<2x8x128xf32>
    %cst_7 = arith.constant dense<0.000000e+00> : vector<2x8xf32>
    %10 = vector.multi_reduction <add>, %9, %cst_7 [2] : vector<2x8x128xf32> to vector<2x8xf32>
    %11 = vector.shape_cast %10 : vector<2x8xf32> to vector<2x8x1xf32>
    %cst_8 = arith.constant 1.280000e+02 : f32
    %12 = vector.broadcast %cst_8 : f32 to vector<2x8x1xf32>
    %13 = arith.divf %11, %12 : vector<2x8x1xf32>
    %14 = vector.broadcast %6 : vector<2x8x1xf32> to vector<2x8x128xf32>
    %15 = arith.subf %0, %14 : vector<2x8x128xf32>
    %cst_9 = arith.constant 9.99999974E-6 : f32
    %16 = vector.broadcast %cst_9 : f32 to vector<2x8x1xf32>
    %17 = arith.addf %13, %16 : vector<2x8x1xf32>
    %18 = math.rsqrt %17 : vector<2x8x1xf32>
    %19 = vector.broadcast %18 : vector<2x8x1xf32> to vector<2x8x128xf32>
    %20 = arith.mulf %15, %19 : vector<2x8x128xf32>
    %21 = vector.shape_cast %1 : vector<1x128xf32> to vector<1x1x128xf32>
    %22 = vector.broadcast %21 : vector<1x1x128xf32> to vector<2x8x128xf32>
    %23 = arith.mulf %20, %22 : vector<2x8x128xf32>
    %24 = vector.shape_cast %2 : vector<1x128xf32> to vector<1x1x128xf32>
    %25 = vector.broadcast %24 : vector<1x1x128xf32> to vector<2x8x128xf32>
    %26 = arith.addf %23, %25 : vector<2x8x128xf32>
    %c0_10 = arith.constant 0 : index
    %c0_11 = arith.constant 0 : index
    %c0_12 = arith.constant 0 : index
    %27 = vector.load %arg4[%c0_10, %c0_11, %c0_12] : memref<2x1x8xf32, #tpu.memory_space<vmem>>, vector<2x1x8xf32>
    %28 = vector.shape_cast %27 : vector<2x1x8xf32> to vector<2x1x8xf32>
    %29 = vector.broadcast %28 : vector<2x1x8xf32> to vector<2x8x8xf32>
    %30 = vector.shape_cast %26 : vector<2x8x128xf32> to vector<16x128xf32>
    %31 = arith.truncf %30 : vector<16x128xf32> to vector<16x128xbf16>
    %c0_13 = arith.constant 0 : index
    %c0_14 = arith.constant 0 : index
    %c0_15 = arith.constant 0 : index
    %32 = vector.load %arg5[%c0_13, %c0_14, %c0_15] : memref<2x128x384xbf16, #tpu.memory_space<vmem>>, vector<1x128x384xbf16>
    %33 = vector.shape_cast %32 : vector<1x128x384xbf16> to vector<128x384xbf16>
    %cst_16 = arith.constant dense<0.000000e+00> : vector<16x384xf32>
    %34 = tpu.matmul %31, %33, %cst_16 {dimension_numbers = #tpu.dot_dimension_numbers<[1], [0], [0], [1], [0, 0, 1, 1], [], []>} : vector<16x128xbf16>, vector<128x384xbf16>, vector<16x384xf32> -> vector<16x384xf32>
    %c0_17 = arith.constant 0 : index
    %c0_18 = arith.constant 0 : index
    %c0_19 = arith.constant 0 : index
    %35 = vector.load %arg6[%c0_17, %c0_18, %c0_19] : memref<2x1x384xf32, #tpu.memory_space<vmem>>, vector<1x1x384xf32>
    %36 = vector.shape_cast %35 : vector<1x1x384xf32> to vector<1x384xf32>
    %37 = vector.broadcast %36 : vector<1x384xf32> to vector<16x384xf32>
    %38 = arith.addf %34, %37 : vector<16x384xf32>
    %39 = vector.extract_strided_slice %38 {offsets = [0, 0], sizes = [16, 128], strides = [1, 1]} : vector<16x384xf32> to vector<16x128xf32>
    %40 = vector.shape_cast %39 : vector<16x128xf32> to vector<2x8x128xf32>
    %41 = arith.truncf %40 : vector<2x8x128xf32> to vector<2x8x128xbf16>
    %42 = vector.extract_strided_slice %38 {offsets = [0, 128], sizes = [16, 128], strides = [1, 1]} : vector<16x384xf32> to vector<16x128xf32>
    %43 = vector.shape_cast %42 : vector<16x128xf32> to vector<2x8x128xf32>
    %44 = arith.truncf %43 : vector<2x8x128xf32> to vector<2x8x128xbf16>
    %45 = vector.extract_strided_slice %38 {offsets = [0, 256], sizes = [16, 128], strides = [1, 1]} : vector<16x384xf32> to vector<16x128xf32>
    %46 = vector.shape_cast %45 : vector<16x128xf32> to vector<2x8x128xf32>
    %47 = arith.truncf %46 : vector<2x8x128xf32> to vector<2x8x128xbf16>
    %48 = vector.extract_strided_slice %41 {offsets = [0, 0, 0], sizes = [2, 8, 64], strides = [1, 1, 1]} : vector<2x8x128xbf16> to vector<2x8x64xbf16>
    %49 = vector.extract_strided_slice %44 {offsets = [0, 0, 0], sizes = [2, 8, 64], strides = [1, 1, 1]} : vector<2x8x128xbf16> to vector<2x8x64xbf16>
    "tpu.trace_start"() <{level = 10 : i32, message = "bqd,bkd->bqk"}> : () -> ()
    %cst_20 = arith.constant dense<0.000000e+00> : vector<2x8x8xf32>
    %50 = tpu.matmul %48, %49, %cst_20 {dimension_numbers = #tpu.dot_dimension_numbers<[2], [2], [1], [1], [0, 0, 0, 1, 1, 1], [0], [0]>} : vector<2x8x64xbf16>, vector<2x8x64xbf16>, vector<2x8x8xf32> -> vector<2x8x8xf32>
    "tpu.trace_stop"() : () -> ()
    %cst_21 = arith.constant 1.250000e-01 : f32
    %51 = vector.broadcast %cst_21 : f32 to vector<2x8x8xf32>
    %52 = arith.mulf %50, %51 : vector<2x8x8xf32>
    %53 = arith.addf %52, %29 : vector<2x8x8xf32>
    %cst_22 = arith.constant dense<0xFF800000> : vector<2x8xf32>
    %54 = vector.multi_reduction <maximumf>, %53, %cst_22 [2] : vector<2x8x8xf32> to vector<2x8xf32>
    %55 = vector.shape_cast %54 : vector<2x8xf32> to vector<2x8x1xf32>
    %56 = vector.broadcast %55 : vector<2x8x1xf32> to vector<2x8x8xf32>
    %57 = arith.subf %53, %56 : vector<2x8x8xf32>
    %58 = math.exp %57 : vector<2x8x8xf32>
    %cst_23 = arith.constant dense<0.000000e+00> : vector<2x8xf32>
    %59 = vector.multi_reduction <add>, %58, %cst_23 [2] : vector<2x8x8xf32> to vector<2x8xf32>
    %60 = vector.shape_cast %59 : vector<2x8xf32> to vector<2x8x1xf32>
    %61 = tpu.reciprocal %60 {approx = true} : vector<2x8x1xf32> -> vector<2x8x1xf32>
    %62 = vector.broadcast %61 : vector<2x8x1xf32> to vector<2x8x8xf32>
    %63 = arith.mulf %58, %62 : vector<2x8x8xf32>
    %64 = arith.truncf %63 : vector<2x8x8xf32> to vector<2x8x8xbf16>
    %65 = vector.extract_strided_slice %47 {offsets = [0, 0, 0], sizes = [2, 8, 64], strides = [1, 1, 1]} : vector<2x8x128xbf16> to vector<2x8x64xbf16>
    "tpu.trace_start"() <{level = 10 : i32, message = "bqk,bkd->bqd"}> : () -> ()
    %cst_24 = arith.constant dense<0.000000e+00> : vector<2x8x64xf32>
    %66 = tpu.matmul %64, %65, %cst_24 {dimension_numbers = #tpu.dot_dimension_numbers<[2], [1], [1], [2], [0, 0, 0, 1, 1, 2], [0], [0]>} : vector<2x8x8xbf16>, vector<2x8x64xbf16>, vector<2x8x64xf32> -> vector<2x8x64xf32>
    "tpu.trace_stop"() : () -> ()
    %67 = vector.extract_strided_slice %41 {offsets = [0, 0, 64], sizes = [2, 8, 64], strides = [1, 1, 1]} : vector<2x8x128xbf16> to vector<2x8x64xbf16>
    %68 = vector.extract_strided_slice %44 {offsets = [0, 0, 64], sizes = [2, 8, 64], strides = [1, 1, 1]} : vector<2x8x128xbf16> to vector<2x8x64xbf16>
    "tpu.trace_start"() <{level = 10 : i32, message = "bqd,bkd->bqk"}> : () -> ()
    %cst_25 = arith.constant dense<0.000000e+00> : vector<2x8x8xf32>
    %69 = tpu.matmul %67, %68, %cst_25 {dimension_numbers = #tpu.dot_dimension_numbers<[2], [2], [1], [1], [0, 0, 0, 1, 1, 1], [0], [0]>} : vector<2x8x64xbf16>, vector<2x8x64xbf16>, vector<2x8x8xf32> -> vector<2x8x8xf32>
    "tpu.trace_stop"() : () -> ()
    %cst_26 = arith.constant 1.250000e-01 : f32
    %70 = vector.broadcast %cst_26 : f32 to vector<2x8x8xf32>
    %71 = arith.mulf %69, %70 : vector<2x8x8xf32>
    %72 = arith.addf %71, %29 : vector<2x8x8xf32>
    %cst_27 = arith.constant dense<0xFF800000> : vector<2x8xf32>
    %73 = vector.multi_reduction <maximumf>, %72, %cst_27 [2] : vector<2x8x8xf32> to vector<2x8xf32>
    %74 = vector.shape_cast %73 : vector<2x8xf32> to vector<2x8x1xf32>
    %75 = vector.broadcast %74 : vector<2x8x1xf32> to vector<2x8x8xf32>
    %76 = arith.subf %72, %75 : vector<2x8x8xf32>
    %77 = math.exp %76 : vector<2x8x8xf32>
    %cst_28 = arith.constant dense<0.000000e+00> : vector<2x8xf32>
    %78 = vector.multi_reduction <add>, %77, %cst_28 [2] : vector<2x8x8xf32> to vector<2x8xf32>
    %79 = vector.shape_cast %78 : vector<2x8xf32> to vector<2x8x1xf32>
    %80 = tpu.reciprocal %79 {approx = true} : vector<2x8x1xf32> -> vector<2x8x1xf32>
    %81 = vector.broadcast %80 : vector<2x8x1xf32> to vector<2x8x8xf32>
    %82 = arith.mulf %77, %81 : vector<2x8x8xf32>
    %83 = arith.truncf %82 : vector<2x8x8xf32> to vector<2x8x8xbf16>
    %84 = vector.extract_strided_slice %47 {offsets = [0, 0, 64], sizes = [2, 8, 64], strides = [1, 1, 1]} : vector<2x8x128xbf16> to vector<2x8x64xbf16>
    "tpu.trace_start"() <{level = 10 : i32, message = "bqk,bkd->bqd"}> : () -> ()
    %cst_29 = arith.constant dense<0.000000e+00> : vector<2x8x64xf32>
    %85 = tpu.matmul %83, %84, %cst_29 {dimension_numbers = #tpu.dot_dimension_numbers<[2], [1], [1], [2], [0, 0, 0, 1, 1, 2], [0], [0]>} : vector<2x8x8xbf16>, vector<2x8x64xbf16>, vector<2x8x64xf32> -> vector<2x8x64xf32>
    "tpu.trace_stop"() : () -> ()
    %86 = tpu.concatenate %66, %85 in 2 : vector<2x8x64xf32>, vector<2x8x64xf32> -> vector<2x8x128xf32>
    %87 = vector.shape_cast %86 : vector<2x8x128xf32> to vector<16x128xf32>
    %88 = arith.truncf %87 : vector<16x128xf32> to vector<16x128xbf16>
    %c0_30 = arith.constant 0 : index
    %c0_31 = arith.constant 0 : index
    %c0_32 = arith.constant 0 : index
    %89 = vector.load %arg7[%c0_30, %c0_31, %c0_32] : memref<2x128x128xbf16, #tpu.memory_space<vmem>>, vector<1x128x128xbf16>
    %90 = vector.shape_cast %89 : vector<1x128x128xbf16> to vector<128x128xbf16>
    %cst_33 = arith.constant dense<0.000000e+00> : vector<16x128xf32>
    %91 = tpu.matmul %88, %90, %cst_33 {dimension_numbers = #tpu.dot_dimension_numbers<[1], [0], [0], [1], [0, 0, 1, 1], [], []>} : vector<16x128xbf16>, vector<128x128xbf16>, vector<16x128xf32> -> vector<16x128xf32>
    %c0_34 = arith.constant 0 : index
    %c0_35 = arith.constant 0 : index
    %c0_36 = arith.constant 0 : index
    %92 = vector.load %arg8[%c0_34, %c0_35, %c0_36] : memref<2x1x128xf32, #tpu.memory_space<vmem>>, vector<1x1x128xf32>
    %93 = vector.shape_cast %92 : vector<1x1x128xf32> to vector<1x128xf32>
    %94 = vector.broadcast %93 : vector<1x128xf32> to vector<16x128xf32>
    %95 = arith.addf %91, %94 : vector<16x128xf32>
    %96 = vector.shape_cast %95 : vector<16x128xf32> to vector<2x8x128xf32>
    %97 = arith.addf %96, %26 : vector<2x8x128xf32>
    %c0_37 = arith.constant 0 : index
    %c0_38 = arith.constant 0 : index
    %c0_39 = arith.constant 0 : index
    %98 = vector.load %arg9[%c0_37, %c0_38, %c0_39] : memref<2x1x128xf32, #tpu.memory_space<vmem>>, vector<1x1x128xf32>
    %99 = vector.shape_cast %98 : vector<1x1x128xf32> to vector<1x128xf32>
    %c0_40 = arith.constant 0 : index
    %c0_41 = arith.constant 0 : index
    %c0_42 = arith.constant 0 : index
    %100 = vector.load %arg10[%c0_40, %c0_41, %c0_42] : memref<2x1x128xf32, #tpu.memory_space<vmem>>, vector<1x1x128xf32>
    %101 = vector.shape_cast %100 : vector<1x1x128xf32> to vector<1x128xf32>
    %cst_43 = arith.constant dense<0.000000e+00> : vector<2x8xf32>
    %102 = vector.multi_reduction <add>, %97, %cst_43 [2] : vector<2x8x128xf32> to vector<2x8xf32>
    %103 = vector.shape_cast %102 : vector<2x8xf32> to vector<2x8x1xf32>
    %cst_44 = arith.constant 1.280000e+02 : f32
    %104 = vector.broadcast %cst_44 : f32 to vector<2x8x1xf32>
    %105 = arith.divf %103, %104 : vector<2x8x1xf32>
    %106 = vector.broadcast %105 : vector<2x8x1xf32> to vector<2x8x128xf32>
    %107 = arith.subf %97, %106 : vector<2x8x128xf32>
    %108 = arith.mulf %107, %107 : vector<2x8x128xf32>
    %cst_45 = arith.constant dense<0.000000e+00> : vector<2x8xf32>
    %109 = vector.multi_reduction <add>, %108, %cst_45 [2] : vector<2x8x128xf32> to vector<2x8xf32>
    %110 = vector.shape_cast %109 : vector<2x8xf32> to vector<2x8x1xf32>
    %cst_46 = arith.constant 1.280000e+02 : f32
    %111 = vector.broadcast %cst_46 : f32 to vector<2x8x1xf32>
    %112 = arith.divf %110, %111 : vector<2x8x1xf32>
    %113 = vector.broadcast %105 : vector<2x8x1xf32> to vector<2x8x128xf32>
    %114 = arith.subf %97, %113 : vector<2x8x128xf32>
    %cst_47 = arith.constant 9.99999974E-6 : f32
    %115 = vector.broadcast %cst_47 : f32 to vector<2x8x1xf32>
    %116 = arith.addf %112, %115 : vector<2x8x1xf32>
    %117 = math.rsqrt %116 : vector<2x8x1xf32>
    %118 = vector.broadcast %117 : vector<2x8x1xf32> to vector<2x8x128xf32>
    %119 = arith.mulf %114, %118 : vector<2x8x128xf32>
    %120 = vector.shape_cast %99 : vector<1x128xf32> to vector<1x1x128xf32>
    %121 = vector.broadcast %120 : vector<1x1x128xf32> to vector<2x8x128xf32>
    %122 = arith.mulf %119, %121 : vector<2x8x128xf32>
    %123 = vector.shape_cast %101 : vector<1x128xf32> to vector<1x1x128xf32>
    %124 = vector.broadcast %123 : vector<1x1x128xf32> to vector<2x8x128xf32>
    %125 = arith.addf %122, %124 : vector<2x8x128xf32>
    %126 = vector.shape_cast %125 : vector<2x8x128xf32> to vector<16x128xf32>
    %127 = arith.truncf %126 : vector<16x128xf32> to vector<16x128xbf16>
    %c0_48 = arith.constant 0 : index
    %c0_49 = arith.constant 0 : index
    %c0_50 = arith.constant 0 : index
    %128 = vector.load %arg11[%c0_48, %c0_49, %c0_50] : memref<2x128x256xbf16, #tpu.memory_space<vmem>>, vector<1x128x256xbf16>
    %129 = vector.shape_cast %128 : vector<1x128x256xbf16> to vector<128x256xbf16>
    %cst_51 = arith.constant dense<0.000000e+00> : vector<16x256xf32>
    %130 = tpu.matmul %127, %129, %cst_51 {dimension_numbers = #tpu.dot_dimension_numbers<[1], [0], [0], [1], [0, 0, 1, 1], [], []>} : vector<16x128xbf16>, vector<128x256xbf16>, vector<16x256xf32> -> vector<16x256xf32>
    %c0_52 = arith.constant 0 : index
    %c0_53 = arith.constant 0 : index
    %c0_54 = arith.constant 0 : index
    %131 = vector.load %arg12[%c0_52, %c0_53, %c0_54] : memref<2x1x256xf32, #tpu.memory_space<vmem>>, vector<1x1x256xf32>
    %132 = vector.shape_cast %131 : vector<1x1x256xf32> to vector<1x256xf32>
    %133 = vector.broadcast %132 : vector<1x256xf32> to vector<16x256xf32>
    %134 = arith.addf %130, %133 : vector<16x256xf32>
    %cst_55 = arith.constant 5.000000e-01 : f32
    %135 = vector.broadcast %cst_55 : f32 to vector<16x256xf32>
    %136 = arith.mulf %135, %134 : vector<16x256xf32>
    %cst_56 = arith.constant 0.707106769 : f32
    %137 = vector.broadcast %cst_56 : f32 to vector<16x256xf32>
    %138 = arith.mulf %134, %137 : vector<16x256xf32>
    %cst_57 = arith.constant 0.000000e+00 : f32
    %139 = vector.broadcast %cst_57 : f32 to vector<16x256xf32>
    %140 = arith.cmpf oge, %138, %139 : vector<16x256xf32>
    %cst_58 = arith.constant 1.000000e+00 : f32
    %cst_59 = arith.constant -1.000000e+00 : f32
    %141 = vector.broadcast %cst_58 : f32 to vector<16x256xf32>
    %142 = vector.broadcast %cst_59 : f32 to vector<16x256xf32>
    %143 = arith.select %140, %141, %142 : vector<16x256xi1>, vector<16x256xf32>
    %144 = math.absf %138 : vector<16x256xf32>
    %cst_60 = arith.constant 0.327591091 : f32
    %145 = vector.broadcast %cst_60 : f32 to vector<16x256xf32>
    %146 = arith.mulf %145, %144 : vector<16x256xf32>
    %cst_61 = arith.constant 1.000000e+00 : f32
    %147 = vector.broadcast %cst_61 : f32 to vector<16x256xf32>
    %148 = arith.addf %147, %146 : vector<16x256xf32>
    %149 = tpu.reciprocal %148 {approx = true} : vector<16x256xf32> -> vector<16x256xf32>
    %cst_62 = arith.constant 1.06140542 : f32
    %150 = vector.broadcast %cst_62 : f32 to vector<16x256xf32>
    %151 = arith.mulf %150, %149 : vector<16x256xf32>
    %cst_63 = arith.constant -1.45315206 : f32
    %152 = vector.broadcast %cst_63 : f32 to vector<16x256xf32>
    %153 = arith.addf %151, %152 : vector<16x256xf32>
    %154 = arith.mulf %153, %149 : vector<16x256xf32>
    %cst_64 = arith.constant 1.42141378 : f32
    %155 = vector.broadcast %cst_64 : f32 to vector<16x256xf32>
    %156 = arith.addf %154, %155 : vector<16x256xf32>
    %157 = arith.mulf %156, %149 : vector<16x256xf32>
    %cst_65 = arith.constant -0.284496725 : f32
    %158 = vector.broadcast %cst_65 : f32 to vector<16x256xf32>
    %159 = arith.addf %157, %158 : vector<16x256xf32>
    %160 = arith.mulf %159, %149 : vector<16x256xf32>
    %cst_66 = arith.constant 0.254829586 : f32
    %161 = vector.broadcast %cst_66 : f32 to vector<16x256xf32>
    %162 = arith.addf %160, %161 : vector<16x256xf32>
    %163 = arith.mulf %162, %149 : vector<16x256xf32>
    %cst_67 = arith.constant 0.000000e+00 : f32
    %164 = vector.broadcast %cst_67 : f32 to vector<16x256xf32>
    %165 = arith.subf %164, %144 : vector<16x256xf32>
    %166 = arith.mulf %165, %144 : vector<16x256xf32>
    %167 = math.exp %166 : vector<16x256xf32>
    %168 = arith.mulf %163, %167 : vector<16x256xf32>
    %cst_68 = arith.constant 1.000000e+00 : f32
    %169 = vector.broadcast %cst_68 : f32 to vector<16x256xf32>
    %170 = arith.subf %169, %168 : vector<16x256xf32>
    %171 = arith.mulf %143, %170 : vector<16x256xf32>
    %cst_69 = arith.constant 1.000000e+00 : f32
    %172 = vector.broadcast %cst_69 : f32 to vector<16x256xf32>
    %173 = arith.addf %172, %171 : vector<16x256xf32>
    %174 = arith.mulf %136, %173 : vector<16x256xf32>
    %175 = arith.truncf %174 : vector<16x256xf32> to vector<16x256xbf16>
    %c0_70 = arith.constant 0 : index
    %c0_71 = arith.constant 0 : index
    %c0_72 = arith.constant 0 : index
    %176 = vector.load %arg13[%c0_70, %c0_71, %c0_72] : memref<2x256x128xbf16, #tpu.memory_space<vmem>>, vector<1x256x128xbf16>
    %177 = vector.shape_cast %176 : vector<1x256x128xbf16> to vector<256x128xbf16>
    %cst_73 = arith.constant dense<0.000000e+00> : vector<16x128xf32>
    %178 = tpu.matmul %175, %177, %cst_73 {dimension_numbers = #tpu.dot_dimension_numbers<[1], [0], [0], [1], [0, 0, 1, 1], [], []>} : vector<16x256xbf16>, vector<256x128xbf16>, vector<16x128xf32> -> vector<16x128xf32>
    %c0_74 = arith.constant 0 : index
    %c0_75 = arith.constant 0 : index
    %c0_76 = arith.constant 0 : index
    %179 = vector.load %arg14[%c0_74, %c0_75, %c0_76] : memref<2x1x128xf32, #tpu.memory_space<vmem>>, vector<1x1x128xf32>
    %180 = vector.shape_cast %179 : vector<1x1x128xf32> to vector<1x128xf32>
    %181 = vector.broadcast %180 : vector<1x128xf32> to vector<16x128xf32>
    %182 = arith.addf %178, %181 : vector<16x128xf32>
    %183 = vector.shape_cast %182 : vector<16x128xf32> to vector<2x8x128xf32>
    %184 = arith.addf %183, %125 : vector<2x8x128xf32>
    %c0_77 = arith.constant 0 : index
    %c0_78 = arith.constant 0 : index
    %c0_79 = arith.constant 0 : index
    %185 = vector.load %arg15[%c0_77, %c0_78, %c0_79] : memref<2x1x128xf32, #tpu.memory_space<vmem>>, vector<1x1x128xf32>
    %186 = vector.shape_cast %185 : vector<1x1x128xf32> to vector<1x128xf32>
    %c0_80 = arith.constant 0 : index
    %c0_81 = arith.constant 0 : index
    %c0_82 = arith.constant 0 : index
    %187 = vector.load %arg16[%c0_80, %c0_81, %c0_82] : memref<2x1x128xf32, #tpu.memory_space<vmem>>, vector<1x1x128xf32>
    %188 = vector.shape_cast %187 : vector<1x1x128xf32> to vector<1x128xf32>
    %cst_83 = arith.constant dense<0.000000e+00> : vector<2x8xf32>
    %189 = vector.multi_reduction <add>, %184, %cst_83 [2] : vector<2x8x128xf32> to vector<2x8xf32>
    %190 = vector.shape_cast %189 : vector<2x8xf32> to vector<2x8x1xf32>
    %cst_84 = arith.constant 1.280000e+02 : f32
    %191 = vector.broadcast %cst_84 : f32 to vector<2x8x1xf32>
    %192 = arith.divf %190, %191 : vector<2x8x1xf32>
    %193 = vector.broadcast %192 : vector<2x8x1xf32> to vector<2x8x128xf32>
    %194 = arith.subf %184, %193 : vector<2x8x128xf32>
    %195 = arith.mulf %194, %194 : vector<2x8x128xf32>
    %cst_85 = arith.constant dense<0.000000e+00> : vector<2x8xf32>
    %196 = vector.multi_reduction <add>, %195, %cst_85 [2] : vector<2x8x128xf32> to vector<2x8xf32>
    %197 = vector.shape_cast %196 : vector<2x8xf32> to vector<2x8x1xf32>
    %cst_86 = arith.constant 1.280000e+02 : f32
    %198 = vector.broadcast %cst_86 : f32 to vector<2x8x1xf32>
    %199 = arith.divf %197, %198 : vector<2x8x1xf32>
    %200 = vector.broadcast %192 : vector<2x8x1xf32> to vector<2x8x128xf32>
    %201 = arith.subf %184, %200 : vector<2x8x128xf32>
    %cst_87 = arith.constant 9.99999974E-6 : f32
    %202 = vector.broadcast %cst_87 : f32 to vector<2x8x1xf32>
    %203 = arith.addf %199, %202 : vector<2x8x1xf32>
    %204 = math.rsqrt %203 : vector<2x8x1xf32>
    %205 = vector.broadcast %204 : vector<2x8x1xf32> to vector<2x8x128xf32>
    %206 = arith.mulf %201, %205 : vector<2x8x128xf32>
    %207 = vector.shape_cast %186 : vector<1x128xf32> to vector<1x1x128xf32>
    %208 = vector.broadcast %207 : vector<1x1x128xf32> to vector<2x8x128xf32>
    %209 = arith.mulf %206, %208 : vector<2x8x128xf32>
    %210 = vector.shape_cast %188 : vector<1x128xf32> to vector<1x1x128xf32>
    %211 = vector.broadcast %210 : vector<1x1x128xf32> to vector<2x8x128xf32>
    %212 = arith.addf %209, %211 : vector<2x8x128xf32>
    %213 = vector.shape_cast %212 : vector<2x8x128xf32> to vector<16x128xf32>
    %214 = arith.truncf %213 : vector<16x128xf32> to vector<16x128xbf16>
    %c1 = arith.constant 1 : index
    %c0_88 = arith.constant 0 : index
    %c0_89 = arith.constant 0 : index
    %215 = vector.load %arg5[%c1, %c0_88, %c0_89] : memref<2x128x384xbf16, #tpu.memory_space<vmem>>, vector<1x128x384xbf16>
    %216 = vector.shape_cast %215 : vector<1x128x384xbf16> to vector<128x384xbf16>
    %cst_90 = arith.constant dense<0.000000e+00> : vector<16x384xf32>
    %217 = tpu.matmul %214, %216, %cst_90 {dimension_numbers = #tpu.dot_dimension_numbers<[1], [0], [0], [1], [0, 0, 1, 1], [], []>} : vector<16x128xbf16>, vector<128x384xbf16>, vector<16x384xf32> -> vector<16x384xf32>
    %c1_91 = arith.constant 1 : index
    %c0_92 = arith.constant 0 : index
    %c0_93 = arith.constant 0 : index
    %218 = vector.load %arg6[%c1_91, %c0_92, %c0_93] : memref<2x1x384xf32, #tpu.memory_space<vmem>>, vector<1x1x384xf32>
    %219 = vector.shape_cast %218 : vector<1x1x384xf32> to vector<1x384xf32>
    %220 = vector.broadcast %219 : vector<1x384xf32> to vector<16x384xf32>
    %221 = arith.addf %217, %220 : vector<16x384xf32>
    %222 = vector.extract_strided_slice %221 {offsets = [0, 0], sizes = [16, 128], strides = [1, 1]} : vector<16x384xf32> to vector<16x128xf32>
    %223 = vector.shape_cast %222 : vector<16x128xf32> to vector<2x8x128xf32>
    %224 = arith.truncf %223 : vector<2x8x128xf32> to vector<2x8x128xbf16>
    %225 = vector.extract_strided_slice %221 {offsets = [0, 128], sizes = [16, 128], strides = [1, 1]} : vector<16x384xf32> to vector<16x128xf32>
    %226 = vector.shape_cast %225 : vector<16x128xf32> to vector<2x8x128xf32>
    %227 = arith.truncf %226 : vector<2x8x128xf32> to vector<2x8x128xbf16>
    %228 = vector.extract_strided_slice %221 {offsets = [0, 256], sizes = [16, 128], strides = [1, 1]} : vector<16x384xf32> to vector<16x128xf32>
    %229 = vector.shape_cast %228 : vector<16x128xf32> to vector<2x8x128xf32>
    %230 = arith.truncf %229 : vector<2x8x128xf32> to vector<2x8x128xbf16>
    %231 = vector.extract_strided_slice %224 {offsets = [0, 0, 0], sizes = [2, 8, 64], strides = [1, 1, 1]} : vector<2x8x128xbf16> to vector<2x8x64xbf16>
    %232 = vector.extract_strided_slice %227 {offsets = [0, 0, 0], sizes = [2, 8, 64], strides = [1, 1, 1]} : vector<2x8x128xbf16> to vector<2x8x64xbf16>
    "tpu.trace_start"() <{level = 10 : i32, message = "bqd,bkd->bqk"}> : () -> ()
    %cst_94 = arith.constant dense<0.000000e+00> : vector<2x8x8xf32>
    %233 = tpu.matmul %231, %232, %cst_94 {dimension_numbers = #tpu.dot_dimension_numbers<[2], [2], [1], [1], [0, 0, 0, 1, 1, 1], [0], [0]>} : vector<2x8x64xbf16>, vector<2x8x64xbf16>, vector<2x8x8xf32> -> vector<2x8x8xf32>
    "tpu.trace_stop"() : () -> ()
    %cst_95 = arith.constant 1.250000e-01 : f32
    %234 = vector.broadcast %cst_95 : f32 to vector<2x8x8xf32>
    %235 = arith.mulf %233, %234 : vector<2x8x8xf32>
    %236 = arith.addf %235, %29 : vector<2x8x8xf32>
    %cst_96 = arith.constant dense<0xFF800000> : vector<2x8xf32>
    %237 = vector.multi_reduction <maximumf>, %236, %cst_96 [2] : vector<2x8x8xf32> to vector<2x8xf32>
    %238 = vector.shape_cast %237 : vector<2x8xf32> to vector<2x8x1xf32>
    %239 = vector.broadcast %238 : vector<2x8x1xf32> to vector<2x8x8xf32>
    %240 = arith.subf %236, %239 : vector<2x8x8xf32>
    %241 = math.exp %240 : vector<2x8x8xf32>
    %cst_97 = arith.constant dense<0.000000e+00> : vector<2x8xf32>
    %242 = vector.multi_reduction <add>, %241, %cst_97 [2] : vector<2x8x8xf32> to vector<2x8xf32>
    %243 = vector.shape_cast %242 : vector<2x8xf32> to vector<2x8x1xf32>
    %244 = tpu.reciprocal %243 {approx = true} : vector<2x8x1xf32> -> vector<2x8x1xf32>
    %245 = vector.broadcast %244 : vector<2x8x1xf32> to vector<2x8x8xf32>
    %246 = arith.mulf %241, %245 : vector<2x8x8xf32>
    %247 = arith.truncf %246 : vector<2x8x8xf32> to vector<2x8x8xbf16>
    %248 = vector.extract_strided_slice %230 {offsets = [0, 0, 0], sizes = [2, 8, 64], strides = [1, 1, 1]} : vector<2x8x128xbf16> to vector<2x8x64xbf16>
    "tpu.trace_start"() <{level = 10 : i32, message = "bqk,bkd->bqd"}> : () -> ()
    %cst_98 = arith.constant dense<0.000000e+00> : vector<2x8x64xf32>
    %249 = tpu.matmul %247, %248, %cst_98 {dimension_numbers = #tpu.dot_dimension_numbers<[2], [1], [1], [2], [0, 0, 0, 1, 1, 2], [0], [0]>} : vector<2x8x8xbf16>, vector<2x8x64xbf16>, vector<2x8x64xf32> -> vector<2x8x64xf32>
    "tpu.trace_stop"() : () -> ()
    %250 = vector.extract_strided_slice %224 {offsets = [0, 0, 64], sizes = [2, 8, 64], strides = [1, 1, 1]} : vector<2x8x128xbf16> to vector<2x8x64xbf16>
    %251 = vector.extract_strided_slice %227 {offsets = [0, 0, 64], sizes = [2, 8, 64], strides = [1, 1, 1]} : vector<2x8x128xbf16> to vector<2x8x64xbf16>
    "tpu.trace_start"() <{level = 10 : i32, message = "bqd,bkd->bqk"}> : () -> ()
    %cst_99 = arith.constant dense<0.000000e+00> : vector<2x8x8xf32>
    %252 = tpu.matmul %250, %251, %cst_99 {dimension_numbers = #tpu.dot_dimension_numbers<[2], [2], [1], [1], [0, 0, 0, 1, 1, 1], [0], [0]>} : vector<2x8x64xbf16>, vector<2x8x64xbf16>, vector<2x8x8xf32> -> vector<2x8x8xf32>
    "tpu.trace_stop"() : () -> ()
    %cst_100 = arith.constant 1.250000e-01 : f32
    %253 = vector.broadcast %cst_100 : f32 to vector<2x8x8xf32>
    %254 = arith.mulf %252, %253 : vector<2x8x8xf32>
    %255 = arith.addf %254, %29 : vector<2x8x8xf32>
    %cst_101 = arith.constant dense<0xFF800000> : vector<2x8xf32>
    %256 = vector.multi_reduction <maximumf>, %255, %cst_101 [2] : vector<2x8x8xf32> to vector<2x8xf32>
    %257 = vector.shape_cast %256 : vector<2x8xf32> to vector<2x8x1xf32>
    %258 = vector.broadcast %257 : vector<2x8x1xf32> to vector<2x8x8xf32>
    %259 = arith.subf %255, %258 : vector<2x8x8xf32>
    %260 = math.exp %259 : vector<2x8x8xf32>
    %cst_102 = arith.constant dense<0.000000e+00> : vector<2x8xf32>
    %261 = vector.multi_reduction <add>, %260, %cst_102 [2] : vector<2x8x8xf32> to vector<2x8xf32>
    %262 = vector.shape_cast %261 : vector<2x8xf32> to vector<2x8x1xf32>
    %263 = tpu.reciprocal %262 {approx = true} : vector<2x8x1xf32> -> vector<2x8x1xf32>
    %264 = vector.broadcast %263 : vector<2x8x1xf32> to vector<2x8x8xf32>
    %265 = arith.mulf %260, %264 : vector<2x8x8xf32>
    %266 = arith.truncf %265 : vector<2x8x8xf32> to vector<2x8x8xbf16>
    %267 = vector.extract_strided_slice %230 {offsets = [0, 0, 64], sizes = [2, 8, 64], strides = [1, 1, 1]} : vector<2x8x128xbf16> to vector<2x8x64xbf16>
    "tpu.trace_start"() <{level = 10 : i32, message = "bqk,bkd->bqd"}> : () -> ()
    %cst_103 = arith.constant dense<0.000000e+00> : vector<2x8x64xf32>
    %268 = tpu.matmul %266, %267, %cst_103 {dimension_numbers = #tpu.dot_dimension_numbers<[2], [1], [1], [2], [0, 0, 0, 1, 1, 2], [0], [0]>} : vector<2x8x8xbf16>, vector<2x8x64xbf16>, vector<2x8x64xf32> -> vector<2x8x64xf32>
    "tpu.trace_stop"() : () -> ()
    %269 = tpu.concatenate %249, %268 in 2 : vector<2x8x64xf32>, vector<2x8x64xf32> -> vector<2x8x128xf32>
    %270 = vector.shape_cast %269 : vector<2x8x128xf32> to vector<16x128xf32>
    %271 = arith.truncf %270 : vector<16x128xf32> to vector<16x128xbf16>
    %c1_104 = arith.constant 1 : index
    %c0_105 = arith.constant 0 : index
    %c0_106 = arith.constant 0 : index
    %272 = vector.load %arg7[%c1_104, %c0_105, %c0_106] : memref<2x128x128xbf16, #tpu.memory_space<vmem>>, vector<1x128x128xbf16>
    %273 = vector.shape_cast %272 : vector<1x128x128xbf16> to vector<128x128xbf16>
    %cst_107 = arith.constant dense<0.000000e+00> : vector<16x128xf32>
    %274 = tpu.matmul %271, %273, %cst_107 {dimension_numbers = #tpu.dot_dimension_numbers<[1], [0], [0], [1], [0, 0, 1, 1], [], []>} : vector<16x128xbf16>, vector<128x128xbf16>, vector<16x128xf32> -> vector<16x128xf32>
    %c1_108 = arith.constant 1 : index
    %c0_109 = arith.constant 0 : index
    %c0_110 = arith.constant 0 : index
    %275 = vector.load %arg8[%c1_108, %c0_109, %c0_110] : memref<2x1x128xf32, #tpu.memory_space<vmem>>, vector<1x1x128xf32>
    %276 = vector.shape_cast %275 : vector<1x1x128xf32> to vector<1x128xf32>
    %277 = vector.broadcast %276 : vector<1x128xf32> to vector<16x128xf32>
    %278 = arith.addf %274, %277 : vector<16x128xf32>
    %279 = vector.shape_cast %278 : vector<16x128xf32> to vector<2x8x128xf32>
    %280 = arith.addf %279, %212 : vector<2x8x128xf32>
    %c1_111 = arith.constant 1 : index
    %c0_112 = arith.constant 0 : index
    %c0_113 = arith.constant 0 : index
    %281 = vector.load %arg9[%c1_111, %c0_112, %c0_113] : memref<2x1x128xf32, #tpu.memory_space<vmem>>, vector<1x1x128xf32>
    %282 = vector.shape_cast %281 : vector<1x1x128xf32> to vector<1x128xf32>
    %c1_114 = arith.constant 1 : index
    %c0_115 = arith.constant 0 : index
    %c0_116 = arith.constant 0 : index
    %283 = vector.load %arg10[%c1_114, %c0_115, %c0_116] : memref<2x1x128xf32, #tpu.memory_space<vmem>>, vector<1x1x128xf32>
    %284 = vector.shape_cast %283 : vector<1x1x128xf32> to vector<1x128xf32>
    %cst_117 = arith.constant dense<0.000000e+00> : vector<2x8xf32>
    %285 = vector.multi_reduction <add>, %280, %cst_117 [2] : vector<2x8x128xf32> to vector<2x8xf32>
    %286 = vector.shape_cast %285 : vector<2x8xf32> to vector<2x8x1xf32>
    %cst_118 = arith.constant 1.280000e+02 : f32
    %287 = vector.broadcast %cst_118 : f32 to vector<2x8x1xf32>
    %288 = arith.divf %286, %287 : vector<2x8x1xf32>
    %289 = vector.broadcast %288 : vector<2x8x1xf32> to vector<2x8x128xf32>
    %290 = arith.subf %280, %289 : vector<2x8x128xf32>
    %291 = arith.mulf %290, %290 : vector<2x8x128xf32>
    %cst_119 = arith.constant dense<0.000000e+00> : vector<2x8xf32>
    %292 = vector.multi_reduction <add>, %291, %cst_119 [2] : vector<2x8x128xf32> to vector<2x8xf32>
    %293 = vector.shape_cast %292 : vector<2x8xf32> to vector<2x8x1xf32>
    %cst_120 = arith.constant 1.280000e+02 : f32
    %294 = vector.broadcast %cst_120 : f32 to vector<2x8x1xf32>
    %295 = arith.divf %293, %294 : vector<2x8x1xf32>
    %296 = vector.broadcast %288 : vector<2x8x1xf32> to vector<2x8x128xf32>
    %297 = arith.subf %280, %296 : vector<2x8x128xf32>
    %cst_121 = arith.constant 9.99999974E-6 : f32
    %298 = vector.broadcast %cst_121 : f32 to vector<2x8x1xf32>
    %299 = arith.addf %295, %298 : vector<2x8x1xf32>
    %300 = math.rsqrt %299 : vector<2x8x1xf32>
    %301 = vector.broadcast %300 : vector<2x8x1xf32> to vector<2x8x128xf32>
    %302 = arith.mulf %297, %301 : vector<2x8x128xf32>
    %303 = vector.shape_cast %282 : vector<1x128xf32> to vector<1x1x128xf32>
    %304 = vector.broadcast %303 : vector<1x1x128xf32> to vector<2x8x128xf32>
    %305 = arith.mulf %302, %304 : vector<2x8x128xf32>
    %306 = vector.shape_cast %284 : vector<1x128xf32> to vector<1x1x128xf32>
    %307 = vector.broadcast %306 : vector<1x1x128xf32> to vector<2x8x128xf32>
    %308 = arith.addf %305, %307 : vector<2x8x128xf32>
    %309 = vector.shape_cast %308 : vector<2x8x128xf32> to vector<16x128xf32>
    %310 = arith.truncf %309 : vector<16x128xf32> to vector<16x128xbf16>
    %c1_122 = arith.constant 1 : index
    %c0_123 = arith.constant 0 : index
    %c0_124 = arith.constant 0 : index
    %311 = vector.load %arg11[%c1_122, %c0_123, %c0_124] : memref<2x128x256xbf16, #tpu.memory_space<vmem>>, vector<1x128x256xbf16>
    %312 = vector.shape_cast %311 : vector<1x128x256xbf16> to vector<128x256xbf16>
    %cst_125 = arith.constant dense<0.000000e+00> : vector<16x256xf32>
    %313 = tpu.matmul %310, %312, %cst_125 {dimension_numbers = #tpu.dot_dimension_numbers<[1], [0], [0], [1], [0, 0, 1, 1], [], []>} : vector<16x128xbf16>, vector<128x256xbf16>, vector<16x256xf32> -> vector<16x256xf32>
    %c1_126 = arith.constant 1 : index
    %c0_127 = arith.constant 0 : index
    %c0_128 = arith.constant 0 : index
    %314 = vector.load %arg12[%c1_126, %c0_127, %c0_128] : memref<2x1x256xf32, #tpu.memory_space<vmem>>, vector<1x1x256xf32>
    %315 = vector.shape_cast %314 : vector<1x1x256xf32> to vector<1x256xf32>
    %316 = vector.broadcast %315 : vector<1x256xf32> to vector<16x256xf32>
    %317 = arith.addf %313, %316 : vector<16x256xf32>
    %cst_129 = arith.constant 5.000000e-01 : f32
    %318 = vector.broadcast %cst_129 : f32 to vector<16x256xf32>
    %319 = arith.mulf %318, %317 : vector<16x256xf32>
    %cst_130 = arith.constant 0.707106769 : f32
    %320 = vector.broadcast %cst_130 : f32 to vector<16x256xf32>
    %321 = arith.mulf %317, %320 : vector<16x256xf32>
    %cst_131 = arith.constant 0.000000e+00 : f32
    %322 = vector.broadcast %cst_131 : f32 to vector<16x256xf32>
    %323 = arith.cmpf oge, %321, %322 : vector<16x256xf32>
    %cst_132 = arith.constant 1.000000e+00 : f32
    %cst_133 = arith.constant -1.000000e+00 : f32
    %324 = vector.broadcast %cst_132 : f32 to vector<16x256xf32>
    %325 = vector.broadcast %cst_133 : f32 to vector<16x256xf32>
    %326 = arith.select %323, %324, %325 : vector<16x256xi1>, vector<16x256xf32>
    %327 = math.absf %321 : vector<16x256xf32>
    %cst_134 = arith.constant 0.327591091 : f32
    %328 = vector.broadcast %cst_134 : f32 to vector<16x256xf32>
    %329 = arith.mulf %328, %327 : vector<16x256xf32>
    %cst_135 = arith.constant 1.000000e+00 : f32
    %330 = vector.broadcast %cst_135 : f32 to vector<16x256xf32>
    %331 = arith.addf %330, %329 : vector<16x256xf32>
    %332 = tpu.reciprocal %331 {approx = true} : vector<16x256xf32> -> vector<16x256xf32>
    %cst_136 = arith.constant 1.06140542 : f32
    %333 = vector.broadcast %cst_136 : f32 to vector<16x256xf32>
    %334 = arith.mulf %333, %332 : vector<16x256xf32>
    %cst_137 = arith.constant -1.45315206 : f32
    %335 = vector.broadcast %cst_137 : f32 to vector<16x256xf32>
    %336 = arith.addf %334, %335 : vector<16x256xf32>
    %337 = arith.mulf %336, %332 : vector<16x256xf32>
    %cst_138 = arith.constant 1.42141378 : f32
    %338 = vector.broadcast %cst_138 : f32 to vector<16x256xf32>
    %339 = arith.addf %337, %338 : vector<16x256xf32>
    %340 = arith.mulf %339, %332 : vector<16x256xf32>
    %cst_139 = arith.constant -0.284496725 : f32
    %341 = vector.broadcast %cst_139 : f32 to vector<16x256xf32>
    %342 = arith.addf %340, %341 : vector<16x256xf32>
    %343 = arith.mulf %342, %332 : vector<16x256xf32>
    %cst_140 = arith.constant 0.254829586 : f32
    %344 = vector.broadcast %cst_140 : f32 to vector<16x256xf32>
    %345 = arith.addf %343, %344 : vector<16x256xf32>
    %346 = arith.mulf %345, %332 : vector<16x256xf32>
    %cst_141 = arith.constant 0.000000e+00 : f32
    %347 = vector.broadcast %cst_141 : f32 to vector<16x256xf32>
    %348 = arith.subf %347, %327 : vector<16x256xf32>
    %349 = arith.mulf %348, %327 : vector<16x256xf32>
    %350 = math.exp %349 : vector<16x256xf32>
    %351 = arith.mulf %346, %350 : vector<16x256xf32>
    %cst_142 = arith.constant 1.000000e+00 : f32
    %352 = vector.broadcast %cst_142 : f32 to vector<16x256xf32>
    %353 = arith.subf %352, %351 : vector<16x256xf32>
    %354 = arith.mulf %326, %353 : vector<16x256xf32>
    %cst_143 = arith.constant 1.000000e+00 : f32
    %355 = vector.broadcast %cst_143 : f32 to vector<16x256xf32>
    %356 = arith.addf %355, %354 : vector<16x256xf32>
    %357 = arith.mulf %319, %356 : vector<16x256xf32>
    %358 = arith.truncf %357 : vector<16x256xf32> to vector<16x256xbf16>
    %c1_144 = arith.constant 1 : index
    %c0_145 = arith.constant 0 : index
    %c0_146 = arith.constant 0 : index
    %359 = vector.load %arg13[%c1_144, %c0_145, %c0_146] : memref<2x256x128xbf16, #tpu.memory_space<vmem>>, vector<1x256x128xbf16>
    %360 = vector.shape_cast %359 : vector<1x256x128xbf16> to vector<256x128xbf16>
    %cst_147 = arith.constant dense<0.000000e+00> : vector<16x128xf32>
    %361 = tpu.matmul %358, %360, %cst_147 {dimension_numbers = #tpu.dot_dimension_numbers<[1], [0], [0], [1], [0, 0, 1, 1], [], []>} : vector<16x256xbf16>, vector<256x128xbf16>, vector<16x128xf32> -> vector<16x128xf32>
    %c1_148 = arith.constant 1 : index
    %c0_149 = arith.constant 0 : index
    %c0_150 = arith.constant 0 : index
    %362 = vector.load %arg14[%c1_148, %c0_149, %c0_150] : memref<2x1x128xf32, #tpu.memory_space<vmem>>, vector<1x1x128xf32>
    %363 = vector.shape_cast %362 : vector<1x1x128xf32> to vector<1x128xf32>
    %364 = vector.broadcast %363 : vector<1x128xf32> to vector<16x128xf32>
    %365 = arith.addf %361, %364 : vector<16x128xf32>
    %366 = vector.shape_cast %365 : vector<16x128xf32> to vector<2x8x128xf32>
    %367 = arith.addf %366, %308 : vector<2x8x128xf32>
    %c1_151 = arith.constant 1 : index
    %c0_152 = arith.constant 0 : index
    %c0_153 = arith.constant 0 : index
    %368 = vector.load %arg15[%c1_151, %c0_152, %c0_153] : memref<2x1x128xf32, #tpu.memory_space<vmem>>, vector<1x1x128xf32>
    %369 = vector.shape_cast %368 : vector<1x1x128xf32> to vector<1x128xf32>
    %c1_154 = arith.constant 1 : index
    %c0_155 = arith.constant 0 : index
    %c0_156 = arith.constant 0 : index
    %370 = vector.load %arg16[%c1_154, %c0_155, %c0_156] : memref<2x1x128xf32, #tpu.memory_space<vmem>>, vector<1x1x128xf32>
    %371 = vector.shape_cast %370 : vector<1x1x128xf32> to vector<1x128xf32>
    %cst_157 = arith.constant dense<0.000000e+00> : vector<2x8xf32>
    %372 = vector.multi_reduction <add>, %367, %cst_157 [2] : vector<2x8x128xf32> to vector<2x8xf32>
    %373 = vector.shape_cast %372 : vector<2x8xf32> to vector<2x8x1xf32>
    %cst_158 = arith.constant 1.280000e+02 : f32
    %374 = vector.broadcast %cst_158 : f32 to vector<2x8x1xf32>
    %375 = arith.divf %373, %374 : vector<2x8x1xf32>
    %376 = vector.broadcast %375 : vector<2x8x1xf32> to vector<2x8x128xf32>
    %377 = arith.subf %367, %376 : vector<2x8x128xf32>
    %378 = arith.mulf %377, %377 : vector<2x8x128xf32>
    %cst_159 = arith.constant dense<0.000000e+00> : vector<2x8xf32>
    %379 = vector.multi_reduction <add>, %378, %cst_159 [2] : vector<2x8x128xf32> to vector<2x8xf32>
    %380 = vector.shape_cast %379 : vector<2x8xf32> to vector<2x8x1xf32>
    %cst_160 = arith.constant 1.280000e+02 : f32
    %381 = vector.broadcast %cst_160 : f32 to vector<2x8x1xf32>
    %382 = arith.divf %380, %381 : vector<2x8x1xf32>
    %383 = vector.broadcast %375 : vector<2x8x1xf32> to vector<2x8x128xf32>
    %384 = arith.subf %367, %383 : vector<2x8x128xf32>
    %cst_161 = arith.constant 9.99999974E-6 : f32
    %385 = vector.broadcast %cst_161 : f32 to vector<2x8x1xf32>
    %386 = arith.addf %382, %385 : vector<2x8x1xf32>
    %387 = math.rsqrt %386 : vector<2x8x1xf32>
    %388 = vector.broadcast %387 : vector<2x8x1xf32> to vector<2x8x128xf32>
    %389 = arith.mulf %384, %388 : vector<2x8x128xf32>
    %390 = vector.shape_cast %369 : vector<1x128xf32> to vector<1x1x128xf32>
    %391 = vector.broadcast %390 : vector<1x1x128xf32> to vector<2x8x128xf32>
    %392 = arith.mulf %389, %391 : vector<2x8x128xf32>
    %393 = vector.shape_cast %371 : vector<1x128xf32> to vector<1x1x128xf32>
    %394 = vector.broadcast %393 : vector<1x1x128xf32> to vector<2x8x128xf32>
    %395 = arith.addf %392, %394 : vector<2x8x128xf32>
    %396 = vector.extract_strided_slice %395 {offsets = [0, 0, 0], sizes = [2, 1, 128], strides = [1, 1, 1]} : vector<2x8x128xf32> to vector<2x1x128xf32>
    %397 = vector.shape_cast %396 : vector<2x1x128xf32> to vector<2x128xf32>
    %398 = arith.truncf %397 : vector<2x128xf32> to vector<2x128xbf16>
    %c0_162 = arith.constant 0 : index
    %c0_163 = arith.constant 0 : index
    %399 = vector.load %arg17[%c0_162, %c0_163] : memref<128x128xbf16, #tpu.memory_space<vmem>>, vector<128x128xbf16>
    %cst_164 = arith.constant dense<0.000000e+00> : vector<2x128xf32>
    %400 = tpu.matmul %398, %399, %cst_164 {dimension_numbers = #tpu.dot_dimension_numbers<[1], [0], [0], [1], [0, 0, 1, 1], [], []>} : vector<2x128xbf16>, vector<128x128xbf16>, vector<2x128xf32> -> vector<2x128xf32>
    %c0_165 = arith.constant 0 : index
    %c0_166 = arith.constant 0 : index
    %401 = vector.load %arg18[%c0_165, %c0_166] : memref<1x128xf32, #tpu.memory_space<vmem>>, vector<1x128xf32>
    %402 = vector.broadcast %401 : vector<1x128xf32> to vector<2x128xf32>
    %403 = arith.addf %400, %402 : vector<2x128xf32>
    %c0_167 = arith.constant 0 : index
    %c0_168 = arith.constant 0 : index
    %404 = vector.load %arg19[%c0_167, %c0_168] : memref<2x128xf32, #tpu.memory_space<vmem>>, vector<2x128xf32>
    tpu.vector_store %arg19[%c0_167, %c0_168], %403 {strides = array<i32>} : memref<2x128xf32, #tpu.memory_space<vmem>>, vector<2x128xf32>,
    return
  }
  func.func @transform_0(%arg0: i32) -> (i32, i32, i32) {
    %c0_i32 = arith.constant 0 : i32
    %c0_i32_0 = arith.constant 0 : i32
    %c0_i32_1 = arith.constant 0 : i32
    %c0_i32_2 = arith.constant 0 : i32
    return %c0_i32, %c0_i32_0, %c0_i32_1 : i32, i32, i32
  }
  func.func @transform_1(%arg0: i32) -> (i32, i32) {
    %c0_i32 = arith.constant 0 : i32
    %c0_i32_0 = arith.constant 0 : i32
    %c0_i32_1 = arith.constant 0 : i32
    return %c0_i32, %c0_i32_0 : i32, i32
  }
  func.func @transform_2(%arg0: i32) -> (i32, i32) {
    %c0_i32 = arith.constant 0 : i32
    %c0_i32_0 = arith.constant 0 : i32
    %c0_i32_1 = arith.constant 0 : i32
    return %c0_i32, %c0_i32_0 : i32, i32
  }
  func.func @transform_3(%arg0: i32) -> (i32, i32, i32) {
    %c0_i32 = arith.constant 0 : i32
    %c0_i32_0 = arith.constant 0 : i32
    %c0_i32_1 = arith.constant 0 : i32
    %c0_i32_2 = arith.constant 0 : i32
    return %c0_i32, %c0_i32_0, %c0_i32_1 : i32, i32, i32
  }
  func.func @transform_4(%arg0: i32) -> (i32, i32, i32) {
    %c0_i32 = arith.constant 0 : i32
    %c0_i32_0 = arith.constant 0 : i32
    %c0_i32_1 = arith.constant 0 : i32
    %c0_i32_2 = arith.constant 0 : i32
    return %c0_i32, %c0_i32_0, %c0_i32_1 : i32, i32, i32
  }
  func.func @transform_5(%arg0: i32) -> (i32, i32, i32) {
    %c0_i32 = arith.constant 0 : i32
    %c0_i32_0 = arith.constant 0 : i32
    %c0_i32_1 = arith.constant 0 : i32
    %c0_i32_2 = arith.constant 0 : i32
    return %c0_i32, %c0_i32_0, %c0_i32_1 : i32, i32, i32
  }
  func.func @transform_6(%arg0: i32) -> (i32, i32, i32) {
    %c0_i32 = arith.constant 0 : i32
    %c0_i32_0 = arith.constant 0 : i32
    %c0_i32_1 = arith.constant 0 : i32
    %c0_i32_2 = arith.constant 0 : i32
    return %c0_i32, %c0_i32_0, %c0_i32_1 : i32, i32, i32
  }
  func.func @transform_7(%arg0: i32) -> (i32, i32, i32) {
    %c0_i32 = arith.constant 0 : i32
    %c0_i32_0 = arith.constant 0 : i32
    %c0_i32_1 = arith.constant 0 : i32
    %c0_i32_2 = arith.constant 0 : i32
    return %c0_i32, %c0_i32_0, %c0_i32_1 : i32, i32, i32
  }
  func.func @transform_8(%arg0: i32) -> (i32, i32, i32) {
    %c0_i32 = arith.constant 0 : i32
    %c0_i32_0 = arith.constant 0 : i32
    %c0_i32_1 = arith.constant 0 : i32
    %c0_i32_2 = arith.constant 0 : i32
    return %c0_i32, %c0_i32_0, %c0_i32_1 : i32, i32, i32
  }
  func.func @transform_9(%arg0: i32) -> (i32, i32, i32) {
    %c0_i32 = arith.constant 0 : i32
    %c0_i32_0 = arith.constant 0 : i32
    %c0_i32_1 = arith.constant 0 : i32
    %c0_i32_2 = arith.constant 0 : i32
    return %c0_i32, %c0_i32_0, %c0_i32_1 : i32, i32, i32
  }
  func.func @transform_10(%arg0: i32) -> (i32, i32, i32) {
    %c0_i32 = arith.constant 0 : i32
    %c0_i32_0 = arith.constant 0 : i32
    %c0_i32_1 = arith.constant 0 : i32
    %c0_i32_2 = arith.constant 0 : i32
    return %c0_i32, %c0_i32_0, %c0_i32_1 : i32, i32, i32
  }
  func.func @transform_11(%arg0: i32) -> (i32, i32, i32) {
    %c0_i32 = arith.constant 0 : i32
    %c0_i32_0 = arith.constant 0 : i32
    %c0_i32_1 = arith.constant 0 : i32
    %c0_i32_2 = arith.constant 0 : i32
    return %c0_i32, %c0_i32_0, %c0_i32_1 : i32, i32, i32
  }
  func.func @transform_12(%arg0: i32) -> (i32, i32, i32) {
    %c0_i32 = arith.constant 0 : i32
    %c0_i32_0 = arith.constant 0 : i32
    %c0_i32_1 = arith.constant 0 : i32
    %c0_i32_2 = arith.constant 0 : i32
    return %c0_i32, %c0_i32_0, %c0_i32_1 : i32, i32, i32
  }
  func.func @transform_13(%arg0: i32) -> (i32, i32, i32) {
    %c0_i32 = arith.constant 0 : i32
    %c0_i32_0 = arith.constant 0 : i32
    %c0_i32_1 = arith.constant 0 : i32
    %c0_i32_2 = arith.constant 0 : i32
    return %c0_i32, %c0_i32_0, %c0_i32_1 : i32, i32, i32
  }
  func.func @transform_14(%arg0: i32) -> (i32, i32, i32) {
    %c0_i32 = arith.constant 0 : i32
    %c0_i32_0 = arith.constant 0 : i32
    %c0_i32_1 = arith.constant 0 : i32
    %c0_i32_2 = arith.constant 0 : i32
    return %c0_i32, %c0_i32_0, %c0_i32_1 : i32, i32, i32
  }
  func.func @transform_15(%arg0: i32) -> (i32, i32, i32) {
    %c0_i32 = arith.constant 0 : i32
    %c0_i32_0 = arith.constant 0 : i32
    %c0_i32_1 = arith.constant 0 : i32
    %c0_i32_2 = arith.constant 0 : i32
    return %c0_i32, %c0_i32_0, %c0_i32_1 : i32, i32, i32
  }
  func.func @transform_16(%arg0: i32) -> (i32, i32) {
    %c0_i32 = arith.constant 0 : i32
    %c0_i32_0 = arith.constant 0 : i32
    %c0_i32_1 = arith.constant 0 : i32
    return %c0_i32, %c0_i32_0 : i32, i32
  }
  func.func @transform_17(%arg0: i32) -> (i32, i32) {
    %c0_i32 = arith.constant 0 : i32
    %c0_i32_0 = arith.constant 0 : i32
    %c0_i32_1 = arith.constant 0 : i32
    return %c0_i32, %c0_i32_0 : i32, i32
  }
  func.func @transform_18(%arg0: i32) -> (i32, i32) {
    %c0_i32 = arith.constant 0 : i32
    %c0_i32_0 = arith.constant 0 : i32
    %c0_i32_1 = arith.constant 0 : i32
    return %c0_i32, %c0_i32_0 : i32, i32
  }
}

</mosaic_0001>

<llo_original>
// kernel: tpu_custom_call.1
$region0: #{tpu_custom_call.1}
  #allocation0 [shape = 'u32[]', space=smem, size = 0x4, offset = 0x4, fixed_abs, tag = 'smem constant byte address 0x4 - core index']
  #allocation1 [shape = 'u32[144,128]{1,0:T(1,128)}', space=vmem, size = 0x12000, scoped, tag = 'internal scratch']
  %s0 = inlined_call_operand.hbm [shape: f32[2,8,128], index: 0, kind: input, shape index: {}]
  %s1 = inlined_call_operand.hbm [shape: f32[1,128], index: 1, kind: input, shape index: {}]
  %s2 = inlined_call_operand.hbm [shape: f32[1,128], index: 2, kind: input, shape index: {}]
  %s3 = inlined_call_operand.hbm [shape: f32[2,1,8], index: 3, kind: input, shape index: {}]
  %s4 = inlined_call_operand.hbm [shape: bf16[2,128,384], index: 4, kind: input, shape index: {}]
  %s5 = inlined_call_operand.vmem [shape: f32[2,1,384], index: 5, kind: input, shape index: {}]
  %s6 = inlined_call_operand.hbm [shape: bf16[2,128,128], index: 6, kind: input, shape index: {}]
  %s7 = inlined_call_operand.vmem [shape: f32[2,1,128], index: 7, kind: input, shape index: {}]
  %s8 = inlined_call_operand.vmem [shape: f32[2,1,128], index: 8, kind: input, shape index: {}]
  %s9 = inlined_call_operand.vmem [shape: f32[2,1,128], index: 9, kind: input, shape index: {}]
  %s10 = inlined_call_operand.hbm [shape: bf16[2,128,256], index: 10, kind: input, shape index: {}]
  %s11 = inlined_call_operand.vmem [shape: f32[2,1,256], index: 11, kind: input, shape index: {}]
  %s12 = inlined_call_operand.hbm [shape: bf16[2,256,128], index: 12, kind: input, shape index: {}]
  %s13 = inlined_call_operand.vmem [shape: f32[2,1,128], index: 13, kind: input, shape index: {}]
  %s14 = inlined_call_operand.vmem [shape: f32[2,1,128], index: 14, kind: input, shape index: {}]
  %s15 = inlined_call_operand.vmem [shape: f32[2,1,128], index: 15, kind: input, shape index: {}]
  %s16 = inlined_call_operand.hbm [shape: bf16[128,128], index: 16, kind: input, shape index: {}]
  %s17 = inlined_call_operand.vmem [shape: f32[1,128], index: 17, kind: input, shape index: {}]
  %s18 = inlined_call_operand.hbm [shape: f32[2,128], index: 18, kind: output, shape index: {}]
  %s19 = sld [smem:[#allocation0]]
  $region118: #{tpu_custom_call.1} parent=0
    _
  %s21 = ssub.s32 1, %s19
  %s22 = scalar_select 0, %s21, %s19
  $region1: #{tpu_custom_call.1} parent=0
    #allocation2 [shape = 'u8[8192]{0}', space=vmem, size = 0x2000, scoped, tag = 'input window, operand 0, single buffered']
    #allocation3 [shape = 's32[1]{0}', space=sflag, size = 0x4, scoped, tag = 'scoped memory for tpu_custom_call.1']
    #allocation4 [shape = 's32[1]{0}', space=sflag, size = 0x4, scoped, tag = 'scoped memory for tpu_custom_call.1']
    #allocation5 [shape = 'u8[512]{0}', space=vmem, size = 0x400, scoped, tag = 'input window, operand 1, single buffered']
    #allocation6 [shape = 's32[1]{0}', space=sflag, size = 0x4, scoped, tag = 'scoped memory for tpu_custom_call.1']
    #allocation7 [shape = 'u8[512]{0}', space=vmem, size = 0x400, scoped, tag = 'input window, operand 2, single buffered']
    #allocation8 [shape = 'u8[1024]{0}', space=vmem, size = 0x400, scoped, tag = 'input window, operand 3, single buffered']
    #allocation9 [shape = 's32[1]{0}', space=sflag, size = 0x4, scoped, tag = 'scoped memory for tpu_custom_call.1']
    #allocation10 [shape = 'u8[196608]{0}', space=vmem, size = 0x30000, scoped, tag = 'input window, operand 4, single buffered']
    #allocation11 [shape = 'u8[65536]{0}', space=vmem, size = 0x10000, scoped, tag = 'input window, operand 6, single buffered']
    #allocation12 [shape = 's32[1]{0}', space=sflag, size = 0x4, scoped, tag = 'scoped memory for tpu_custom_call.1']
    #allocation13 [shape = 'u8[131072]{0}', space=vmem, size = 0x20000, scoped, tag = 'input window, operand 10, single buffered']
    #allocation14 [shape = 'u8[131072]{0}', space=vmem, size = 0x20000, scoped, tag = 'input window, operand 12, single buffered']
    #allocation15 [shape = 's32[1]{0}', space=sflag, size = 0x4, scoped, tag = 'scoped memory for tpu_custom_call.1']
    #allocation16 [shape = 'u8[32768]{0}', space=vmem, size = 0x8000, scoped, tag = 'input window, operand 16, single buffered']
    #allocation17 [shape = 'u8[1024]{0}', space=vmem, size = 0x400, scoped, tag = 'output window, operand 0, single buffered']
    %23 = vsyncpa [#allocation3], 0
    %24 = vsyncpa [#allocation6], 0
    %25 = vsyncpa [#allocation9], 0
    %26 = vsyncpa [#allocation12], 0
    %27 = vsyncpa [#allocation15], 0
    %28 = vsyncpa [#allocation4], 0
    // Predicated region
    $region2: #{tpu_custom_call.1} parent=1 // pred_check
      _
    $region3: #{tpu_custom_call.1} parent=1 // pred_check_branch
      %30 = sbr.rel (0) target = $region5
    $region4: #{tpu_custom_call.1} parent=1 // pred_region
      %s32 = ssub.s32 256, 256
      %33 = vsyncadd [#allocation3], %s32
      %s34 = sshll.u32 [#allocation2], 4
      %s35 = int_to_ptr.vmem [resolvable:$true] %s34
      %40 = dma.hbm_to_vmem [thread:$0]  %s0, 256, %s35, [#allocation3], 128, 128, 8
    $region5: #{tpu_custom_call.1} parent=1 // pred_fallthru
      _
    // Predicated region
    $region6: #{tpu_custom_call.1} parent=1 // pred_check
      _
    $region7: #{tpu_custom_call.1} parent=1 // pred_check_branch
      %42 = sbr.rel (0) target = $region9
    $region8: #{tpu_custom_call.1} parent=1 // pred_region
      %s44 = ssub.s32 16, 16
      %45 = vsyncadd [#allocation6], %s44
      %s47 = sshll.u32 [#allocation5], 4
      %s48 = int_to_ptr.vmem [resolvable:$true] %s47
      %50 = dma.hbm_to_vmem [thread:$0]  %s1, 16, %s48, [#allocation6]
    $region9: #{tpu_custom_call.1} parent=1 // pred_fallthru
      _
    // Predicated region
    $region10: #{tpu_custom_call.1} parent=1 // pred_check
      _
    $region11: #{tpu_custom_call.1} parent=1 // pred_check_branch
      %52 = sbr.rel (0) target = $region13
    $region12: #{tpu_custom_call.1} parent=1 // pred_region
      %s54 = ssub.s32 16, 16
      %55 = vsyncadd [#allocation6], %s54
      %s57 = sshll.u32 [#allocation7], 4
      %s58 = int_to_ptr.vmem [resolvable:$true] %s57
      %60 = dma.hbm_to_vmem [thread:$0]  %s2, 16, %s58, [#allocation6]
    $region13: #{tpu_custom_call.1} parent=1 // pred_fallthru
      _
    // Predicated region
    $region14: #{tpu_custom_call.1} parent=1 // pred_check
      _
    $region15: #{tpu_custom_call.1} parent=1 // pred_check_branch
      %62 = sbr.rel (0) target = $region17
    $region16: #{tpu_custom_call.1} parent=1 // pred_region
      %s64 = ssub.s32 32, 32
      %65 = vsyncadd [#allocation9], %s64
      %s66 = sshll.u32 [#allocation8], 4
      %s67 = int_to_ptr.vmem [resolvable:$true] %s66
      %72 = dma.hbm_to_vmem [thread:$0]  %s3, 32, %s67, [#allocation9], 16, 16, 1
    $region17: #{tpu_custom_call.1} parent=1 // pred_fallthru
      _
    // Predicated region
    $region18: #{tpu_custom_call.1} parent=1 // pred_check
      _
    $region19: #{tpu_custom_call.1} parent=1 // pred_check_branch
      %74 = sbr.rel (0) target = $region21
    $region20: #{tpu_custom_call.1} parent=1 // pred_region
      %s76 = ssub.s32 6144, 6144
      %77 = vsyncadd [#allocation9], %s76
      %s78 = sshll.u32 [#allocation10], 4
      %s79 = int_to_ptr.vmem [resolvable:$true] %s78
      %84 = dma.hbm_to_vmem [thread:$0]  %s4, 6144, %s79, [#allocation9], 192, 192, 12
    $region21: #{tpu_custom_call.1} parent=1 // pred_fallthru
      _
    // Predicated region
    $region22: #{tpu_custom_call.1} parent=1 // pred_check
      _
    $region23: #{tpu_custom_call.1} parent=1 // pred_check_branch
      %86 = sbr.rel (0) target = $region25
    $region24: #{tpu_custom_call.1} parent=1 // pred_region
      _
    $region25: #{tpu_custom_call.1} parent=1 // pred_fallthru
      _
    // Predicated region
    $region26: #{tpu_custom_call.1} parent=1 // pred_check
      _
    $region27: #{tpu_custom_call.1} parent=1 // pred_check_branch
      %88 = sbr.rel (0) target = $region29
    $region28: #{tpu_custom_call.1} parent=1 // pred_region
      %s90 = ssub.s32 2048, 2048
      %91 = vsyncadd [#allocation12], %s90
      %s92 = sshll.u32 [#allocation11], 4
      %s93 = int_to_ptr.vmem [resolvable:$true] %s92
      %98 = dma.hbm_to_vmem [thread:$0]  %s6, 2048, %s93, [#allocation12], 64, 64, 4
    $region29: #{tpu_custom_call.1} parent=1 // pred_fallthru
      _
    // Predicated region
    $region30: #{tpu_custom_call.1} parent=1 // pred_check
      _
    $region31: #{tpu_custom_call.1} parent=1 // pred_check_branch
      %100 = sbr.rel (0) target = $region33
    $region32: #{tpu_custom_call.1} parent=1 // pred_region
      _
    $region33: #{tpu_custom_call.1} parent=1 // pred_fallthru
      _
    // Predicated region
    $region34: #{tpu_custom_call.1} parent=1 // pred_check
      _
    $region35: #{tpu_custom_call.1} parent=1 // pred_check_branch
      %102 = sbr.rel (0) target = $region37
    $region36: #{tpu_custom_call.1} parent=1 // pred_region
      _
    $region37: #{tpu_custom_call.1} parent=1 // pred_fallthru
      _
    // Predicated region
    $region38: #{tpu_custom_call.1} parent=1 // pred_check
      _
    $region39: #{tpu_custom_call.1} parent=1 // pred_check_branch
      %104 = sbr.rel (0) target = $region41
    $region40: #{tpu_custom_call.1} parent=1 // pred_region
      _
    $region41: #{tpu_custom_call.1} parent=1 // pred_fallthru
      _
    // Predicated region
    $region42: #{tpu_custom_call.1} parent=1 // pred_check
      _
    $region43: #{tpu_custom_call.1} parent=1 // pred_check_branch
      %106 = sbr.rel (0) target = $region45
    $region44: #{tpu_custom_call.1} parent=1 // pred_region
      %s108 = ssub.s32 4096, 4096
      %109 = vsyncadd [#allocation12], %s108
      %s110 = sshll.u32 [#allocation13], 4
      %s111 = int_to_ptr.vmem [resolvable:$true] %s110
      %116 = dma.hbm_to_vmem [thread:$0]  %s10, 4096, %s111, [#allocation12], 128, 128, 8
    $region45: #{tpu_custom_call.1} parent=1 // pred_fallthru
      _
    // Predicated region
    $region46: #{tpu_custom_call.1} parent=1 // pred_check
      _
    $region47: #{tpu_custom_call.1} parent=1 // pred_check_branch
      %118 = sbr.rel (0) target = $region49
    $region48: #{tpu_custom_call.1} parent=1 // pred_region
      _
    $region49: #{tpu_custom_call.1} parent=1 // pred_fallthru
      _
    // Predicated region
    $region50: #{tpu_custom_call.1} parent=1 // pred_check
      _
    $region51: #{tpu_custom_call.1} parent=1 // pred_check_branch
      %120 = sbr.rel (0) target = $region53
    $region52: #{tpu_custom_call.1} parent=1 // pred_region
      %s122 = ssub.s32 4096, 4096
      %123 = vsyncadd [#allocation15], %s122
      %s124 = sshll.u32 [#allocation14], 4
      %s125 = int_to_ptr.vmem [resolvable:$true] %s124
      %130 = dma.hbm_to_vmem [thread:$0]  %s12, 4096, %s125, [#allocation15], 64, 64, 4
    $region53: #{tpu_custom_call.1} parent=1 // pred_fallthru
      _
    // Predicated region
    $region54: #{tpu_custom_call.1} parent=1 // pred_check
      _
    $region55: #{tpu_custom_call.1} parent=1 // pred_check_branch
      %132 = sbr.rel (0) target = $region57
    $region56: #{tpu_custom_call.1} parent=1 // pred_region
      _
    $region57: #{tpu_custom_call.1} parent=1 // pred_fallthru
      _
    // Predicated region
    $region58: #{tpu_custom_call.1} parent=1 // pred_check
      _
    $region59: #{tpu_custom_call.1} parent=1 // pred_check_branch
      %134 = sbr.rel (0) target = $region61
    $region60: #{tpu_custom_call.1} parent=1 // pred_region
      _
    $region61: #{tpu_custom_call.1} parent=1 // pred_fallthru
      _
    // Predicated region
    $region62: #{tpu_custom_call.1} parent=1 // pred_check
      _
    $region63: #{tpu_custom_call.1} parent=1 // pred_check_branch
      %136 = sbr.rel (0) target = $region65
    $region64: #{tpu_custom_call.1} parent=1 // pred_region
      _
    $region65: #{tpu_custom_call.1} parent=1 // pred_fallthru
      _
    // Predicated region
    $region66: #{tpu_custom_call.1} parent=1 // pred_check
      _
    $region67: #{tpu_custom_call.1} parent=1 // pred_check_branch
      %138 = sbr.rel (0) target = $region69
    $region68: #{tpu_custom_call.1} parent=1 // pred_region
      %s140 = ssub.s32 1024, 1024
      %141 = vsyncadd [#allocation15], %s140
      %s142 = sshll.u32 [#allocation16], 4
      %s143 = int_to_ptr.vmem [resolvable:$true] %s142
      %148 = dma.hbm_to_vmem [thread:$0]  %s16, 1024, %s143, [#allocation15], 64, 64, 4
    $region69: #{tpu_custom_call.1} parent=1 // pred_fallthru
      _
    // Predicated region
    $region70: #{tpu_custom_call.1} parent=1 // pred_check
      _
    $region71: #{tpu_custom_call.1} parent=1 // pred_check_branch
      %150 = sbr.rel (0) target = $region73
    $region72: #{tpu_custom_call.1} parent=1 // pred_region
      _
    $region73: #{tpu_custom_call.1} parent=1 // pred_fallthru
      _
    // Predicated region
    $region74: #{tpu_custom_call.1} parent=1 // pred_check
      _
    $region75: #{tpu_custom_call.1} parent=1 // pred_check_branch
      %152 = sbr.rel (0) target = $region77
    $region76: #{tpu_custom_call.1} parent=1 // pred_region
      %153 = dma.done [#allocation3], 256
    $region77: #{tpu_custom_call.1} parent=1 // pred_fallthru
      _
    // Predicated region
    $region78: #{tpu_custom_call.1} parent=1 // pred_check
      _
    $region79: #{tpu_custom_call.1} parent=1 // pred_check_branch
      %155 = sbr.rel (0) target = $region81
    $region80: #{tpu_custom_call.1} parent=1 // pred_region
      %156 = dma.done [#allocation6], 16
    $region81: #{tpu_custom_call.1} parent=1 // pred_fallthru
      _
    // Predicated region
    $region82: #{tpu_custom_call.1} parent=1 // pred_check
      _
    $region83: #{tpu_custom_call.1} parent=1 // pred_check_branch
      %158 = sbr.rel (0) target = $region85
    $region84: #{tpu_custom_call.1} parent=1 // pred_region
      %159 = dma.done [#allocation6], 16
    $region85: #{tpu_custom_call.1} parent=1 // pred_fallthru
      _
    // Predicated region
    $region86: #{tpu_custom_call.1} parent=1 // pred_check
      _
    $region87: #{tpu_custom_call.1} parent=1 // pred_check_branch
      %161 = sbr.rel (0) target = $region89
    $region88: #{tpu_custom_call.1} parent=1 // pred_region
      %162 = dma.done [#allocation9], 32
    $region89: #{tpu_custom_call.1} parent=1 // pred_fallthru
      _
    // Predicated region
    $region90: #{tpu_custom_call.1} parent=1 // pred_check
      _
    $region91: #{tpu_custom_call.1} parent=1 // pred_check_branch
      %164 = sbr.rel (0) target = $region93
    $region92: #{tpu_custom_call.1} parent=1 // pred_region
      %165 = dma.done [#allocation9], 6144
    $region93: #{tpu_custom_call.1} parent=1 // pred_fallthru
      _
    // Predicated region
    $region94: #{tpu_custom_call.1} parent=1 // pred_check
      _
    $region95: #{tpu_custom_call.1} parent=1 // pred_check_branch
      %167 = sbr.rel (0) target = $region97
    $region96: #{tpu_custom_call.1} parent=1 // pred_region
      %168 = dma.done [#allocation12], 2048
    $region97: #{tpu_custom_call.1} parent=1 // pred_fallthru
      _
    // Predicated region
    $region98: #{tpu_custom_call.1} parent=1 // pred_check
      _
    $region99: #{tpu_custom_call.1} parent=1 // pred_check_branch
      %170 = sbr.rel (0) target = $region101
    $region100: #{tpu_custom_call.1} parent=1 // pred_region
      %171 = dma.done [#allocation12], 4096
    $region101: #{tpu_custom_call.1} parent=1 // pred_fallthru
      _
    // Predicated region
    $region102: #{tpu_custom_call.1} parent=1 // pred_check
      _
    $region103: #{tpu_custom_call.1} parent=1 // pred_check_branch
      %173 = sbr.rel (0) target = $region105
    $region104: #{tpu_custom_call.1} parent=1 // pred_region
      %174 = dma.done [#allocation15], 4096
    $region105: #{tpu_custom_call.1} parent=1 // pred_fallthru
      _
    // Predicated region
    $region106: #{tpu_custom_call.1} parent=1 // pred_check
      _
    $region107: #{tpu_custom_call.1} parent=1 // pred_check_branch
      %176 = sbr.rel (0) target = $region109
    $region108: #{tpu_custom_call.1} parent=1 // pred_region
      %177 = dma.done [#allocation15], 1024
    $region109: #{tpu_custom_call.1} parent=1 // pred_fallthru
      _
    %v179 = vld [vmem:[#allocation2] sm:$0xff]
    %v180 = vld [vmem:[#allocation2 + $0x8] sm:$0xff]
    %v181 = vld [vmem:[#allocation5] sm:$0x1]
    %v182 = vld [vmem:[#allocation7] sm:$0x1]
    %183 = vadd.xlane.f32.xlu0 %v179
    %v184 = vpop.xlane.xlu0 %183
    %185 = vadd.xlane.f32.xlu0 %v180
    %v186 = vpop.xlane.xlu0 %185
    %v187 = vrcp.pop 128.0
    %v188 = vmul.f32 %v184, %v187
    %v189 = vmul.f32 %v186, %v187
    %v190 = vsub.f32 %v179, %v188
    %v191 = vsub.f32 %v180, %v189
    %v192 = vmul.f32 %v190, %v190
    %v193 = vmul.f32 %v191, %v191
    %194 = vadd.xlane.f32.xlu0 %v192
    %v195 = vpop.xlane.xlu0 %194
    %196 = vadd.xlane.f32.xlu0 %v193
    %v197 = vpop.xlane.xlu0 %196
    %v198 = vmul.f32 %v195, %v187
    %v199 = vmul.f32 %v197, %v187
    %v200 = vadd.f32 %v198, 1e-05
    %v201 = vadd.f32 %v199, 1e-05
    %v202 = vrsqrt.pop %v200
    %v203 = vrsqrt.pop %v201
    %v204 = vmul.f32 %v190, %v202
    %v205 = vmul.f32 %v191, %v203
    %v207 = vlaneseq
    %v208 = vshrl.u32 %v207, 7
    %v209 = vsub.s32 0, %v208
    %v210 = vrot.slane %v181, %v209
    %v212 = vmul.f32 %v204, %v210
    %v213 = vmul.f32 %v205, %v210
    %v215 = vlaneseq
    %v216 = vshrl.u32 %v215, 7
    %v217 = vsub.s32 0, %v216
    %v218 = vrot.slane %v182, %v217
    %v220 = vadd.f32 %v212, %v218
    %v221 = vadd.f32 %v213, %v218
    %v222 = vld [vmem:[#allocation8] sm:$0x1]
    %v223 = vld [vmem:[#allocation8 + $0x1] sm:$0x1]
    %v226 = vlaneseq
    %v227 = vshrl.u32 %v226, 7
    %v228 = vsub.s32 0, %v227
    %v229 = vrot.slane %v222, %v228
    %v230 = vlaneseq
    %v231 = vshrl.u32 %v230, 7
    %v232 = vsub.s32 0, %v231
    %v233 = vrot.slane %v223, %v232
    %v236 = vpack.c.bf16 %v221, %v220
    %v237 = vld [vmem:[#allocation10] sm:$0xff]
    %v238 = vld [vmem:[#allocation10 + $0x8] sm:$0xf]
    %v239 = vld [vmem:[#allocation10 + $0xc] sm:$0xff]
    %v240 = vld [vmem:[#allocation10 + $0x14] sm:$0xf]
    %v241 = vld [vmem:[#allocation10 + $0x18] sm:$0xff]
    %v242 = vld [vmem:[#allocation10 + $0x20] sm:$0xf]
    %v243 = vld [vmem:[#allocation10 + $0x24] sm:$0xff]
    %v244 = vld [vmem:[#allocation10 + $0x2c] sm:$0xf]
    %v245 = vld [vmem:[#allocation10 + $0x30] sm:$0xff]
    %v246 = vld [vmem:[#allocation10 + $0x38] sm:$0xf]
    %v247 = vld [vmem:[#allocation10 + $0x3c] sm:$0xff]
    %v248 = vld [vmem:[#allocation10 + $0x44] sm:$0xf]
    %v249 = vld [vmem:[#allocation10 + $0x48] sm:$0xff]
    %v250 = vld [vmem:[#allocation10 + $0x50] sm:$0xf]
    %v251 = vld [vmem:[#allocation10 + $0x54] sm:$0xff]
    %v252 = vld [vmem:[#allocation10 + $0x5c] sm:$0xf]
    %v253 = vld [vmem:[#allocation10 + $0x60] sm:$0xff]
    %v254 = vld [vmem:[#allocation10 + $0x68] sm:$0xf]
    %v255 = vld [vmem:[#allocation10 + $0x6c] sm:$0xff]
    %v256 = vld [vmem:[#allocation10 + $0x74] sm:$0xf]
    %v257 = vld [vmem:[#allocation10 + $0x78] sm:$0xff]
    %v258 = vld [vmem:[#allocation10 + $0x80] sm:$0xf]
    %v259 = vld [vmem:[#allocation10 + $0x84] sm:$0xff]
    %v260 = vld [vmem:[#allocation10 + $0x8c] sm:$0xf]
    %v261 = vld [vmem:[#allocation10 + $0x90] sm:$0xff]
    %v262 = vld [vmem:[#allocation10 + $0x98] sm:$0xf]
    %v263 = vld [vmem:[#allocation10 + $0x9c] sm:$0xff]
    %v264 = vld [vmem:[#allocation10 + $0xa4] sm:$0xf]
    %v265 = vld [vmem:[#allocation10 + $0xa8] sm:$0xff]
    %v266 = vld [vmem:[#allocation10 + $0xb0] sm:$0xf]
    %v267 = vld [vmem:[#allocation10 + $0xb4] sm:$0xff]
    %v268 = vld [vmem:[#allocation10 + $0xbc] sm:$0xf]
    %v269 = vld [vmem:[%s5] sm:$0x7]
    %v271 = vlaneseq
    %v272 = vshrl.u32 %v271, 7
    %v273 = vsub.s32 0, %v272
    %v274 = vrot.slane %v269, %v273
    %v275 = vlaneseq
    %v276 = vshrl.u32 %v275, 7
    %v277 = vsub.s32 1, %v276
    %v278 = vrot.slane %v269, %v277
    %v279 = vlaneseq
    %v280 = vshrl.u32 %v279, 7
    %v281 = vsub.s32 2, %v280
    %v282 = vrot.slane %v269, %v281
    %v318 = vunpack.c.l.b16 %v237
    %v319 = vunpack.c.h.b16 %v237
    %v320 = vunpack.c.l.b16 %v238
    %v321 = vunpack.c.l.b16 %v239
    %v322 = vunpack.c.h.b16 %v239
    %v323 = vunpack.c.l.b16 %v240
    %v324 = vunpack.c.l.b16 %v241
    %v325 = vunpack.c.h.b16 %v241
    %v326 = vunpack.c.l.b16 %v242
    %v327 = vunpack.c.l.b16 %v243
    %v328 = vunpack.c.h.b16 %v243
    %v329 = vunpack.c.l.b16 %v244
    %v330 = vunpack.c.l.b16 %v245
    %v331 = vunpack.c.h.b16 %v245
    %v332 = vunpack.c.l.b16 %v246
    %v333 = vunpack.c.l.b16 %v247
    %v334 = vunpack.c.h.b16 %v247
    %v335 = vunpack.c.l.b16 %v248
    %v336 = vunpack.c.l.b16 %v249
    %v337 = vunpack.c.h.b16 %v249
    %v338 = vunpack.c.l.b16 %v250
    %v339 = vunpack.c.l.b16 %v251
    %v340 = vunpack.c.h.b16 %v251
    %v341 = vunpack.c.l.b16 %v252
    %v342 = vunpack.c.l.b16 %v253
    %v343 = vunpack.c.h.b16 %v253
    %v344 = vunpack.c.l.b16 %v254
    %v345 = vunpack.c.l.b16 %v255
    %v346 = vunpack.c.h.b16 %v255
    %v347 = vunpack.c.l.b16 %v256
    %v348 = vunpack.c.l.b16 %v257
    %v349 = vunpack.c.h.b16 %v257
    %v350 = vunpack.c.l.b16 %v258
    %v351 = vunpack.c.l.b16 %v259
    %v352 = vunpack.c.h.b16 %v259
    %v353 = vunpack.c.l.b16 %v260
    %v354 = vunpack.c.l.b16 %v261
    %v355 = vunpack.c.h.b16 %v261
    %v356 = vunpack.c.l.b16 %v262
    %v357 = vunpack.c.l.b16 %v263
    %v358 = vunpack.c.h.b16 %v263
    %v359 = vunpack.c.l.b16 %v264
    %v360 = vunpack.c.l.b16 %v265
    %v361 = vunpack.c.h.b16 %v265
    %v362 = vunpack.c.l.b16 %v266
    %v363 = vunpack.c.l.b16 %v267
    %v364 = vunpack.c.h.b16 %v267
    %v365 = vunpack.c.l.b16 %v268
    %v366 = vpack.c.b16 %v321, %v318
    %v367 = vpack.c.b16 %v322, %v319
    %v368 = vpack.c.b16 %v323, %v320
    %v369 = vpack.c.b16 %v327, %v324
    %v370 = vpack.c.b16 %v328, %v325
    %v371 = vpack.c.b16 %v329, %v326
    %v372 = vpack.c.b16 %v333, %v330
    %v373 = vpack.c.b16 %v334, %v331
    %v374 = vpack.c.b16 %v335, %v332
    %v375 = vpack.c.b16 %v339, %v336
    %v376 = vpack.c.b16 %v340, %v337
    %v377 = vpack.c.b16 %v341, %v338
    %v378 = vpack.c.b16 %v345, %v342
    %v379 = vpack.c.b16 %v346, %v343
    %v380 = vpack.c.b16 %v347, %v344
    %v381 = vpack.c.b16 %v351, %v348
    %v382 = vpack.c.b16 %v352, %v349
    %v383 = vpack.c.b16 %v353, %v350
    %v384 = vpack.c.b16 %v357, %v354
    %v385 = vpack.c.b16 %v358, %v355
    %v386 = vpack.c.b16 %v359, %v356
    %v387 = vpack.c.b16 %v363, %v360
    %v388 = vpack.c.b16 %v364, %v361
    %v389 = vpack.c.b16 %v365, %v362
    %414 = vmatprep.subr.bf16.mxu0 %v367
    %415 = vmatpush1.bf16.msra.mxu0 %v366
    %416 = vmatprep.subr.bf16.mxu0 %v370
    %417 = vmatpush1.bf16.msra.mxu0 %v369
    %418 = vmatprep.subr.bf16.mxu0 %v373
    %419 = vmatpush1.bf16.msra.mxu0 %v372
    %420 = vmatprep.subr.bf16.mxu0 %v376
    %421 = vmatpush1.bf16.msra.mxu0 %v375
    %422 = vmatprep.subr.bf16.mxu0 %v379
    %423 = vmatpush1.bf16.msra.mxu0 %v378
    %424 = vmatprep.subr.bf16.mxu0 %v382
    %425 = vmatpush1.bf16.msra.mxu0 %v381
    %426 = vmatprep.subr.bf16.mxu0 %v385
    %427 = vmatpush1.bf16.msra.mxu0 %v384
    %428 = vmatprep.subr.bf16.mxu0 %v388
    %429 = vmatpush1.bf16.msra.mxu0 %v387
    %430 = vmatprep.subr.bf16.mxu0 0
    %431 = vmatpush1.bf16.msra.mxu0 0
    %432 = vmatprep.subr.bf16.mxu0 0
    %433 = vmatpush1.bf16.msra.mxu0 0
    %434 = vmatprep.subr.bf16.mxu0 0
    %435 = vmatpush1.bf16.msra.mxu0 0
    %436 = vmatprep.subr.bf16.mxu0 0
    %437 = vmatpush1.bf16.msra.mxu0 0
    %438 = vmatprep.subr.bf16.mxu0 0
    %439 = vmatpush1.bf16.msra.mxu0 0
    %440 = vmatprep.subr.bf16.mxu0 0
    %441 = vmatpush1.bf16.msra.mxu0 0
    %442 = vmatprep.subr.bf16.mxu0 0
    %443 = vmatpush1.bf16.msra.mxu0 0
    %444 = vmatprep.subr.bf16.mxu0 0
    %445 = vmatpush1.bf16.msra.mxu0 0
    %446 = vmatprep.mubr.bf16.mxu0 0
    %447 = vmatmul.mubr.bf16.gmra.mrb[0].mxu0 %v236
    %v448 = vpop.f32.mrb[0].mxu0
    %v449 = vadd.f32 %v274, %v448
    %v450 = vpop.f32.mrb[0].mxu0
    %v451 = vadd.f32 %v278, %v450
    %v452 = vpop.f32.mrb[0].mxu0
    %v453 = vadd.f32 %v274, %v452
    %v454 = vpop.f32.mrb[0].mxu0
    %v455 = vadd.f32 %v278, %v454
    %456 = vdwg.mxu0
    %457 = vmatprep.subr.bf16.mxu0 0
    %458 = vmatpush1.bf16.msra.mxu0 %v368
    %459 = vmatprep.subr.bf16.mxu0 0
    %460 = vmatpush1.bf16.msra.mxu0 %v371
    %461 = vmatprep.subr.bf16.mxu0 0
    %462 = vmatpush1.bf16.msra.mxu0 %v374
    %463 = vmatprep.subr.bf16.mxu0 0
    %464 = vmatpush1.bf16.msra.mxu0 %v377
    %465 = vmatprep.subr.bf16.mxu0 0
    %466 = vmatpush1.bf16.msra.mxu0 %v380
    %467 = vmatprep.subr.bf16.mxu0 0
    %468 = vmatpush1.bf16.msra.mxu0 %v383
    %469 = vmatprep.subr.bf16.mxu0 0
    %470 = vmatpush1.bf16.msra.mxu0 %v386
    %471 = vmatprep.subr.bf16.mxu0 0
    %472 = vmatpush1.bf16.msra.mxu0 %v389
    %473 = vmatprep.subr.bf16.mxu0 0
    %474 = vmatpush1.bf16.msra.mxu0 0
    %475 = vmatprep.subr.bf16.mxu0 0
    %476 = vmatpush1.bf16.msra.mxu0 0
    %477 = vmatprep.subr.bf16.mxu0 0
    %478 = vmatpush1.bf16.msra.mxu0 0
    %479 = vmatprep.subr.bf16.mxu0 0
    %480 = vmatpush1.bf16.msra.mxu0 0
    %481 = vmatprep.subr.bf16.mxu0 0
    %482 = vmatpush1.bf16.msra.mxu0 0
    %483 = vmatprep.subr.bf16.mxu0 0
    %484 = vmatpush1.bf16.msra.mxu0 0
    %485 = vmatprep.subr.bf16.mxu0 0
    %486 = vmatpush1.bf16.msra.mxu0 0
    %487 = vmatprep.subr.bf16.mxu0 0
    %488 = vmatpush1.bf16.msra.mxu0 0
    %489 = vmatprep.mubr.bf16.mxu0 0
    %490 = vmatmul.mubr.bf16.gmra.mrb[0].mxu0 %v236
    %v491 = vpop.f32.mrb[0].mxu0
    %v492 = vadd.f32 %v282, %v491
    %v493 = vpop.f32.mrb[0].mxu0
    %v494 = vpop.f32.mrb[0].mxu0
    %v495 = vadd.f32 %v282, %v494
    %v496 = vpop.f32.mrb[0].mxu0
    %497 = vdwg.mxu0
    %v498 = vpack.c.bf16 %v449, %v449
    %v499 = vpack.c.bf16 %v453, %v453
    %v500 = vpack.c.bf16 %v451, %v451
    %v501 = vpack.c.bf16 %v455, %v455
    %v502 = vpack.c.bf16 %v492, %v492
    %v503 = vpack.c.bf16 %v495, %v495
    %vm504 = vcmask 523264
    %v506 = vsel %vm504, %v498, 0
    %v509 = vsel %vm504, %v500, 0
    %511 = vmatprep.subr.bf16.mxu0 0
    %512 = vmatpush1.bf16.xpose.msra.mxu0 %v509
    %513 = vmatprep.subr.bf16.mxu0 0
    %514 = vmatpush1.bf16.xpose.msra.mxu0 0
    %515 = vmatprep.subr.bf16.mxu0 0
    %516 = vmatpush1.bf16.xpose.msra.mxu0 0
    %517 = vmatprep.subr.bf16.mxu0 0
    %518 = vmatpush1.bf16.xpose.msra.mxu0 0
    %519 = vmatprep.subr.bf16.mxu0 0
    %520 = vmatpush1.bf16.xpose.msra.mxu0 0
    %521 = vmatprep.subr.bf16.mxu0 0
    %522 = vmatpush1.bf16.xpose.msra.mxu0 0
    %523 = vmatprep.subr.bf16.mxu0 0
    %524 = vmatpush1.bf16.xpose.msra.mxu0 0
    %525 = vmatprep.subr.bf16.mxu0 0
    %526 = vmatpush1.bf16.xpose.msra.mxu0 0
    %527 = vmatprep.subr.bf16.mxu0 0
    %528 = vmatpush1.bf16.xpose.msra.mxu0 0
    %529 = vmatprep.subr.bf16.mxu0 0
    %530 = vmatpush1.bf16.xpose.msra.mxu0 0
    %531 = vmatprep.subr.bf16.mxu0 0
    %532 = vmatpush1.bf16.xpose.msra.mxu0 0
    %533 = vmatprep.subr.bf16.mxu0 0
    %534 = vmatpush1.bf16.xpose.msra.mxu0 0
    %535 = vmatprep.subr.bf16.mxu0 0
    %536 = vmatpush1.bf16.xpose.msra.mxu0 0
    %537 = vmatprep.subr.bf16.mxu0 0
    %538 = vmatpush1.bf16.xpose.msra.mxu0 0
    %539 = vmatprep.subr.bf16.mxu0 0
    %540 = vmatpush1.bf16.xpose.msra.mxu0 0
    %541 = vmatprep.subr.bf16.mxu0 0
    %542 = vmatpush1.bf16.xpose.msra.mxu0 0
    %543 = vmatprep.mubr.bf16.mxu0 0
    %544 = vmatmul.mubr.bf16.gmra.mrb[0].mxu0 %v506
    %v545 = vpop.f32.mrb[0].mxu0
    %v546 = vadd.f32 0.0, %v545
    %v547 = vpop.f32.mrb[0].mxu0
    %v548 = vpop.f32.mrb[0].mxu0
    %v549 = vpop.f32.mrb[0].mxu0
    %550 = vdwg.mxu0
    %v552 = vsel %vm504, %v499, 0
    %v555 = vsel %vm504, %v501, 0
    %557 = vmatprep.subr.bf16.mxu0 0
    %558 = vmatpush1.bf16.xpose.msra.mxu0 %v555
    %559 = vmatprep.subr.bf16.mxu0 0
    %560 = vmatpush1.bf16.xpose.msra.mxu0 0
    %561 = vmatprep.subr.bf16.mxu0 0
    %562 = vmatpush1.bf16.xpose.msra.mxu0 0
    %563 = vmatprep.subr.bf16.mxu0 0
    %564 = vmatpush1.bf16.xpose.msra.mxu0 0
    %565 = vmatprep.subr.bf16.mxu0 0
    %566 = vmatpush1.bf16.xpose.msra.mxu0 0
    %567 = vmatprep.subr.bf16.mxu0 0
    %568 = vmatpush1.bf16.xpose.msra.mxu0 0
    %569 = vmatprep.subr.bf16.mxu0 0
    %570 = vmatpush1.bf16.xpose.msra.mxu0 0
    %571 = vmatprep.subr.bf16.mxu0 0
    %572 = vmatpush1.bf16.xpose.msra.mxu0 0
    %573 = vmatprep.subr.bf16.mxu0 0
    %574 = vmatpush1.bf16.xpose.msra.mxu0 0
    %575 = vmatprep.subr.bf16.mxu0 0
    %576 = vmatpush1.bf16.xpose.msra.mxu0 0
    %577 = vmatprep.subr.bf16.mxu0 0
    %578 = vmatpush1.bf16.xpose.msra.mxu0 0
    %579 = vmatprep.subr.bf16.mxu0 0
    %580 = vmatpush1.bf16.xpose.msra.mxu0 0
    %581 = vmatprep.subr.bf16.mxu0 0
    %582 = vmatpush1.bf16.xpose.msra.mxu0 0
    %583 = vmatprep.subr.bf16.mxu0 0
    %584 = vmatpush1.bf16.xpose.msra.mxu0 0
    %585 = vmatprep.subr.bf16.mxu0 0
    %586 = vmatpush1.bf16.xpose.msra.mxu0 0
    %587 = vmatprep.subr.bf16.mxu0 0
    %588 = vmatpush1.bf16.xpose.msra.mxu0 0
    %589 = vmatprep.mubr.bf16.mxu0 0
    %590 = vmatmul.mubr.bf16.gmra.mrb[0].mxu0 %v552
    %v591 = vpop.f32.mrb[0].mxu0
    %v592 = vadd.f32 0.0, %v591
    %v593 = vpop.f32.mrb[0].mxu0
    %v594 = vpop.f32.mrb[0].mxu0
    %v595 = vpop.f32.mrb[0].mxu0
    %596 = vdwg.mxu0
    %v597 = vmul.f32 %v546, 0.125
    %v598 = vmul.f32 %v592, 0.125
    %v599 = vadd.f32 %v597, %v229
    %v600 = vadd.f32 %v598, %v233
    %vm601 = vcmask 64512
    %v602 = vsel %vm601, %v599, -inf
    %603 = vmax.xlane.f32.xlu0 %v602
    %v604 = vpop.xlane.xlu0 %603
    %v605 = vsel %vm601, %v600, -inf
    %606 = vmax.xlane.f32.xlu0 %v605
    %v607 = vpop.xlane.xlu0 %606
    %v608 = vsub.f32 %v599, %v604
    %v609 = vsub.f32 %v600, %v607
    %v610 = vmul.f32 %v608, 1.442695
    %v611 = vpow.pop %v610
    %v612 = vmul.f32 %v609, 1.442695
    %v613 = vpow.pop %v612
    %v614 = vsel %vm601, %v611, 0.0
    %615 = vadd.xlane.f32.xlu0 %v614
    %v616 = vpop.xlane.xlu0 %615
    %v617 = vsel %vm601, %v613, 0.0
    %618 = vadd.xlane.f32.xlu0 %v617
    %v619 = vpop.xlane.xlu0 %618
    %v620 = vrcp.pop %v616
    %v621 = vrcp.pop %v619
    %v622 = vmul.f32 %v611, %v620
    %v623 = vmul.f32 %v613, %v621
    %v624 = vpack.c.bf16 %v622, %v622
    %v625 = vpack.c.bf16 %v623, %v623
    %v627 = vsel %vm601, %v624, 0
    %vm629 = vcmask 1043456
    %v631 = vsel %vm629, %v502, 0
    %633 = vmatprep.subr.bf16.mxu0 0
    %634 = vmatpush1.bf16.msra.mxu0 %v631
    %635 = vmatprep.subr.bf16.mxu0 0
    %636 = vmatpush1.bf16.msra.mxu0 0
    %637 = vmatprep.subr.bf16.mxu0 0
    %638 = vmatpush1.bf16.msra.mxu0 0
    %639 = vmatprep.subr.bf16.mxu0 0
    %640 = vmatpush1.bf16.msra.mxu0 0
    %641 = vmatprep.subr.bf16.mxu0 0
    %642 = vmatpush1.bf16.msra.mxu0 0
    %643 = vmatprep.subr.bf16.mxu0 0
    %644 = vmatpush1.bf16.msra.mxu0 0
    %645 = vmatprep.subr.bf16.mxu0 0
    %646 = vmatpush1.bf16.msra.mxu0 0
    %647 = vmatprep.subr.bf16.mxu0 0
    %648 = vmatpush1.bf16.msra.mxu0 0
    %649 = vmatprep.subr.bf16.mxu0 0
    %650 = vmatpush1.bf16.msra.mxu0 0
    %651 = vmatprep.subr.bf16.mxu0 0
    %652 = vmatpush1.bf16.msra.mxu0 0
    %653 = vmatprep.subr.bf16.mxu0 0
    %654 = vmatpush1.bf16.msra.mxu0 0
    %655 = vmatprep.subr.bf16.mxu0 0
    %656 = vmatpush1.bf16.msra.mxu0 0
    %657 = vmatprep.subr.bf16.mxu0 0
    %658 = vmatpush1.bf16.msra.mxu0 0
    %659 = vmatprep.subr.bf16.mxu0 0
    %660 = vmatpush1.bf16.msra.mxu0 0
    %661 = vmatprep.subr.bf16.mxu0 0
    %662 = vmatpush1.bf16.msra.mxu0 0
    %663 = vmatprep.subr.bf16.mxu0 0
    %664 = vmatpush1.bf16.msra.mxu0 0
    %665 = vmatprep.mubr.bf16.mxu0 0
    %666 = vmatmul.mubr.bf16.gmra.mrb[0].mxu0 %v627
    %v667 = vpop.f32.mrb[0].mxu0
    %v668 = vadd.f32 0.0, %v667
    %v669 = vpop.f32.mrb[0].mxu0
    %v670 = vpop.f32.mrb[0].mxu0
    %v671 = vpop.f32.mrb[0].mxu0
    %672 = vdwg.mxu0
    %v674 = vsel %vm601, %v625, 0
    %v677 = vsel %vm629, %v503, 0
    %679 = vmatprep.subr.bf16.mxu0 0
    %680 = vmatpush1.bf16.msra.mxu0 %v677
    %681 = vmatprep.subr.bf16.mxu0 0
    %682 = vmatpush1.bf16.msra.mxu0 0
    %683 = vmatprep.subr.bf16.mxu0 0
    %684 = vmatpush1.bf16.msra.mxu0 0
    %685 = vmatprep.subr.bf16.mxu0 0
    %686 = vmatpush1.bf16.msra.mxu0 0
    %687 = vmatprep.subr.bf16.mxu0 0
    %688 = vmatpush1.bf16.msra.mxu0 0
    %689 = vmatprep.subr.bf16.mxu0 0
    %690 = vmatpush1.bf16.msra.mxu0 0
    %691 = vmatprep.subr.bf16.mxu0 0
    %692 = vmatpush1.bf16.msra.mxu0 0
    %693 = vmatprep.subr.bf16.mxu0 0
    %694 = vmatpush1.bf16.msra.mxu0 0
    %695 = vmatprep.subr.bf16.mxu0 0
    %696 = vmatpush1.bf16.msra.mxu0 0
    %697 = vmatprep.subr.bf16.mxu0 0
    %698 = vmatpush1.bf16.msra.mxu0 0
    %699 = vmatprep.subr.bf16.mxu0 0
    %700 = vmatpush1.bf16.msra.mxu0 0
    %701 = vmatprep.subr.bf16.mxu0 0
    %702 = vmatpush1.bf16.msra.mxu0 0
    %703 = vmatprep.subr.bf16.mxu0 0
    %704 = vmatpush1.bf16.msra.mxu0 0
    %705 = vmatprep.subr.bf16.mxu0 0
    %706 = vmatpush1.bf16.msra.mxu0 0
    %707 = vmatprep.subr.bf16.mxu0 0
    %708 = vmatpush1.bf16.msra.mxu0 0
    %709 = vmatprep.subr.bf16.mxu0 0
    %710 = vmatpush1.bf16.msra.mxu0 0
    %711 = vmatprep.mubr.bf16.mxu0 0
    %712 = vmatmul.mubr.bf16.gmra.mrb[0].mxu0 %v674
    %v713 = vpop.f32.mrb[0].mxu0
    %v714 = vadd.f32 0.0, %v713
    %v715 = vpop.f32.mrb[0].mxu0
    %v716 = vpop.f32.mrb[0].mxu0
    %v717 = vpop.f32.mrb[0].mxu0
    %718 = vdwg.mxu0
    %720 = vrot.lane.b32.xlu0 %v498, 64
    %v721 = vpop.permute.xlu0 %720
    %723 = vrot.lane.b32.xlu0 %v500, 64
    %v724 = vpop.permute.xlu0 %723
    %v726 = vsel %vm504, %v721, 0
    %v729 = vsel %vm504, %v724, 0
    %731 = vmatprep.subr.bf16.mxu0 0
    %732 = vmatpush1.bf16.xpose.msra.mxu0 %v729
    %733 = vmatprep.subr.bf16.mxu0 0
    %734 = vmatpush1.bf16.xpose.msra.mxu0 0
    %735 = vmatprep.subr.bf16.mxu0 0
    %736 = vmatpush1.bf16.xpose.msra.mxu0 0
    %737 = vmatprep.subr.bf16.mxu0 0
    %738 = vmatpush1.bf16.xpose.msra.mxu0 0
    %739 = vmatprep.subr.bf16.mxu0 0
    %740 = vmatpush1.bf16.xpose.msra.mxu0 0
    %741 = vmatprep.subr.bf16.mxu0 0
    %742 = vmatpush1.bf16.xpose.msra.mxu0 0
    %743 = vmatprep.subr.bf16.mxu0 0
    %744 = vmatpush1.bf16.xpose.msra.mxu0 0
    %745 = vmatprep.subr.bf16.mxu0 0
    %746 = vmatpush1.bf16.xpose.msra.mxu0 0
    %747 = vmatprep.subr.bf16.mxu0 0
    %748 = vmatpush1.bf16.xpose.msra.mxu0 0
    %749 = vmatprep.subr.bf16.mxu0 0
    %750 = vmatpush1.bf16.xpose.msra.mxu0 0
    %751 = vmatprep.subr.bf16.mxu0 0
    %752 = vmatpush1.bf16.xpose.msra.mxu0 0
    %753 = vmatprep.subr.bf16.mxu0 0
    %754 = vmatpush1.bf16.xpose.msra.mxu0 0
    %755 = vmatprep.subr.bf16.mxu0 0
    %756 = vmatpush1.bf16.xpose.msra.mxu0 0
    %757 = vmatprep.subr.bf16.mxu0 0
    %758 = vmatpush1.bf16.xpose.msra.mxu0 0
    %759 = vmatprep.subr.bf16.mxu0 0
    %760 = vmatpush1.bf16.xpose.msra.mxu0 0
    %761 = vmatprep.subr.bf16.mxu0 0
    %762 = vmatpush1.bf16.xpose.msra.mxu0 0
    %763 = vmatprep.mubr.bf16.mxu0 0
    %764 = vmatmul.mubr.bf16.gmra.mrb[0].mxu0 %v726
    %v765 = vpop.f32.mrb[0].mxu0
    %v766 = vadd.f32 0.0, %v765
    %v767 = vpop.f32.mrb[0].mxu0
    %v768 = vpop.f32.mrb[0].mxu0
    %v769 = vpop.f32.mrb[0].mxu0
    %770 = vdwg.mxu0
    %772 = vrot.lane.b32.xlu0 %v499, 64
    %v773 = vpop.permute.xlu0 %772
    %775 = vrot.lane.b32.xlu0 %v501, 64
    %v776 = vpop.permute.xlu0 %775
    %v778 = vsel %vm504, %v773, 0
    %v781 = vsel %vm504, %v776, 0
    %783 = vmatprep.subr.bf16.mxu0 0
    %784 = vmatpush1.bf16.xpose.msra.mxu0 %v781
    %785 = vmatprep.subr.bf16.mxu0 0
    %786 = vmatpush1.bf16.xpose.msra.mxu0 0
    %787 = vmatprep.subr.bf16.mxu0 0
    %788 = vmatpush1.bf16.xpose.msra.mxu0 0
    %789 = vmatprep.subr.bf16.mxu0 0
    %790 = vmatpush1.bf16.xpose.msra.mxu0 0
    %791 = vmatprep.subr.bf16.mxu0 0
    %792 = vmatpush1.bf16.xpose.msra.mxu0 0
    %793 = vmatprep.subr.bf16.mxu0 0
    %794 = vmatpush1.bf16.xpose.msra.mxu0 0
    %795 = vmatprep.subr.bf16.mxu0 0
    %796 = vmatpush1.bf16.xpose.msra.mxu0 0
    %797 = vmatprep.subr.bf16.mxu0 0
    %798 = vmatpush1.bf16.xpose.msra.mxu0 0
    %799 = vmatprep.subr.bf16.mxu0 0
    %800 = vmatpush1.bf16.xpose.msra.mxu0 0
    %801 = vmatprep.subr.bf16.mxu0 0
    %802 = vmatpush1.bf16.xpose.msra.mxu0 0
    %803 = vmatprep.subr.bf16.mxu0 0
    %804 = vmatpush1.bf16.xpose.msra.mxu0 0
    %805 = vmatprep.subr.bf16.mxu0 0
    %806 = vmatpush1.bf16.xpose.msra.mxu0 0
    %807 = vmatprep.subr.bf16.mxu0 0
    %808 = vmatpush1.bf16.xpose.msra.mxu0 0
    %809 = vmatprep.subr.bf16.mxu0 0
    %810 = vmatpush1.bf16.xpose.msra.mxu0 0
    %811 = vmatprep.subr.bf16.mxu0 0
    %812 = vmatpush1.bf16.xpose.msra.mxu0 0
    %813 = vmatprep.subr.bf16.mxu0 0
    %814 = vmatpush1.bf16.xpose.msra.mxu0 0
    %815 = vmatprep.mubr.bf16.mxu0 0
    %816 = vmatmul.mubr.bf16.gmra.mrb[0].mxu0 %v778
    %v817 = vpop.f32.mrb[0].mxu0
    %v818 = vadd.f32 0.0, %v817
    %v819 = vpop.f32.mrb[0].mxu0
    %v820 = vpop.f32.mrb[0].mxu0
    %v821 = vpop.f32.mrb[0].mxu0
    %822 = vdwg.mxu0
    %v823 = vmul.f32 %v766, 0.125
    %v824 = vmul.f32 %v818, 0.125
    %v825 = vadd.f32 %v823, %v229
    %v826 = vadd.f32 %v824, %v233
    %v827 = vsel %vm601, %v825, -inf
    %828 = vmax.xlane.f32.xlu0 %v827
    %v829 = vpop.xlane.xlu0 %828
    %v830 = vsel %vm601, %v826, -inf
    %831 = vmax.xlane.f32.xlu0 %v830
    %v832 = vpop.xlane.xlu0 %831
    %v833 = vsub.f32 %v825, %v829
    %v834 = vsub.f32 %v826, %v832
    %v835 = vmul.f32 %v833, 1.442695
    %v836 = vpow.pop %v835
    %v837 = vmul.f32 %v834, 1.442695
    %v838 = vpow.pop %v837
    %v839 = vsel %vm601, %v836, 0.0
    %840 = vadd.xlane.f32.xlu0 %v839
    %v841 = vpop.xlane.xlu0 %840
    %v842 = vsel %vm601, %v838, 0.0
    %843 = vadd.xlane.f32.xlu0 %v842
    %v844 = vpop.xlane.xlu0 %843
    %v845 = vrcp.pop %v841
    %v846 = vrcp.pop %v844
    %v847 = vmul.f32 %v836, %v845
    %v848 = vmul.f32 %v838, %v846
    %v849 = vpack.c.bf16 %v847, %v847
    %v850 = vpack.c.bf16 %v848, %v848
    %852 = vrot.lane.b32.xlu0 %v502, 64
    %v853 = vpop.permute.xlu0 %852
    %v855 = vsel %vm601, %v849, 0
    %v858 = vsel %vm629, %v853, 0
    %860 = vmatprep.subr.bf16.mxu0 0
    %861 = vmatpush1.bf16.msra.mxu0 %v858
    %862 = vmatprep.subr.bf16.mxu0 0
    %863 = vmatpush1.bf16.msra.mxu0 0
    %864 = vmatprep.subr.bf16.mxu0 0
    %865 = vmatpush1.bf16.msra.mxu0 0
    %866 = vmatprep.subr.bf16.mxu0 0
    %867 = vmatpush1.bf16.msra.mxu0 0
    %868 = vmatprep.subr.bf16.mxu0 0
    %869 = vmatpush1.bf16.msra.mxu0 0
    %870 = vmatprep.subr.bf16.mxu0 0
    %871 = vmatpush1.bf16.msra.mxu0 0
    %872 = vmatprep.subr.bf16.mxu0 0
    %873 = vmatpush1.bf16.msra.mxu0 0
    %874 = vmatprep.subr.bf16.mxu0 0
    %875 = vmatpush1.bf16.msra.mxu0 0
    %876 = vmatprep.subr.bf16.mxu0 0
    %877 = vmatpush1.bf16.msra.mxu0 0
    %878 = vmatprep.subr.bf16.mxu0 0
    %879 = vmatpush1.bf16.msra.mxu0 0
    %880 = vmatprep.subr.bf16.mxu0 0
    %881 = vmatpush1.bf16.msra.mxu0 0
    %882 = vmatprep.subr.bf16.mxu0 0
    %883 = vmatpush1.bf16.msra.mxu0 0
    %884 = vmatprep.subr.bf16.mxu0 0
    %885 = vmatpush1.bf16.msra.mxu0 0
    %886 = vmatprep.subr.bf16.mxu0 0
    %887 = vmatpush1.bf16.msra.mxu0 0
    %888 = vmatprep.subr.bf16.mxu0 0
    %889 = vmatpush1.bf16.msra.mxu0 0
    %890 = vmatprep.subr.bf16.mxu0 0
    %891 = vmatpush1.bf16.msra.mxu0 0
    %892 = vmatprep.mubr.bf16.mxu0 0
    %893 = vmatmul.mubr.bf16.gmra.mrb[0].mxu0 %v855
    %v894 = vpop.f32.mrb[0].mxu0
    %v895 = vadd.f32 0.0, %v894
    %v896 = vpop.f32.mrb[0].mxu0
    %v897 = vpop.f32.mrb[0].mxu0
    %v898 = vpop.f32.mrb[0].mxu0
    %899 = vdwg.mxu0
    %901 = vrot.lane.b32.xlu0 %v503, 64
    %v902 = vpop.permute.xlu0 %901
    %v904 = vsel %vm601, %v850, 0
    %v907 = vsel %vm629, %v902, 0
    %909 = vmatprep.subr.bf16.mxu0 0
    %910 = vmatpush1.bf16.msra.mxu0 %v907
    %911 = vmatprep.subr.bf16.mxu0 0
    %912 = vmatpush1.bf16.msra.mxu0 0
    %913 = vmatprep.subr.bf16.mxu0 0
    %914 = vmatpush1.bf16.msra.mxu0 0
    %915 = vmatprep.subr.bf16.mxu0 0
    %916 = vmatpush1.bf16.msra.mxu0 0
    %917 = vmatprep.subr.bf16.mxu0 0
    %918 = vmatpush1.bf16.msra.mxu0 0
    %919 = vmatprep.subr.bf16.mxu0 0
    %920 = vmatpush1.bf16.msra.mxu0 0
    %921 = vmatprep.subr.bf16.mxu0 0
    %922 = vmatpush1.bf16.msra.mxu0 0
    %923 = vmatprep.subr.bf16.mxu0 0
    %924 = vmatpush1.bf16.msra.mxu0 0
    %925 = vmatprep.subr.bf16.mxu0 0
    %926 = vmatpush1.bf16.msra.mxu0 0
    %927 = vmatprep.subr.bf16.mxu0 0
    %928 = vmatpush1.bf16.msra.mxu0 0
    %929 = vmatprep.subr.bf16.mxu0 0
    %930 = vmatpush1.bf16.msra.mxu0 0
    %931 = vmatprep.subr.bf16.mxu0 0
    %932 = vmatpush1.bf16.msra.mxu0 0
    %933 = vmatprep.subr.bf16.mxu0 0
    %934 = vmatpush1.bf16.msra.mxu0 0
    %935 = vmatprep.subr.bf16.mxu0 0
    %936 = vmatpush1.bf16.msra.mxu0 0
    %937 = vmatprep.subr.bf16.mxu0 0
    %938 = vmatpush1.bf16.msra.mxu0 0
    %939 = vmatprep.subr.bf16.mxu0 0
    %940 = vmatpush1.bf16.msra.mxu0 0
    %941 = vmatprep.mubr.bf16.mxu0 0
    %942 = vmatmul.mubr.bf16.gmra.mrb[0].mxu0 %v904
    %v943 = vpop.f32.mrb[0].mxu0
    %v944 = vadd.f32 0.0, %v943
    %v945 = vpop.f32.mrb[0].mxu0
    %v946 = vpop.f32.mrb[0].mxu0
    %v947 = vpop.f32.mrb[0].mxu0
    %948 = vdwg.mxu0
    %951 = vrot.lane.b32.xlu0 %v895, 64
    %v952 = vpop.permute.xlu0 %951
    %953 = vrot.lane.b32.xlu0 %v944, 64
    %v954 = vpop.permute.xlu0 %953
    %v957 = vsel %vm504, %v668, %v952
    %v958 = vsel %vm504, %v714, %v954
    %v959 = vpack.c.bf16 %v958, %v957
    %v960 = vld [vmem:[#allocation11] sm:$0xf]
    %v961 = vld [vmem:[#allocation11 + $0x4] sm:$0xf]
    %v962 = vld [vmem:[#allocation11 + $0x8] sm:$0xf]
    %v963 = vld [vmem:[#allocation11 + $0xc] sm:$0xf]
    %v964 = vld [vmem:[#allocation11 + $0x10] sm:$0xf]
    %v965 = vld [vmem:[#allocation11 + $0x14] sm:$0xf]
    %v966 = vld [vmem:[#allocation11 + $0x18] sm:$0xf]
    %v967 = vld [vmem:[#allocation11 + $0x1c] sm:$0xf]
    %v968 = vld [vmem:[#allocation11 + $0x20] sm:$0xf]
    %v969 = vld [vmem:[#allocation11 + $0x24] sm:$0xf]
    %v970 = vld [vmem:[#allocation11 + $0x28] sm:$0xf]
    %v971 = vld [vmem:[#allocation11 + $0x2c] sm:$0xf]
    %v972 = vld [vmem:[#allocation11 + $0x30] sm:$0xf]
    %v973 = vld [vmem:[#allocation11 + $0x34] sm:$0xf]
    %v974 = vld [vmem:[#allocation11 + $0x38] sm:$0xf]
    %v975 = vld [vmem:[#allocation11 + $0x3c] sm:$0xf]
    %v976 = vld [vmem:[%s7] sm:$0x1]
    %v978 = vlaneseq
    %v979 = vshrl.u32 %v978, 7
    %v980 = vsub.s32 0, %v979
    %v981 = vrot.slane %v976, %v980
    %v999 = vunpack.c.l.b16 %v960
    %v1000 = vunpack.c.l.b16 %v961
    %v1001 = vunpack.c.l.b16 %v962
    %v1002 = vunpack.c.l.b16 %v963
    %v1003 = vunpack.c.l.b16 %v964
    %v1004 = vunpack.c.l.b16 %v965
    %v1005 = vunpack.c.l.b16 %v966
    %v1006 = vunpack.c.l.b16 %v967
    %v1007 = vunpack.c.l.b16 %v968
    %v1008 = vunpack.c.l.b16 %v969
    %v1009 = vunpack.c.l.b16 %v970
    %v1010 = vunpack.c.l.b16 %v971
    %v1011 = vunpack.c.l.b16 %v972
    %v1012 = vunpack.c.l.b16 %v973
    %v1013 = vunpack.c.l.b16 %v974
    %v1014 = vunpack.c.l.b16 %v975
    %v1015 = vpack.c.b16 %v1000, %v999
    %v1016 = vpack.c.b16 %v1002, %v1001
    %v1017 = vpack.c.b16 %v1004, %v1003
    %v1018 = vpack.c.b16 %v1006, %v1005
    %v1019 = vpack.c.b16 %v1008, %v1007
    %v1020 = vpack.c.b16 %v1010, %v1009
    %v1021 = vpack.c.b16 %v1012, %v1011
    %v1022 = vpack.c.b16 %v1014, %v1013
    %1031 = vmatprep.subr.bf16.mxu0 0
    %1032 = vmatpush1.bf16.msra.mxu0 %v1015
    %1033 = vmatprep.subr.bf16.mxu0 0
    %1034 = vmatpush1.bf16.msra.mxu0 %v1016
    %1035 = vmatprep.subr.bf16.mxu0 0
    %1036 = vmatpush1.bf16.msra.mxu0 %v1017
    %1037 = vmatprep.subr.bf16.mxu0 0
    %1038 = vmatpush1.bf16.msra.mxu0 %v1018
    %1039 = vmatprep.subr.bf16.mxu0 0
    %1040 = vmatpush1.bf16.msra.mxu0 %v1019
    %1041 = vmatprep.subr.bf16.mxu0 0
    %1042 = vmatpush1.bf16.msra.mxu0 %v1020
    %1043 = vmatprep.subr.bf16.mxu0 0
    %1044 = vmatpush1.bf16.msra.mxu0 %v1021
    %1045 = vmatprep.subr.bf16.mxu0 0
    %1046 = vmatpush1.bf16.msra.mxu0 %v1022
    %1047 = vmatprep.subr.bf16.mxu0 0
    %1048 = vmatpush1.bf16.msra.mxu0 0
    %1049 = vmatprep.subr.bf16.mxu0 0
    %1050 = vmatpush1.bf16.msra.mxu0 0
    %1051 = vmatprep.subr.bf16.mxu0 0
    %1052 = vmatpush1.bf16.msra.mxu0 0
    %1053 = vmatprep.subr.bf16.mxu0 0
    %1054 = vmatpush1.bf16.msra.mxu0 0
    %1055 = vmatprep.subr.bf16.mxu0 0
    %1056 = vmatpush1.bf16.msra.mxu0 0
    %1057 = vmatprep.subr.bf16.mxu0 0
    %1058 = vmatpush1.bf16.msra.mxu0 0
    %1059 = vmatprep.subr.bf16.mxu0 0
    %1060 = vmatpush1.bf16.msra.mxu0 0
    %1061 = vmatprep.subr.bf16.mxu0 0
    %1062 = vmatpush1.bf16.msra.mxu0 0
    %1063 = vmatprep.mubr.bf16.mxu0 0
    %1064 = vmatmul.mubr.bf16.gmra.mrb[0].mxu0 %v959
    %v1065 = vpop.f32.mrb[0].mxu0
    %v1066 = vadd.f32 %v981, %v1065
    %v1067 = vpop.f32.mrb[0].mxu0
    %v1068 = vpop.f32.mrb[0].mxu0
    %v1069 = vadd.f32 %v981, %v1068
    %v1070 = vpop.f32.mrb[0].mxu0
    %1071 = vdwg.mxu0
    %v1072 = vadd.f32 %v1066, %v220
    %v1073 = vadd.f32 %v1069, %v221
    %v1074 = vld [vmem:[%s8] sm:$0x1]
    %v1075 = vld [vmem:[%s9] sm:$0x1]
    %1076 = vadd.xlane.f32.xlu0 %v1072
    %v1077 = vpop.xlane.xlu0 %1076
    %1078 = vadd.xlane.f32.xlu0 %v1073
    %v1079 = vpop.xlane.xlu0 %1078
    %v1080 = vmul.f32 %v1077, %v187
    %v1081 = vmul.f32 %v1079, %v187
    %v1082 = vsub.f32 %v1072, %v1080
    %v1083 = vsub.f32 %v1073, %v1081
    %v1084 = vmul.f32 %v1082, %v1082
    %v1085 = vmul.f32 %v1083, %v1083
    %1086 = vadd.xlane.f32.xlu0 %v1084
    %v1087 = vpop.xlane.xlu0 %1086
    %1088 = vadd.xlane.f32.xlu0 %v1085
    %v1089 = vpop.xlane.xlu0 %1088
    %v1090 = vmul.f32 %v1087, %v187
    %v1091 = vmul.f32 %v1089, %v187
    %v1092 = vadd.f32 %v1090, 1e-05
    %v1093 = vadd.f32 %v1091, 1e-05
    %v1094 = vrsqrt.pop %v1092
    %v1095 = vrsqrt.pop %v1093
    %v1096 = vmul.f32 %v1082, %v1094
    %v1097 = vmul.f32 %v1083, %v1095
    %v1099 = vlaneseq
    %v1100 = vshrl.u32 %v1099, 7
    %v1101 = vsub.s32 0, %v1100
    %v1102 = vrot.slane %v1074, %v1101
    %v1104 = vmul.f32 %v1096, %v1102
    %v1105 = vmul.f32 %v1097, %v1102
    %v1107 = vlaneseq
    %v1108 = vshrl.u32 %v1107, 7
    %v1109 = vsub.s32 0, %v1108
    %v1110 = vrot.slane %v1075, %v1109
    %v1112 = vadd.f32 %v1104, %v1110
    %v1113 = vadd.f32 %v1105, %v1110
    %v1114 = vpack.c.bf16 %v1113, %v1112
    %v1115 = vld [vmem:[#allocation13] sm:$0xff]
    %v1116 = vld [vmem:[#allocation13 + $0x8] sm:$0xff]
    %v1117 = vld [vmem:[#allocation13 + $0x10] sm:$0xff]
    %v1118 = vld [vmem:[#allocation13 + $0x18] sm:$0xff]
    %v1119 = vld [vmem:[#allocation13 + $0x20] sm:$0xff]
    %v1120 = vld [vmem:[#allocation13 + $0x28] sm:$0xff]
    %v1121 = vld [vmem:[#allocation13 + $0x30] sm:$0xff]
    %v1122 = vld [vmem:[#allocation13 + $0x38] sm:$0xff]
    %v1123 = vld [vmem:[#allocation13 + $0x40] sm:$0xff]
    %v1124 = vld [vmem:[#allocation13 + $0x48] sm:$0xff]
    %v1125 = vld [vmem:[#allocation13 + $0x50] sm:$0xff]
    %v1126 = vld [vmem:[#allocation13 + $0x58] sm:$0xff]
    %v1127 = vld [vmem:[#allocation13 + $0x60] sm:$0xff]
    %v1128 = vld [vmem:[#allocation13 + $0x68] sm:$0xff]
    %v1129 = vld [vmem:[#allocation13 + $0x70] sm:$0xff]
    %v1130 = vld [vmem:[#allocation13 + $0x78] sm:$0xff]
    %v1131 = vld [vmem:[%s11] sm:$0x3]
    %v1133 = vlaneseq
    %v1134 = vshrl.u32 %v1133, 7
    %v1135 = vsub.s32 0, %v1134
    %v1136 = vrot.slane %v1131, %v1135
    %v1137 = vlaneseq
    %v1138 = vshrl.u32 %v1137, 7
    %v1139 = vsub.s32 1, %v1138
    %v1140 = vrot.slane %v1131, %v1139
    %v1159 = vunpack.c.l.b16 %v1115
    %v1160 = vunpack.c.h.b16 %v1115
    %v1161 = vunpack.c.l.b16 %v1116
    %v1162 = vunpack.c.h.b16 %v1116
    %v1163 = vunpack.c.l.b16 %v1117
    %v1164 = vunpack.c.h.b16 %v1117
    %v1165 = vunpack.c.l.b16 %v1118
    %v1166 = vunpack.c.h.b16 %v1118
    %v1167 = vunpack.c.l.b16 %v1119
    %v1168 = vunpack.c.h.b16 %v1119
    %v1169 = vunpack.c.l.b16 %v1120
    %v1170 = vunpack.c.h.b16 %v1120
    %v1171 = vunpack.c.l.b16 %v1121
    %v1172 = vunpack.c.h.b16 %v1121
    %v1173 = vunpack.c.l.b16 %v1122
    %v1174 = vunpack.c.h.b16 %v1122
    %v1175 = vunpack.c.l.b16 %v1123
    %v1176 = vunpack.c.h.b16 %v1123
    %v1177 = vunpack.c.l.b16 %v1124
    %v1178 = vunpack.c.h.b16 %v1124
    %v1179 = vunpack.c.l.b16 %v1125
    %v1180 = vunpack.c.h.b16 %v1125
    %v1181 = vunpack.c.l.b16 %v1126
    %v1182 = vunpack.c.h.b16 %v1126
    %v1183 = vunpack.c.l.b16 %v1127
    %v1184 = vunpack.c.h.b16 %v1127
    %v1185 = vunpack.c.l.b16 %v1128
    %v1186 = vunpack.c.h.b16 %v1128
    %v1187 = vunpack.c.l.b16 %v1129
    %v1188 = vunpack.c.h.b16 %v1129
    %v1189 = vunpack.c.l.b16 %v1130
    %v1190 = vunpack.c.h.b16 %v1130
    %v1191 = vpack.c.b16 %v1161, %v1159
    %v1192 = vpack.c.b16 %v1162, %v1160
    %v1193 = vpack.c.b16 %v1165, %v1163
    %v1194 = vpack.c.b16 %v1166, %v1164
    %v1195 = vpack.c.b16 %v1169, %v1167
    %v1196 = vpack.c.b16 %v1170, %v1168
    %v1197 = vpack.c.b16 %v1173, %v1171
    %v1198 = vpack.c.b16 %v1174, %v1172
    %v1199 = vpack.c.b16 %v1177, %v1175
    %v1200 = vpack.c.b16 %v1178, %v1176
    %v1201 = vpack.c.b16 %v1181, %v1179
    %v1202 = vpack.c.b16 %v1182, %v1180
    %v1203 = vpack.c.b16 %v1185, %v1183
    %v1204 = vpack.c.b16 %v1186, %v1184
    %v1205 = vpack.c.b16 %v1189, %v1187
    %v1206 = vpack.c.b16 %v1190, %v1188
    %1223 = vmatprep.subr.bf16.mxu0 %v1192
    %1224 = vmatpush1.bf16.msra.mxu0 %v1191
    %1225 = vmatprep.subr.bf16.mxu0 %v1194
    %1226 = vmatpush1.bf16.msra.mxu0 %v1193
    %1227 = vmatprep.subr.bf16.mxu0 %v1196
    %1228 = vmatpush1.bf16.msra.mxu0 %v1195
    %1229 = vmatprep.subr.bf16.mxu0 %v1198
    %1230 = vmatpush1.bf16.msra.mxu0 %v1197
    %1231 = vmatprep.subr.bf16.mxu0 %v1200
    %1232 = vmatpush1.bf16.msra.mxu0 %v1199
    %1233 = vmatprep.subr.bf16.mxu0 %v1202
    %1234 = vmatpush1.bf16.msra.mxu0 %v1201
    %1235 = vmatprep.subr.bf16.mxu0 %v1204
    %1236 = vmatpush1.bf16.msra.mxu0 %v1203
    %1237 = vmatprep.subr.bf16.mxu0 %v1206
    %1238 = vmatpush1.bf16.msra.mxu0 %v1205
    %1239 = vmatprep.subr.bf16.mxu0 0
    %1240 = vmatpush1.bf16.msra.mxu0 0
    %1241 = vmatprep.subr.bf16.mxu0 0
    %1242 = vmatpush1.bf16.msra.mxu0 0
    %1243 = vmatprep.subr.bf16.mxu0 0
    %1244 = vmatpush1.bf16.msra.mxu0 0
    %1245 = vmatprep.subr.bf16.mxu0 0
    %1246 = vmatpush1.bf16.msra.mxu0 0
    %1247 = vmatprep.subr.bf16.mxu0 0
    %1248 = vmatpush1.bf16.msra.mxu0 0
    %1249 = vmatprep.subr.bf16.mxu0 0
    %1250 = vmatpush1.bf16.msra.mxu0 0
    %1251 = vmatprep.subr.bf16.mxu0 0
    %1252 = vmatpush1.bf16.msra.mxu0 0
    %1253 = vmatprep.subr.bf16.mxu0 0
    %1254 = vmatpush1.bf16.msra.mxu0 0
    %1255 = vmatprep.mubr.bf16.mxu0 0
    %1256 = vmatmul.mubr.bf16.gmra.mrb[0].mxu0 %v1114
    %v1257 = vpop.f32.mrb[0].mxu0
    %v1258 = vadd.f32 %v1136, %v1257
    %v1259 = vpop.f32.mrb[0].mxu0
    %v1260 = vadd.f32 %v1140, %v1259
    %v1261 = vpop.f32.mrb[0].mxu0
    %v1262 = vadd.f32 %v1136, %v1261
    %v1263 = vpop.f32.mrb[0].mxu0
    %v1264 = vadd.f32 %v1140, %v1263
    %1265 = vdwg.mxu0
    %v1266 = vmul.f32 %v1258, 0.5
    %v1267 = vmul.f32 %v1260, 0.5
    %v1268 = vmul.f32 %v1262, 0.5
    %v1269 = vmul.f32 %v1264, 0.5
    %v1270 = vmul.f32 %v1258, 0.70710677
    %v1271 = vmul.f32 %v1260, 0.70710677
    %v1272 = vmul.f32 %v1262, 0.70710677
    %v1273 = vmul.f32 %v1264, 0.70710677
    %vm1274 = vcmp.ge.f32.partialorder %v1270, 0.0
    %vm1275 = vcmp.ge.f32.partialorder %v1271, 0.0
    %vm1276 = vcmp.ge.f32.partialorder %v1272, 0.0
    %vm1277 = vcmp.ge.f32.partialorder %v1273, 0.0
    %v1278 = vsel %vm1274, 1.0, -1.0
    %v1279 = vsel %vm1275, 1.0, -1.0
    %v1280 = vsel %vm1276, 1.0, -1.0
    %v1281 = vsel %vm1277, 1.0, -1.0
    %v1282 = vand.u32 2147483647, %v1270
    %v1283 = vand.u32 2147483647, %v1271
    %v1284 = vand.u32 2147483647, %v1272
    %v1285 = vand.u32 2147483647, %v1273
    %v1286 = vmul.f32 %v1282, 0.3275911
    %v1287 = vmul.f32 %v1283, 0.3275911
    %v1288 = vmul.f32 %v1284, 0.3275911
    %v1289 = vmul.f32 %v1285, 0.3275911
    %v1290 = vadd.f32 %v1286, 1.0
    %v1291 = vadd.f32 %v1287, 1.0
    %v1292 = vadd.f32 %v1288, 1.0
    %v1293 = vadd.f32 %v1289, 1.0
    %v1294 = vrcp.pop %v1290
    %v1295 = vrcp.pop %v1291
    %v1296 = vrcp.pop %v1292
    %v1297 = vrcp.pop %v1293
    %v1298 = vmul.f32 %v1294, 1.0614054
    %v1299 = vmul.f32 %v1295, 1.0614054
    %v1300 = vmul.f32 %v1296, 1.0614054
    %v1301 = vmul.f32 %v1297, 1.0614054
    %v1302 = vadd.f32 %v1298, -1.4531521
    %v1303 = vadd.f32 %v1299, -1.4531521
    %v1304 = vadd.f32 %v1300, -1.4531521
    %v1305 = vadd.f32 %v1301, -1.4531521
    %v1306 = vmul.f32 %v1302, %v1294
    %v1307 = vmul.f32 %v1303, %v1295
    %v1308 = vmul.f32 %v1304, %v1296
    %v1309 = vmul.f32 %v1305, %v1297
    %v1310 = vadd.f32 %v1306, 1.4214138
    %v1311 = vadd.f32 %v1307, 1.4214138
    %v1312 = vadd.f32 %v1308, 1.4214138
    %v1313 = vadd.f32 %v1309, 1.4214138
    %v1314 = vmul.f32 %v1310, %v1294
    %v1315 = vmul.f32 %v1311, %v1295
    %v1316 = vmul.f32 %v1312, %v1296
    %v1317 = vmul.f32 %v1313, %v1297
    %v1318 = vadd.f32 %v1314, -0.28449672
    %v1319 = vadd.f32 %v1315, -0.28449672
    %v1320 = vadd.f32 %v1316, -0.28449672
    %v1321 = vadd.f32 %v1317, -0.28449672
    %v1322 = vmul.f32 %v1318, %v1294
    %v1323 = vmul.f32 %v1319, %v1295
    %v1324 = vmul.f32 %v1320, %v1296
    %v1325 = vmul.f32 %v1321, %v1297
    %v1326 = vadd.f32 %v1322, 0.2548296
    %v1327 = vadd.f32 %v1323, 0.2548296
    %v1328 = vadd.f32 %v1324, 0.2548296
    %v1329 = vadd.f32 %v1325, 0.2548296
    %v1330 = vmul.f32 %v1326, %v1294
    %v1331 = vmul.f32 %v1327, %v1295
    %v1332 = vmul.f32 %v1328, %v1296
    %v1333 = vmul.f32 %v1329, %v1297
    %v1334 = vsub.f32 0.0, %v1282
    %v1335 = vsub.f32 0.0, %v1283
    %v1336 = vsub.f32 0.0, %v1284
    %v1337 = vsub.f32 0.0, %v1285
    %v1338 = vmul.f32 %v1334, %v1282
    %v1339 = vmul.f32 %v1335, %v1283
    %v1340 = vmul.f32 %v1336, %v1284
    %v1341 = vmul.f32 %v1337, %v1285
    %v1342 = vmul.f32 %v1338, 1.442695
    %v1343 = vpow.pop %v1342
    %v1344 = vmul.f32 %v1339, 1.442695
    %v1345 = vpow.pop %v1344
    %v1346 = vmul.f32 %v1340, 1.442695
    %v1347 = vpow.pop %v1346
    %v1348 = vmul.f32 %v1341, 1.442695
    %v1349 = vpow.pop %v1348
    %v1350 = vmul.f32 %v1330, %v1343
    %v1351 = vmul.f32 %v1331, %v1345
    %v1352 = vmul.f32 %v1332, %v1347
    %v1353 = vmul.f32 %v1333, %v1349
    %v1354 = vsub.f32 1.0, %v1350
    %v1355 = vsub.f32 1.0, %v1351
    %v1356 = vsub.f32 1.0, %v1352
    %v1357 = vsub.f32 1.0, %v1353
    %v1358 = vmul.f32 %v1278, %v1354
    %v1359 = vmul.f32 %v1279, %v1355
    %v1360 = vmul.f32 %v1280, %v1356
    %v1361 = vmul.f32 %v1281, %v1357
    %v1362 = vadd.f32 %v1358, 1.0
    %v1363 = vadd.f32 %v1359, 1.0
    %v1364 = vadd.f32 %v1360, 1.0
    %v1365 = vadd.f32 %v1361, 1.0
    %v1366 = vmul.f32 %v1266, %v1362
    %v1367 = vmul.f32 %v1267, %v1363
    %v1368 = vmul.f32 %v1268, %v1364
    %v1369 = vmul.f32 %v1269, %v1365
    %v1370 = vpack.c.bf16 %v1368, %v1366
    %v1371 = vpack.c.bf16 %v1369, %v1367
    %v1372 = vld [vmem:[#allocation14] sm:$0xf]
    %v1373 = vld [vmem:[#allocation14 + $0x4] sm:$0xf]
    %v1374 = vld [vmem:[#allocation14 + $0x8] sm:$0xf]
    %v1375 = vld [vmem:[#allocation14 + $0xc] sm:$0xf]
    %v1376 = vld [vmem:[#allocation14 + $0x10] sm:$0xf]
    %v1377 = vld [vmem:[#allocation14 + $0x14] sm:$0xf]
    %v1378 = vld [vmem:[#allocation14 + $0x18] sm:$0xf]
    %v1379 = vld [vmem:[#allocation14 + $0x1c] sm:$0xf]
    %v1380 = vld [vmem:[#allocation14 + $0x20] sm:$0xf]
    %v1381 = vld [vmem:[#allocation14 + $0x24] sm:$0xf]
    %v1382 = vld [vmem:[#allocation14 + $0x28] sm:$0xf]
    %v1383 = vld [vmem:[#allocation14 + $0x2c] sm:$0xf]
    %v1384 = vld [vmem:[#allocation14 + $0x30] sm:$0xf]
    %v1385 = vld [vmem:[#allocation14 + $0x34] sm:$0xf]
    %v1386 = vld [vmem:[#allocation14 + $0x38] sm:$0xf]
    %v1387 = vld [vmem:[#allocation14 + $0x3c] sm:$0xf]
    %v1388 = vld [vmem:[#allocation14 + $0x40] sm:$0xf]
    %v1389 = vld [vmem:[#allocation14 + $0x44] sm:$0xf]
    %v1390 = vld [vmem:[#allocation14 + $0x48] sm:$0xf]
    %v1391 = vld [vmem:[#allocation14 + $0x4c] sm:$0xf]
    %v1392 = vld [vmem:[#allocation14 + $0x50] sm:$0xf]
    %v1393 = vld [vmem:[#allocation14 + $0x54] sm:$0xf]
    %v1394 = vld [vmem:[#allocation14 + $0x58] sm:$0xf]
    %v1395 = vld [vmem:[#allocation14 + $0x5c] sm:$0xf]
    %v1396 = vld [vmem:[#allocation14 + $0x60] sm:$0xf]
    %v1397 = vld [vmem:[#allocation14 + $0x64] sm:$0xf]
    %v1398 = vld [vmem:[#allocation14 + $0x68] sm:$0xf]
    %v1399 = vld [vmem:[#allocation14 + $0x6c] sm:$0xf]
    %v1400 = vld [vmem:[#allocation14 + $0x70] sm:$0xf]
    %v1401 = vld [vmem:[#allocation14 + $0x74] sm:$0xf]
    %v1402 = vld [vmem:[#allocation14 + $0x78] sm:$0xf]
    %v1403 = vld [vmem:[#allocation14 + $0x7c] sm:$0xf]
    %v1404 = vld [vmem:[%s13] sm:$0x1]
    %v1406 = vlaneseq
    %v1407 = vshrl.u32 %v1406, 7
    %v1408 = vsub.s32 0, %v1407
    %v1409 = vrot.slane %v1404, %v1408
    %v1443 = vunpack.c.l.b16 %v1372
    %v1444 = vunpack.c.l.b16 %v1373
    %v1445 = vunpack.c.l.b16 %v1374
    %v1446 = vunpack.c.l.b16 %v1375
    %v1447 = vunpack.c.l.b16 %v1376
    %v1448 = vunpack.c.l.b16 %v1377
    %v1449 = vunpack.c.l.b16 %v1378
    %v1450 = vunpack.c.l.b16 %v1379
    %v1451 = vunpack.c.l.b16 %v1380
    %v1452 = vunpack.c.l.b16 %v1381
    %v1453 = vunpack.c.l.b16 %v1382
    %v1454 = vunpack.c.l.b16 %v1383
    %v1455 = vunpack.c.l.b16 %v1384
    %v1456 = vunpack.c.l.b16 %v1385
    %v1457 = vunpack.c.l.b16 %v1386
    %v1458 = vunpack.c.l.b16 %v1387
    %v1459 = vunpack.c.l.b16 %v1388
    %v1460 = vunpack.c.l.b16 %v1389
    %v1461 = vunpack.c.l.b16 %v1390
    %v1462 = vunpack.c.l.b16 %v1391
    %v1463 = vunpack.c.l.b16 %v1392
    %v1464 = vunpack.c.l.b16 %v1393
    %v1465 = vunpack.c.l.b16 %v1394
    %v1466 = vunpack.c.l.b16 %v1395
    %v1467 = vunpack.c.l.b16 %v1396
    %v1468 = vunpack.c.l.b16 %v1397
    %v1469 = vunpack.c.l.b16 %v1398
    %v1470 = vunpack.c.l.b16 %v1399
    %v1471 = vunpack.c.l.b16 %v1400
    %v1472 = vunpack.c.l.b16 %v1401
    %v1473 = vunpack.c.l.b16 %v1402
    %v1474 = vunpack.c.l.b16 %v1403
    %v1475 = vpack.c.b16 %v1444, %v1443
    %v1476 = vpack.c.b16 %v1446, %v1445
    %v1477 = vpack.c.b16 %v1448, %v1447
    %v1478 = vpack.c.b16 %v1450, %v1449
    %v1479 = vpack.c.b16 %v1452, %v1451
    %v1480 = vpack.c.b16 %v1454, %v1453
    %v1481 = vpack.c.b16 %v1456, %v1455
    %v1482 = vpack.c.b16 %v1458, %v1457
    %v1483 = vpack.c.b16 %v1460, %v1459
    %v1484 = vpack.c.b16 %v1462, %v1461
    %v1485 = vpack.c.b16 %v1464, %v1463
    %v1486 = vpack.c.b16 %v1466, %v1465
    %v1487 = vpack.c.b16 %v1468, %v1467
    %v1488 = vpack.c.b16 %v1470, %v1469
    %v1489 = vpack.c.b16 %v1472, %v1471
    %v1490 = vpack.c.b16 %v1474, %v1473
    %1507 = vmatprep.subr.bf16.mxu0 0
    %1508 = vmatpush1.bf16.msra.mxu0 %v1475
    %1509 = vmatprep.subr.bf16.mxu0 0
    %1510 = vmatpush1.bf16.msra.mxu0 %v1476
    %1511 = vmatprep.subr.bf16.mxu0 0
    %1512 = vmatpush1.bf16.msra.mxu0 %v1477
    %1513 = vmatprep.subr.bf16.mxu0 0
    %1514 = vmatpush1.bf16.msra.mxu0 %v1478
    %1515 = vmatprep.subr.bf16.mxu0 0
    %1516 = vmatpush1.bf16.msra.mxu0 %v1479
    %1517 = vmatprep.subr.bf16.mxu0 0
    %1518 = vmatpush1.bf16.msra.mxu0 %v1480
    %1519 = vmatprep.subr.bf16.mxu0 0
    %1520 = vmatpush1.bf16.msra.mxu0 %v1481
    %1521 = vmatprep.subr.bf16.mxu0 0
    %1522 = vmatpush1.bf16.msra.mxu0 %v1482
    %1523 = vmatprep.subr.bf16.mxu0 0
    %1524 = vmatpush1.bf16.msra.mxu0 %v1483
    %1525 = vmatprep.subr.bf16.mxu0 0
    %1526 = vmatpush1.bf16.msra.mxu0 %v1484
    %1527 = vmatprep.subr.bf16.mxu0 0
    %1528 = vmatpush1.bf16.msra.mxu0 %v1485
    %1529 = vmatprep.subr.bf16.mxu0 0
    %1530 = vmatpush1.bf16.msra.mxu0 %v1486
    %1531 = vmatprep.subr.bf16.mxu0 0
    %1532 = vmatpush1.bf16.msra.mxu0 %v1487
    %1533 = vmatprep.subr.bf16.mxu0 0
    %1534 = vmatpush1.bf16.msra.mxu0 %v1488
    %1535 = vmatprep.subr.bf16.mxu0 0
    %1536 = vmatpush1.bf16.msra.mxu0 %v1489
    %1537 = vmatprep.subr.bf16.mxu0 0
    %1538 = vmatpush1.bf16.msra.mxu0 %v1490
    %1539 = vmatprep.mubr.bf16.mxu0 %v1371
    %1540 = vmatmul.mubr.bf16.gmra.mrb[0].mxu0 %v1370
    %v1541 = vpop.f32.mrb[0].mxu0
    %v1542 = vadd.f32 %v1409, %v1541
    %v1543 = vpop.f32.mrb[0].mxu0
    %v1544 = vpop.f32.mrb[0].mxu0
    %v1545 = vadd.f32 %v1409, %v1544
    %v1546 = vpop.f32.mrb[0].mxu0
    %1547 = vdwg.mxu0
    %v1548 = vadd.f32 %v1542, %v1112
    %v1549 = vadd.f32 %v1545, %v1113
    %v1550 = vld [vmem:[%s14] sm:$0x1]
    %v1551 = vld [vmem:[%s15] sm:$0x1]
    %1552 = vadd.xlane.f32.xlu0 %v1548
    %v1553 = vpop.xlane.xlu0 %1552
    %1554 = vadd.xlane.f32.xlu0 %v1549
    %v1555 = vpop.xlane.xlu0 %1554
    %v1556 = vmul.f32 %v1553, %v187
    %v1557 = vmul.f32 %v1555, %v187
    %v1558 = vsub.f32 %v1548, %v1556
    %v1559 = vsub.f32 %v1549, %v1557
    %v1560 = vmul.f32 %v1558, %v1558
    %v1561 = vmul.f32 %v1559, %v1559
    %1562 = vadd.xlane.f32.xlu0 %v1560
    %v1563 = vpop.xlane.xlu0 %1562
    %1564 = vadd.xlane.f32.xlu0 %v1561
    %v1565 = vpop.xlane.xlu0 %1564
    %v1566 = vmul.f32 %v1563, %v187
    %v1567 = vmul.f32 %v1565, %v187
    %v1568 = vadd.f32 %v1566, 1e-05
    %v1569 = vadd.f32 %v1567, 1e-05
    %v1570 = vrsqrt.pop %v1568
    %v1571 = vrsqrt.pop %v1569
    %v1572 = vmul.f32 %v1558, %v1570
    %v1573 = vmul.f32 %v1559, %v1571
    %v1575 = vlaneseq
    %v1576 = vshrl.u32 %v1575, 7
    %v1577 = vsub.s32 0, %v1576
    %v1578 = vrot.slane %v1550, %v1577
    %v1580 = vmul.f32 %v1572, %v1578
    %v1581 = vmul.f32 %v1573, %v1578
    %v1583 = vlaneseq
    %v1584 = vshrl.u32 %v1583, 7
    %v1585 = vsub.s32 0, %v1584
    %v1586 = vrot.slane %v1551, %v1585
    %v1588 = vadd.f32 %v1580, %v1586
    %v1589 = vadd.f32 %v1581, %v1586
    %v1590 = vpack.c.bf16 %v1589, %v1588
    %s1591 = scalar_lea.vmem [#allocation10], 192
    %v1592 = vld [vmem:[%s1591] sm:$0xff]
    %v1593 = vld [vmem:[%s1591 + $0x8] sm:$0xf]
    %v1594 = vld [vmem:[%s1591 + $0xc] sm:$0xff]
    %v1595 = vld [vmem:[%s1591 + $0x14] sm:$0xf]
    %v1596 = vld [vmem:[%s1591 + $0x18] sm:$0xff]
    %v1597 = vld [vmem:[%s1591 + $0x20] sm:$0xf]
    %v1598 = vld [vmem:[%s1591 + $0x24] sm:$0xff]
    %v1599 = vld [vmem:[%s1591 + $0x2c] sm:$0xf]
    %v1600 = vld [vmem:[%s1591 + $0x30] sm:$0xff]
    %v1601 = vld [vmem:[%s1591 + $0x38] sm:$0xf]
    %v1602 = vld [vmem:[%s1591 + $0x3c] sm:$0xff]
    %v1603 = vld [vmem:[%s1591 + $0x44] sm:$0xf]
    %v1604 = vld [vmem:[%s1591 + $0x48] sm:$0xff]
    %v1605 = vld [vmem:[%s1591 + $0x50] sm:$0xf]
    %v1606 = vld [vmem:[%s1591 + $0x54] sm:$0xff]
    %v1607 = vld [vmem:[%s1591 + $0x5c] sm:$0xf]
    %v1608 = vld [vmem:[%s1591 + $0x60] sm:$0xff]
    %v1609 = vld [vmem:[%s1591 + $0x68] sm:$0xf]
    %v1610 = vld [vmem:[%s1591 + $0x6c] sm:$0xff]
    %v1611 = vld [vmem:[%s1591 + $0x74] sm:$0xf]
    %v1612 = vld [vmem:[%s1591 + $0x78] sm:$0xff]
    %v1613 = vld [vmem:[%s1591 + $0x80] sm:$0xf]
    %v1614 = vld [vmem:[%s1591 + $0x84] sm:$0xff]
    %v1615 = vld [vmem:[%s1591 + $0x8c] sm:$0xf]
    %v1616 = vld [vmem:[%s1591 + $0x90] sm:$0xff]
    %v1617 = vld [vmem:[%s1591 + $0x98] sm:$0xf]
    %v1618 = vld [vmem:[%s1591 + $0x9c] sm:$0xff]
    %v1619 = vld [vmem:[%s1591 + $0xa4] sm:$0xf]
    %v1620 = vld [vmem:[%s1591 + $0xa8] sm:$0xff]
    %v1621 = vld [vmem:[%s1591 + $0xb0] sm:$0xf]
    %v1622 = vld [vmem:[%s1591 + $0xb4] sm:$0xff]
    %v1623 = vld [vmem:[%s1591 + $0xbc] sm:$0xf]
    %s1624 = scalar_lea.vmem %s5, 3
    %v1625 = vld [vmem:[%s1624] sm:$0x7]
    %v1627 = vlaneseq
    %v1628 = vshrl.u32 %v1627, 7
    %v1629 = vsub.s32 0, %v1628
    %v1630 = vrot.slane %v1625, %v1629
    %v1631 = vlaneseq
    %v1632 = vshrl.u32 %v1631, 7
    %v1633 = vsub.s32 1, %v1632
    %v1634 = vrot.slane %v1625, %v1633
    %v1635 = vlaneseq
    %v1636 = vshrl.u32 %v1635, 7
    %v1637 = vsub.s32 2, %v1636
    %v1638 = vrot.slane %v1625, %v1637
    %v1674 = vunpack.c.l.b16 %v1592
    %v1675 = vunpack.c.h.b16 %v1592
    %v1676 = vunpack.c.l.b16 %v1593
    %v1677 = vunpack.c.l.b16 %v1594
    %v1678 = vunpack.c.h.b16 %v1594
    %v1679 = vunpack.c.l.b16 %v1595
    %v1680 = vunpack.c.l.b16 %v1596
    %v1681 = vunpack.c.h.b16 %v1596
    %v1682 = vunpack.c.l.b16 %v1597
    %v1683 = vunpack.c.l.b16 %v1598
    %v1684 = vunpack.c.h.b16 %v1598
    %v1685 = vunpack.c.l.b16 %v1599
    %v1686 = vunpack.c.l.b16 %v1600
    %v1687 = vunpack.c.h.b16 %v1600
    %v1688 = vunpack.c.l.b16 %v1601
    %v1689 = vunpack.c.l.b16 %v1602
    %v1690 = vunpack.c.h.b16 %v1602
    %v1691 = vunpack.c.l.b16 %v1603
    %v1692 = vunpack.c.l.b16 %v1604
    %v1693 = vunpack.c.h.b16 %v1604
    %v1694 = vunpack.c.l.b16 %v1605
    %v1695 = vunpack.c.l.b16 %v1606
    %v1696 = vunpack.c.h.b16 %v1606
    %v1697 = vunpack.c.l.b16 %v1607
    %v1698 = vunpack.c.l.b16 %v1608
    %v1699 = vunpack.c.h.b16 %v1608
    %v1700 = vunpack.c.l.b16 %v1609
    %v1701 = vunpack.c.l.b16 %v1610
    %v1702 = vunpack.c.h.b16 %v1610
    %v1703 = vunpack.c.l.b16 %v1611
    %v1704 = vunpack.c.l.b16 %v1612
    %v1705 = vunpack.c.h.b16 %v1612
    %v1706 = vunpack.c.l.b16 %v1613
    %v1707 = vunpack.c.l.b16 %v1614
    %v1708 = vunpack.c.h.b16 %v1614
    %v1709 = vunpack.c.l.b16 %v1615
    %v1710 = vunpack.c.l.b16 %v1616
    %v1711 = vunpack.c.h.b16 %v1616
    %v1712 = vunpack.c.l.b16 %v1617
    %v1713 = vunpack.c.l.b16 %v1618
    %v1714 = vunpack.c.h.b16 %v1618
    %v1715 = vunpack.c.l.b16 %v1619
    %v1716 = vunpack.c.l.b16 %v1620
    %v1717 = vunpack.c.h.b16 %v1620
    %v1718 = vunpack.c.l.b16 %v1621
    %v1719 = vunpack.c.l.b16 %v1622
    %v1720 = vunpack.c.h.b16 %v1622
    %v1721 = vunpack.c.l.b16 %v1623
    %v1722 = vpack.c.b16 %v1677, %v1674
    %v1723 = vpack.c.b16 %v1678, %v1675
    %v1724 = vpack.c.b16 %v1679, %v1676
    %v1725 = vpack.c.b16 %v1683, %v1680
    %v1726 = vpack.c.b16 %v1684, %v1681
    %v1727 = vpack.c.b16 %v1685, %v1682
    %v1728 = vpack.c.b16 %v1689, %v1686
    %v1729 = vpack.c.b16 %v1690, %v1687
    %v1730 = vpack.c.b16 %v1691, %v1688
    %v1731 = vpack.c.b16 %v1695, %v1692
    %v1732 = vpack.c.b16 %v1696, %v1693
    %v1733 = vpack.c.b16 %v1697, %v1694
    %v1734 = vpack.c.b16 %v1701, %v1698
    %v1735 = vpack.c.b16 %v1702, %v1699
    %v1736 = vpack.c.b16 %v1703, %v1700
    %v1737 = vpack.c.b16 %v1707, %v1704
    %v1738 = vpack.c.b16 %v1708, %v1705
    %v1739 = vpack.c.b16 %v1709, %v1706
    %v1740 = vpack.c.b16 %v1713, %v1710
    %v1741 = vpack.c.b16 %v1714, %v1711
    %v1742 = vpack.c.b16 %v1715, %v1712
    %v1743 = vpack.c.b16 %v1719, %v1716
    %v1744 = vpack.c.b16 %v1720, %v1717
    %v1745 = vpack.c.b16 %v1721, %v1718
    %1770 = vmatprep.subr.bf16.mxu0 %v1723
    %1771 = vmatpush1.bf16.msra.mxu0 %v1722
    %1772 = vmatprep.subr.bf16.mxu0 %v1726
    %1773 = vmatpush1.bf16.msra.mxu0 %v1725
    %1774 = vmatprep.subr.bf16.mxu0 %v1729
    %1775 = vmatpush1.bf16.msra.mxu0 %v1728
    %1776 = vmatprep.subr.bf16.mxu0 %v1732
    %1777 = vmatpush1.bf16.msra.mxu0 %v1731
    %1778 = vmatprep.subr.bf16.mxu0 %v1735
    %1779 = vmatpush1.bf16.msra.mxu0 %v1734
    %1780 = vmatprep.subr.bf16.mxu0 %v1738
    %1781 = vmatpush1.bf16.msra.mxu0 %v1737
    %1782 = vmatprep.subr.bf16.mxu0 %v1741
    %1783 = vmatpush1.bf16.msra.mxu0 %v1740
    %1784 = vmatprep.subr.bf16.mxu0 %v1744
    %1785 = vmatpush1.bf16.msra.mxu0 %v1743
    %1786 = vmatprep.subr.bf16.mxu0 0
    %1787 = vmatpush1.bf16.msra.mxu0 0
    %1788 = vmatprep.subr.bf16.mxu0 0
    %1789 = vmatpush1.bf16.msra.mxu0 0
    %1790 = vmatprep.subr.bf16.mxu0 0
    %1791 = vmatpush1.bf16.msra.mxu0 0
    %1792 = vmatprep.subr.bf16.mxu0 0
    %1793 = vmatpush1.bf16.msra.mxu0 0
    %1794 = vmatprep.subr.bf16.mxu0 0
    %1795 = vmatpush1.bf16.msra.mxu0 0
    %1796 = vmatprep.subr.bf16.mxu0 0
    %1797 = vmatpush1.bf16.msra.mxu0 0
    %1798 = vmatprep.subr.bf16.mxu0 0
    %1799 = vmatpush1.bf16.msra.mxu0 0
    %1800 = vmatprep.subr.bf16.mxu0 0
    %1801 = vmatpush1.bf16.msra.mxu0 0
    %1802 = vmatprep.mubr.bf16.mxu0 0
    %1803 = vmatmul.mubr.bf16.gmra.mrb[0].mxu0 %v1590
    %v1804 = vpop.f32.mrb[0].mxu0
    %v1805 = vadd.f32 %v1630, %v1804
    %v1806 = vpop.f32.mrb[0].mxu0
    %v1807 = vadd.f32 %v1634, %v1806
    %v1808 = vpop.f32.mrb[0].mxu0
    %v1809 = vadd.f32 %v1630, %v1808
    %v1810 = vpop.f32.mrb[0].mxu0
    %v1811 = vadd.f32 %v1634, %v1810
    %1812 = vdwg.mxu0
    %1813 = vmatprep.subr.bf16.mxu0 0
    %1814 = vmatpush1.bf16.msra.mxu0 %v1724
    %1815 = vmatprep.subr.bf16.mxu0 0
    %1816 = vmatpush1.bf16.msra.mxu0 %v1727
    %1817 = vmatprep.subr.bf16.mxu0 0
    %1818 = vmatpush1.bf16.msra.mxu0 %v1730
    %1819 = vmatprep.subr.bf16.mxu0 0
    %1820 = vmatpush1.bf16.msra.mxu0 %v1733
    %1821 = vmatprep.subr.bf16.mxu0 0
    %1822 = vmatpush1.bf16.msra.mxu0 %v1736
    %1823 = vmatprep.subr.bf16.mxu0 0
    %1824 = vmatpush1.bf16.msra.mxu0 %v1739
    %1825 = vmatprep.subr.bf16.mxu0 0
    %1826 = vmatpush1.bf16.msra.mxu0 %v1742
    %1827 = vmatprep.subr.bf16.mxu0 0
    %1828 = vmatpush1.bf16.msra.mxu0 %v1745
    %1829 = vmatprep.subr.bf16.mxu0 0
    %1830 = vmatpush1.bf16.msra.mxu0 0
    %1831 = vmatprep.subr.bf16.mxu0 0
    %1832 = vmatpush1.bf16.msra.mxu0 0
    %1833 = vmatprep.subr.bf16.mxu0 0
    %1834 = vmatpush1.bf16.msra.mxu0 0
    %1835 = vmatprep.subr.bf16.mxu0 0
    %1836 = vmatpush1.bf16.msra.mxu0 0
    %1837 = vmatprep.subr.bf16.mxu0 0
    %1838 = vmatpush1.bf16.msra.mxu0 0
    %1839 = vmatprep.subr.bf16.mxu0 0
    %1840 = vmatpush1.bf16.msra.mxu0 0
    %1841 = vmatprep.subr.bf16.mxu0 0
    %1842 = vmatpush1.bf16.msra.mxu0 0
    %1843 = vmatprep.subr.bf16.mxu0 0
    %1844 = vmatpush1.bf16.msra.mxu0 0
    %1845 = vmatprep.mubr.bf16.mxu0 0
    %1846 = vmatmul.mubr.bf16.gmra.mrb[0].mxu0 %v1590
    %v1847 = vpop.f32.mrb[0].mxu0
    %v1848 = vadd.f32 %v1638, %v1847
    %v1849 = vpop.f32.mrb[0].mxu0
    %v1850 = vpop.f32.mrb[0].mxu0
    %v1851 = vadd.f32 %v1638, %v1850
    %v1852 = vpop.f32.mrb[0].mxu0
    %1853 = vdwg.mxu0
    %v1854 = vpack.c.bf16 %v1805, %v1805
    %v1855 = vpack.c.bf16 %v1809, %v1809
    %v1856 = vpack.c.bf16 %v1807, %v1807
    %v1857 = vpack.c.bf16 %v1811, %v1811
    %v1858 = vpack.c.bf16 %v1848, %v1848
    %v1859 = vpack.c.bf16 %v1851, %v1851
    %v1861 = vsel %vm504, %v1854, 0
    %v1864 = vsel %vm504, %v1856, 0
    %1866 = vmatprep.subr.bf16.mxu0 0
    %1867 = vmatpush1.bf16.xpose.msra.mxu0 %v1864
    %1868 = vmatprep.subr.bf16.mxu0 0
    %1869 = vmatpush1.bf16.xpose.msra.mxu0 0
    %1870 = vmatprep.subr.bf16.mxu0 0
    %1871 = vmatpush1.bf16.xpose.msra.mxu0 0
    %1872 = vmatprep.subr.bf16.mxu0 0
    %1873 = vmatpush1.bf16.xpose.msra.mxu0 0
    %1874 = vmatprep.subr.bf16.mxu0 0
    %1875 = vmatpush1.bf16.xpose.msra.mxu0 0
    %1876 = vmatprep.subr.bf16.mxu0 0
    %1877 = vmatpush1.bf16.xpose.msra.mxu0 0
    %1878 = vmatprep.subr.bf16.mxu0 0
    %1879 = vmatpush1.bf16.xpose.msra.mxu0 0
    %1880 = vmatprep.subr.bf16.mxu0 0
    %1881 = vmatpush1.bf16.xpose.msra.mxu0 0
    %1882 = vmatprep.subr.bf16.mxu0 0
    %1883 = vmatpush1.bf16.xpose.msra.mxu0 0
    %1884 = vmatprep.subr.bf16.mxu0 0
    %1885 = vmatpush1.bf16.xpose.msra.mxu0 0
    %1886 = vmatprep.subr.bf16.mxu0 0
    %1887 = vmatpush1.bf16.xpose.msra.mxu0 0
    %1888 = vmatprep.subr.bf16.mxu0 0
    %1889 = vmatpush1.bf16.xpose.msra.mxu0 0
    %1890 = vmatprep.subr.bf16.mxu0 0
    %1891 = vmatpush1.bf16.xpose.msra.mxu0 0
    %1892 = vmatprep.subr.bf16.mxu0 0
    %1893 = vmatpush1.bf16.xpose.msra.mxu0 0
    %1894 = vmatprep.subr.bf16.mxu0 0
    %1895 = vmatpush1.bf16.xpose.msra.mxu0 0
    %1896 = vmatprep.subr.bf16.mxu0 0
    %1897 = vmatpush1.bf16.xpose.msra.mxu0 0
    %1898 = vmatprep.mubr.bf16.mxu0 0
    %1899 = vmatmul.mubr.bf16.gmra.mrb[0].mxu0 %v1861
    %v1900 = vpop.f32.mrb[0].mxu0
    %v1901 = vadd.f32 0.0, %v1900
    %v1902 = vpop.f32.mrb[0].mxu0
    %v1903 = vpop.f32.mrb[0].mxu0
    %v1904 = vpop.f32.mrb[0].mxu0
    %1905 = vdwg.mxu0
    %v1907 = vsel %vm504, %v1855, 0
    %v1910 = vsel %vm504, %v1857, 0
    %1912 = vmatprep.subr.bf16.mxu0 0
    %1913 = vmatpush1.bf16.xpose.msra.mxu0 %v1910
    %1914 = vmatprep.subr.bf16.mxu0 0
    %1915 = vmatpush1.bf16.xpose.msra.mxu0 0
    %1916 = vmatprep.subr.bf16.mxu0 0
    %1917 = vmatpush1.bf16.xpose.msra.mxu0 0
    %1918 = vmatprep.subr.bf16.mxu0 0
    %1919 = vmatpush1.bf16.xpose.msra.mxu0 0
    %1920 = vmatprep.subr.bf16.mxu0 0
    %1921 = vmatpush1.bf16.xpose.msra.mxu0 0
    %1922 = vmatprep.subr.bf16.mxu0 0
    %1923 = vmatpush1.bf16.xpose.msra.mxu0 0
    %1924 = vmatprep.subr.bf16.mxu0 0
    %1925 = vmatpush1.bf16.xpose.msra.mxu0 0
    %1926 = vmatprep.subr.bf16.mxu0 0
    %1927 = vmatpush1.bf16.xpose.msra.mxu0 0
    %1928 = vmatprep.subr.bf16.mxu0 0
    %1929 = vmatpush1.bf16.xpose.msra.mxu0 0
    %1930 = vmatprep.subr.bf16.mxu0 0
    %1931 = vmatpush1.bf16.xpose.msra.mxu0 0
    %1932 = vmatprep.subr.bf16.mxu0 0
    %1933 = vmatpush1.bf16.xpose.msra.mxu0 0
    %1934 = vmatprep.subr.bf16.mxu0 0
    %1935 = vmatpush1.bf16.xpose.msra.mxu0 0
    %1936 = vmatprep.subr.bf16.mxu0 0
    %1937 = vmatpush1.bf16.xpose.msra.mxu0 0
    %1938 = vmatprep.subr.bf16.mxu0 0
    %1939 = vmatpush1.bf16.xpose.msra.mxu0 0
    %1940 = vmatprep.subr.bf16.mxu0 0
    %1941 = vmatpush1.bf16.xpose.msra.mxu0 0
    %1942 = vmatprep.subr.bf16.mxu0 0
    %1943 = vmatpush1.bf16.xpose.msra.mxu0 0
    %1944 = vmatprep.mubr.bf16.mxu0 0
    %1945 = vmatmul.mubr.bf16.gmra.mrb[0].mxu0 %v1907
    %v1946 = vpop.f32.mrb[0].mxu0
    %v1947 = vadd.f32 0.0, %v1946
    %v1948 = vpop.f32.mrb[0].mxu0
    %v1949 = vpop.f32.mrb[0].mxu0
    %v1950 = vpop.f32.mrb[0].mxu0
    %1951 = vdwg.mxu0
    %v1952 = vmul.f32 %v1901, 0.125
    %v1953 = vmul.f32 %v1947, 0.125
    %v1954 = vadd.f32 %v1952, %v229
    %v1955 = vadd.f32 %v1953, %v233
    %v1956 = vsel %vm601, %v1954, -inf
    %1957 = vmax.xlane.f32.xlu0 %v1956
    %v1958 = vpop.xlane.xlu0 %1957
    %v1959 = vsel %vm601, %v1955, -inf
    %1960 = vmax.xlane.f32.xlu0 %v1959
    %v1961 = vpop.xlane.xlu0 %1960
    %v1962 = vsub.f32 %v1954, %v1958
    %v1963 = vsub.f32 %v1955, %v1961
    %v1964 = vmul.f32 %v1962, 1.442695
    %v1965 = vpow.pop %v1964
    %v1966 = vmul.f32 %v1963, 1.442695
    %v1967 = vpow.pop %v1966
    %v1968 = vsel %vm601, %v1965, 0.0
    %1969 = vadd.xlane.f32.xlu0 %v1968
    %v1970 = vpop.xlane.xlu0 %1969
    %v1971 = vsel %vm601, %v1967, 0.0
    %1972 = vadd.xlane.f32.xlu0 %v1971
    %v1973 = vpop.xlane.xlu0 %1972
    %v1974 = vrcp.pop %v1970
    %v1975 = vrcp.pop %v1973
    %v1976 = vmul.f32 %v1965, %v1974
    %v1977 = vmul.f32 %v1967, %v1975
    %v1978 = vpack.c.bf16 %v1976, %v1976
    %v1979 = vpack.c.bf16 %v1977, %v1977
    %v1981 = vsel %vm601, %v1978, 0
    %v1984 = vsel %vm629, %v1858, 0
    %1986 = vmatprep.subr.bf16.mxu0 0
    %1987 = vmatpush1.bf16.msra.mxu0 %v1984
    %1988 = vmatprep.subr.bf16.mxu0 0
    %1989 = vmatpush1.bf16.msra.mxu0 0
    %1990 = vmatprep.subr.bf16.mxu0 0
    %1991 = vmatpush1.bf16.msra.mxu0 0
    %1992 = vmatprep.subr.bf16.mxu0 0
    %1993 = vmatpush1.bf16.msra.mxu0 0
    %1994 = vmatprep.subr.bf16.mxu0 0
    %1995 = vmatpush1.bf16.msra.mxu0 0
    %1996 = vmatprep.subr.bf16.mxu0 0
    %1997 = vmatpush1.bf16.msra.mxu0 0
    %1998 = vmatprep.subr.bf16.mxu0 0
    %1999 = vmatpush1.bf16.msra.mxu0 0
    %2000 = vmatprep.subr.bf16.mxu0 0
    %2001 = vmatpush1.bf16.msra.mxu0 0
    %2002 = vmatprep.subr.bf16.mxu0 0
    %2003 = vmatpush1.bf16.msra.mxu0 0
    %2004 = vmatprep.subr.bf16.mxu0 0
    %2005 = vmatpush1.bf16.msra.mxu0 0
    %2006 = vmatprep.subr.bf16.mxu0 0
    %2007 = vmatpush1.bf16.msra.mxu0 0
    %2008 = vmatprep.subr.bf16.mxu0 0
    %2009 = vmatpush1.bf16.msra.mxu0 0
    %2010 = vmatprep.subr.bf16.mxu0 0
    %2011 = vmatpush1.bf16.msra.mxu0 0
    %2012 = vmatprep.subr.bf16.mxu0 0
    %2013 = vmatpush1.bf16.msra.mxu0 0
    %2014 = vmatprep.subr.bf16.mxu0 0
    %2015 = vmatpush1.bf16.msra.mxu0 0
    %2016 = vmatprep.subr.bf16.mxu0 0
    %2017 = vmatpush1.bf16.msra.mxu0 0
    %2018 = vmatprep.mubr.bf16.mxu0 0
    %2019 = vmatmul.mubr.bf16.gmra.mrb[0].mxu0 %v1981
    %v2020 = vpop.f32.mrb[0].mxu0
    %v2021 = vadd.f32 0.0, %v2020
    %v2022 = vpop.f32.mrb[0].mxu0
    %v2023 = vpop.f32.mrb[0].mxu0
    %v2024 = vpop.f32.mrb[0].mxu0
    %2025 = vdwg.mxu0
    %v2027 = vsel %vm601, %v1979, 0
    %v2030 = vsel %vm629, %v1859, 0
    %2032 = vmatprep.subr.bf16.mxu0 0
    %2033 = vmatpush1.bf16.msra.mxu0 %v2030
    %2034 = vmatprep.subr.bf16.mxu0 0
    %2035 = vmatpush1.bf16.msra.mxu0 0
    %2036 = vmatprep.subr.bf16.mxu0 0
    %2037 = vmatpush1.bf16.msra.mxu0 0
    %2038 = vmatprep.subr.bf16.mxu0 0
    %2039 = vmatpush1.bf16.msra.mxu0 0
    %2040 = vmatprep.subr.bf16.mxu0 0
    %2041 = vmatpush1.bf16.msra.mxu0 0
    %2042 = vmatprep.subr.bf16.mxu0 0
    %2043 = vmatpush1.bf16.msra.mxu0 0
    %2044 = vmatprep.subr.bf16.mxu0 0
    %2045 = vmatpush1.bf16.msra.mxu0 0
    %2046 = vmatprep.subr.bf16.mxu0 0
    %2047 = vmatpush1.bf16.msra.mxu0 0
    %2048 = vmatprep.subr.bf16.mxu0 0
    %2049 = vmatpush1.bf16.msra.mxu0 0
    %2050 = vmatprep.subr.bf16.mxu0 0
    %2051 = vmatpush1.bf16.msra.mxu0 0
    %2052 = vmatprep.subr.bf16.mxu0 0
    %2053 = vmatpush1.bf16.msra.mxu0 0
    %2054 = vmatprep.subr.bf16.mxu0 0
    %2055 = vmatpush1.bf16.msra.mxu0 0
    %2056 = vmatprep.subr.bf16.mxu0 0
    %2057 = vmatpush1.bf16.msra.mxu0 0
    %2058 = vmatprep.subr.bf16.mxu0 0
    %2059 = vmatpush1.bf16.msra.mxu0 0
    %2060 = vmatprep.subr.bf16.mxu0 0
    %2061 = vmatpush1.bf16.msra.mxu0 0
    %2062 = vmatprep.subr.bf16.mxu0 0
    %2063 = vmatpush1.bf16.msra.mxu0 0
    %2064 = vmatprep.mubr.bf16.mxu0 0
    %2065 = vmatmul.mubr.bf16.gmra.mrb[0].mxu0 %v2027
    %v2066 = vpop.f32.mrb[0].mxu0
    %v2067 = vadd.f32 0.0, %v2066
    %v2068 = vpop.f32.mrb[0].mxu0
    %v2069 = vpop.f32.mrb[0].mxu0
    %v2070 = vpop.f32.mrb[0].mxu0
    %2071 = vdwg.mxu0
    %2073 = vrot.lane.b32.xlu0 %v1854, 64
    %v2074 = vpop.permute.xlu0 %2073
    %2076 = vrot.lane.b32.xlu0 %v1856, 64
    %v2077 = vpop.permute.xlu0 %2076
    %v2079 = vsel %vm504, %v2074, 0
    %v2082 = vsel %vm504, %v2077, 0
    %2084 = vmatprep.subr.bf16.mxu0 0
    %2085 = vmatpush1.bf16.xpose.msra.mxu0 %v2082
    %2086 = vmatprep.subr.bf16.mxu0 0
    %2087 = vmatpush1.bf16.xpose.msra.mxu0 0
    %2088 = vmatprep.subr.bf16.mxu0 0
    %2089 = vmatpush1.bf16.xpose.msra.mxu0 0
    %2090 = vmatprep.subr.bf16.mxu0 0
    %2091 = vmatpush1.bf16.xpose.msra.mxu0 0
    %2092 = vmatprep.subr.bf16.mxu0 0
    %2093 = vmatpush1.bf16.xpose.msra.mxu0 0
    %2094 = vmatprep.subr.bf16.mxu0 0
    %2095 = vmatpush1.bf16.xpose.msra.mxu0 0
    %2096 = vmatprep.subr.bf16.mxu0 0
    %2097 = vmatpush1.bf16.xpose.msra.mxu0 0
    %2098 = vmatprep.subr.bf16.mxu0 0
    %2099 = vmatpush1.bf16.xpose.msra.mxu0 0
    %2100 = vmatprep.subr.bf16.mxu0 0
    %2101 = vmatpush1.bf16.xpose.msra.mxu0 0
    %2102 = vmatprep.subr.bf16.mxu0 0
    %2103 = vmatpush1.bf16.xpose.msra.mxu0 0
    %2104 = vmatprep.subr.bf16.mxu0 0
    %2105 = vmatpush1.bf16.xpose.msra.mxu0 0
    %2106 = vmatprep.subr.bf16.mxu0 0
    %2107 = vmatpush1.bf16.xpose.msra.mxu0 0
    %2108 = vmatprep.subr.bf16.mxu0 0
    %2109 = vmatpush1.bf16.xpose.msra.mxu0 0
    %2110 = vmatprep.subr.bf16.mxu0 0
    %2111 = vmatpush1.bf16.xpose.msra.mxu0 0
    %2112 = vmatprep.subr.bf16.mxu0 0
    %2113 = vmatpush1.bf16.xpose.msra.mxu0 0
    %2114 = vmatprep.subr.bf16.mxu0 0
    %2115 = vmatpush1.bf16.xpose.msra.mxu0 0
    %2116 = vmatprep.mubr.bf16.mxu0 0
    %2117 = vmatmul.mubr.bf16.gmra.mrb[0].mxu0 %v2079
    %v2118 = vpop.f32.mrb[0].mxu0
    %v2119 = vadd.f32 0.0, %v2118
    %v2120 = vpop.f32.mrb[0].mxu0
    %v2121 = vpop.f32.mrb[0].mxu0
    %v2122 = vpop.f32.mrb[0].mxu0
    %2123 = vdwg.mxu0
    %2125 = vrot.lane.b32.xlu0 %v1855, 64
    %v2126 = vpop.permute.xlu0 %2125
    %2128 = vrot.lane.b32.xlu0 %v1857, 64
    %v2129 = vpop.permute.xlu0 %2128
    %v2131 = vsel %vm504, %v2126, 0
    %v2134 = vsel %vm504, %v2129, 0
    %2136 = vmatprep.subr.bf16.mxu0 0
    %2137 = vmatpush1.bf16.xpose.msra.mxu0 %v2134
    %2138 = vmatprep.subr.bf16.mxu0 0
    %2139 = vmatpush1.bf16.xpose.msra.mxu0 0
    %2140 = vmatprep.subr.bf16.mxu0 0
    %2141 = vmatpush1.bf16.xpose.msra.mxu0 0
    %2142 = vmatprep.subr.bf16.mxu0 0
    %2143 = vmatpush1.bf16.xpose.msra.mxu0 0
    %2144 = vmatprep.subr.bf16.mxu0 0
    %2145 = vmatpush1.bf16.xpose.msra.mxu0 0
    %2146 = vmatprep.subr.bf16.mxu0 0
    %2147 = vmatpush1.bf16.xpose.msra.mxu0 0
    %2148 = vmatprep.subr.bf16.mxu0 0
    %2149 = vmatpush1.bf16.xpose.msra.mxu0 0
    %2150 = vmatprep.subr.bf16.mxu0 0
    %2151 = vmatpush1.bf16.xpose.msra.mxu0 0
    %2152 = vmatprep.subr.bf16.mxu0 0
    %2153 = vmatpush1.bf16.xpose.msra.mxu0 0
    %2154 = vmatprep.subr.bf16.mxu0 0
    %2155 = vmatpush1.bf16.xpose.msra.mxu0 0
    %2156 = vmatprep.subr.bf16.mxu0 0
    %2157 = vmatpush1.bf16.xpose.msra.mxu0 0
    %2158 = vmatprep.subr.bf16.mxu0 0
    %2159 = vmatpush1.bf16.xpose.msra.mxu0 0
    %2160 = vmatprep.subr.bf16.mxu0 0
    %2161 = vmatpush1.bf16.xpose.msra.mxu0 0
    %2162 = vmatprep.subr.bf16.mxu0 0
    %2163 = vmatpush1.bf16.xpose.msra.mxu0 0
    %2164 = vmatprep.subr.bf16.mxu0 0
    %2165 = vmatpush1.bf16.xpose.msra.mxu0 0
    %2166 = vmatprep.subr.bf16.mxu0 0
    %2167 = vmatpush1.bf16.xpose.msra.mxu0 0
    %2168 = vmatprep.mubr.bf16.mxu0 0
    %2169 = vmatmul.mubr.bf16.gmra.mrb[0].mxu0 %v2131
    %v2170 = vpop.f32.mrb[0].mxu0
    %v2171 = vadd.f32 0.0, %v2170
    %v2172 = vpop.f32.mrb[0].mxu0
    %v2173 = vpop.f32.mrb[0].mxu0
    %v2174 = vpop.f32.mrb[0].mxu0
    %2175 = vdwg.mxu0
    %v2176 = vmul.f32 %v2119, 0.125
    %v2177 = vmul.f32 %v2171, 0.125
    %v2178 = vadd.f32 %v2176, %v229
    %v2179 = vadd.f32 %v2177, %v233
    %v2180 = vsel %vm601, %v2178, -inf
    %2181 = vmax.xlane.f32.xlu0 %v2180
    %v2182 = vpop.xlane.xlu0 %2181
    %v2183 = vsel %vm601, %v2179, -inf
    %2184 = vmax.xlane.f32.xlu0 %v2183
    %v2185 = vpop.xlane.xlu0 %2184
    %v2186 = vsub.f32 %v2178, %v2182
    %v2187 = vsub.f32 %v2179, %v2185
    %v2188 = vmul.f32 %v2186, 1.442695
    %v2189 = vpow.pop %v2188
    %v2190 = vmul.f32 %v2187, 1.442695
    %v2191 = vpow.pop %v2190
    %v2192 = vsel %vm601, %v2189, 0.0
    %2193 = vadd.xlane.f32.xlu0 %v2192
    %v2194 = vpop.xlane.xlu0 %2193
    %v2195 = vsel %vm601, %v2191, 0.0
    %2196 = vadd.xlane.f32.xlu0 %v2195
    %v2197 = vpop.xlane.xlu0 %2196
    %v2198 = vrcp.pop %v2194
    %v2199 = vrcp.pop %v2197
    %v2200 = vmul.f32 %v2189, %v2198
    %v2201 = vmul.f32 %v2191, %v2199
    %v2202 = vpack.c.bf16 %v2200, %v2200
    %v2203 = vpack.c.bf16 %v2201, %v2201
    %2205 = vrot.lane.b32.xlu0 %v1858, 64
    %v2206 = vpop.permute.xlu0 %2205
    %v2208 = vsel %vm601, %v2202, 0
    %v2211 = vsel %vm629, %v2206, 0
    %2213 = vmatprep.subr.bf16.mxu0 0
    %2214 = vmatpush1.bf16.msra.mxu0 %v2211
    %2215 = vmatprep.subr.bf16.mxu0 0
    %2216 = vmatpush1.bf16.msra.mxu0 0
    %2217 = vmatprep.subr.bf16.mxu0 0
    %2218 = vmatpush1.bf16.msra.mxu0 0
    %2219 = vmatprep.subr.bf16.mxu0 0
    %2220 = vmatpush1.bf16.msra.mxu0 0
    %2221 = vmatprep.subr.bf16.mxu0 0
    %2222 = vmatpush1.bf16.msra.mxu0 0
    %2223 = vmatprep.subr.bf16.mxu0 0
    %2224 = vmatpush1.bf16.msra.mxu0 0
    %2225 = vmatprep.subr.bf16.mxu0 0
    %2226 = vmatpush1.bf16.msra.mxu0 0
    %2227 = vmatprep.subr.bf16.mxu0 0
    %2228 = vmatpush1.bf16.msra.mxu0 0
    %2229 = vmatprep.subr.bf16.mxu0 0
    %2230 = vmatpush1.bf16.msra.mxu0 0
    %2231 = vmatprep.subr.bf16.mxu0 0
    %2232 = vmatpush1.bf16.msra.mxu0 0
    %2233 = vmatprep.subr.bf16.mxu0 0
    %2234 = vmatpush1.bf16.msra.mxu0 0
    %2235 = vmatprep.subr.bf16.mxu0 0
    %2236 = vmatpush1.bf16.msra.mxu0 0
    %2237 = vmatprep.subr.bf16.mxu0 0
    %2238 = vmatpush1.bf16.msra.mxu0 0
    %2239 = vmatprep.subr.bf16.mxu0 0
    %2240 = vmatpush1.bf16.msra.mxu0 0
    %2241 = vmatprep.subr.bf16.mxu0 0
    %2242 = vmatpush1.bf16.msra.mxu0 0
    %2243 = vmatprep.subr.bf16.mxu0 0
    %2244 = vmatpush1.bf16.msra.mxu0 0
    %2245 = vmatprep.mubr.bf16.mxu0 0
    %2246 = vmatmul.mubr.bf16.gmra.mrb[0].mxu0 %v2208
    %v2247 = vpop.f32.mrb[0].mxu0
    %v2248 = vadd.f32 0.0, %v2247
    %v2249 = vpop.f32.mrb[0].mxu0
    %v2250 = vpop.f32.mrb[0].mxu0
    %v2251 = vpop.f32.mrb[0].mxu0
    %2252 = vdwg.mxu0
    %2254 = vrot.lane.b32.xlu0 %v1859, 64
    %v2255 = vpop.permute.xlu0 %2254
    %v2257 = vsel %vm601, %v2203, 0
    %v2260 = vsel %vm629, %v2255, 0
    %2262 = vmatprep.subr.bf16.mxu0 0
    %2263 = vmatpush1.bf16.msra.mxu0 %v2260
    %2264 = vmatprep.subr.bf16.mxu0 0
    %2265 = vmatpush1.bf16.msra.mxu0 0
    %2266 = vmatprep.subr.bf16.mxu0 0
    %2267 = vmatpush1.bf16.msra.mxu0 0
    %2268 = vmatprep.subr.bf16.mxu0 0
    %2269 = vmatpush1.bf16.msra.mxu0 0
    %2270 = vmatprep.subr.bf16.mxu0 0
    %2271 = vmatpush1.bf16.msra.mxu0 0
    %2272 = vmatprep.subr.bf16.mxu0 0
    %2273 = vmatpush1.bf16.msra.mxu0 0
    %2274 = vmatprep.subr.bf16.mxu0 0
    %2275 = vmatpush1.bf16.msra.mxu0 0
    %2276 = vmatprep.subr.bf16.mxu0 0
    %2277 = vmatpush1.bf16.msra.mxu0 0
    %2278 = vmatprep.subr.bf16.mxu0 0
    %2279 = vmatpush1.bf16.msra.mxu0 0
    %2280 = vmatprep.subr.bf16.mxu0 0
    %2281 = vmatpush1.bf16.msra.mxu0 0
    %2282 = vmatprep.subr.bf16.mxu0 0
    %2283 = vmatpush1.bf16.msra.mxu0 0
    %2284 = vmatprep.subr.bf16.mxu0 0
    %2285 = vmatpush1.bf16.msra.mxu0 0
    %2286 = vmatprep.subr.bf16.mxu0 0
    %2287 = vmatpush1.bf16.msra.mxu0 0
    %2288 = vmatprep.subr.bf16.mxu0 0
    %2289 = vmatpush1.bf16.msra.mxu0 0
    %2290 = vmatprep.subr.bf16.mxu0 0
    %2291 = vmatpush1.bf16.msra.mxu0 0
    %2292 = vmatprep.subr.bf16.mxu0 0
    %2293 = vmatpush1.bf16.msra.mxu0 0
    %2294 = vmatprep.mubr.bf16.mxu0 0
    %2295 = vmatmul.mubr.bf16.gmra.mrb[0].mxu0 %v2257
    %v2296 = vpop.f32.mrb[0].mxu0
    %v2297 = vadd.f32 0.0, %v2296
    %v2298 = vpop.f32.mrb[0].mxu0
    %v2299 = vpop.f32.mrb[0].mxu0
    %v2300 = vpop.f32.mrb[0].mxu0
    %2301 = vdwg.mxu0
    %2304 = vrot.lane.b32.xlu0 %v2248, 64
    %v2305 = vpop.permute.xlu0 %2304
    %2306 = vrot.lane.b32.xlu0 %v2297, 64
    %v2307 = vpop.permute.xlu0 %2306
    %v2310 = vsel %vm504, %v2021, %v2305
    %v2311 = vsel %vm504, %v2067, %v2307
    %v2312 = vpack.c.bf16 %v2311, %v2310
    %s2313 = scalar_lea.vmem [#allocation11], 64
    %v2314 = vld [vmem:[%s2313] sm:$0xf]
    %v2315 = vld [vmem:[%s2313 + $0x4] sm:$0xf]
    %v2316 = vld [vmem:[%s2313 + $0x8] sm:$0xf]
    %v2317 = vld [vmem:[%s2313 + $0xc] sm:$0xf]
    %v2318 = vld [vmem:[%s2313 + $0x10] sm:$0xf]
    %v2319 = vld [vmem:[%s2313 + $0x14] sm:$0xf]
    %v2320 = vld [vmem:[%s2313 + $0x18] sm:$0xf]
    %v2321 = vld [vmem:[%s2313 + $0x1c] sm:$0xf]
    %v2322 = vld [vmem:[%s2313 + $0x20] sm:$0xf]
    %v2323 = vld [vmem:[%s2313 + $0x24] sm:$0xf]
    %v2324 = vld [vmem:[%s2313 + $0x28] sm:$0xf]
    %v2325 = vld [vmem:[%s2313 + $0x2c] sm:$0xf]
    %v2326 = vld [vmem:[%s2313 + $0x30] sm:$0xf]
    %v2327 = vld [vmem:[%s2313 + $0x34] sm:$0xf]
    %v2328 = vld [vmem:[%s2313 + $0x38] sm:$0xf]
    %v2329 = vld [vmem:[%s2313 + $0x3c] sm:$0xf]
    %s2330 = scalar_lea.vmem %s7, 1
    %v2331 = vld [vmem:[%s2330] sm:$0x1]
    %v2333 = vlaneseq
    %v2334 = vshrl.u32 %v2333, 7
    %v2335 = vsub.s32 0, %v2334
    %v2336 = vrot.slane %v2331, %v2335
    %v2354 = vunpack.c.l.b16 %v2314
    %v2355 = vunpack.c.l.b16 %v2315
    %v2356 = vunpack.c.l.b16 %v2316
    %v2357 = vunpack.c.l.b16 %v2317
    %v2358 = vunpack.c.l.b16 %v2318
    %v2359 = vunpack.c.l.b16 %v2319
    %v2360 = vunpack.c.l.b16 %v2320
    %v2361 = vunpack.c.l.b16 %v2321
    %v2362 = vunpack.c.l.b16 %v2322
    %v2363 = vunpack.c.l.b16 %v2323
    %v2364 = vunpack.c.l.b16 %v2324
    %v2365 = vunpack.c.l.b16 %v2325
    %v2366 = vunpack.c.l.b16 %v2326
    %v2367 = vunpack.c.l.b16 %v2327
    %v2368 = vunpack.c.l.b16 %v2328
    %v2369 = vunpack.c.l.b16 %v2329
    %v2370 = vpack.c.b16 %v2355, %v2354
    %v2371 = vpack.c.b16 %v2357, %v2356
    %v2372 = vpack.c.b16 %v2359, %v2358
    %v2373 = vpack.c.b16 %v2361, %v2360
    %v2374 = vpack.c.b16 %v2363, %v2362
    %v2375 = vpack.c.b16 %v2365, %v2364
    %v2376 = vpack.c.b16 %v2367, %v2366
    %v2377 = vpack.c.b16 %v2369, %v2368
    %2386 = vmatprep.subr.bf16.mxu0 0
    %2387 = vmatpush1.bf16.msra.mxu0 %v2370
    %2388 = vmatprep.subr.bf16.mxu0 0
    %2389 = vmatpush1.bf16.msra.mxu0 %v2371
    %2390 = vmatprep.subr.bf16.mxu0 0
    %2391 = vmatpush1.bf16.msra.mxu0 %v2372
    %2392 = vmatprep.subr.bf16.mxu0 0
    %2393 = vmatpush1.bf16.msra.mxu0 %v2373
    %2394 = vmatprep.subr.bf16.mxu0 0
    %2395 = vmatpush1.bf16.msra.mxu0 %v2374
    %2396 = vmatprep.subr.bf16.mxu0 0
    %2397 = vmatpush1.bf16.msra.mxu0 %v2375
    %2398 = vmatprep.subr.bf16.mxu0 0
    %2399 = vmatpush1.bf16.msra.mxu0 %v2376
    %2400 = vmatprep.subr.bf16.mxu0 0
    %2401 = vmatpush1.bf16.msra.mxu0 %v2377
    %2402 = vmatprep.subr.bf16.mxu0 0
    %2403 = vmatpush1.bf16.msra.mxu0 0
    %2404 = vmatprep.subr.bf16.mxu0 0
    %2405 = vmatpush1.bf16.msra.mxu0 0
    %2406 = vmatprep.subr.bf16.mxu0 0
    %2407 = vmatpush1.bf16.msra.mxu0 0
    %2408 = vmatprep.subr.bf16.mxu0 0
    %2409 = vmatpush1.bf16.msra.mxu0 0
    %2410 = vmatprep.subr.bf16.mxu0 0
    %2411 = vmatpush1.bf16.msra.mxu0 0
    %2412 = vmatprep.subr.bf16.mxu0 0
    %2413 = vmatpush1.bf16.msra.mxu0 0
    %2414 = vmatprep.subr.bf16.mxu0 0
    %2415 = vmatpush1.bf16.msra.mxu0 0
    %2416 = vmatprep.subr.bf16.mxu0 0
    %2417 = vmatpush1.bf16.msra.mxu0 0
    %2418 = vmatprep.mubr.bf16.mxu0 0
    %2419 = vmatmul.mubr.bf16.gmra.mrb[0].mxu0 %v2312
    %v2420 = vpop.f32.mrb[0].mxu0
    %v2421 = vadd.f32 %v2336, %v2420
    %v2422 = vpop.f32.mrb[0].mxu0
    %v2423 = vpop.f32.mrb[0].mxu0
    %v2424 = vadd.f32 %v2336, %v2423
    %v2425 = vpop.f32.mrb[0].mxu0
    %2426 = vdwg.mxu0
    %v2427 = vadd.f32 %v2421, %v1588
    %v2428 = vadd.f32 %v2424, %v1589
    %s2429 = scalar_lea.vmem %s8, 1
    %v2430 = vld [vmem:[%s2429] sm:$0x1]
    %s2431 = scalar_lea.vmem %s9, 1
    %v2432 = vld [vmem:[%s2431] sm:$0x1]
    %2433 = vadd.xlane.f32.xlu0 %v2427
    %v2434 = vpop.xlane.xlu0 %2433
    %2435 = vadd.xlane.f32.xlu0 %v2428
    %v2436 = vpop.xlane.xlu0 %2435
    %v2437 = vmul.f32 %v2434, %v187
    %v2438 = vmul.f32 %v2436, %v187
    %v2439 = vsub.f32 %v2427, %v2437
    %v2440 = vsub.f32 %v2428, %v2438
    %v2441 = vmul.f32 %v2439, %v2439
    %v2442 = vmul.f32 %v2440, %v2440
    %2443 = vadd.xlane.f32.xlu0 %v2441
    %v2444 = vpop.xlane.xlu0 %2443
    %2445 = vadd.xlane.f32.xlu0 %v2442
    %v2446 = vpop.xlane.xlu0 %2445
    %v2447 = vmul.f32 %v2444, %v187
    %v2448 = vmul.f32 %v2446, %v187
    %v2449 = vadd.f32 %v2447, 1e-05
    %v2450 = vadd.f32 %v2448, 1e-05
    %v2451 = vrsqrt.pop %v2449
    %v2452 = vrsqrt.pop %v2450
    %v2453 = vmul.f32 %v2439, %v2451
    %v2454 = vmul.f32 %v2440, %v2452
    %v2456 = vlaneseq
    %v2457 = vshrl.u32 %v2456, 7
    %v2458 = vsub.s32 0, %v2457
    %v2459 = vrot.slane %v2430, %v2458
    %v2461 = vmul.f32 %v2453, %v2459
    %v2462 = vmul.f32 %v2454, %v2459
    %v2464 = vlaneseq
    %v2465 = vshrl.u32 %v2464, 7
    %v2466 = vsub.s32 0, %v2465
    %v2467 = vrot.slane %v2432, %v2466
    %v2469 = vadd.f32 %v2461, %v2467
    %v2470 = vadd.f32 %v2462, %v2467
    %v2471 = vpack.c.bf16 %v2470, %v2469
    %s2472 = scalar_lea.vmem [#allocation13], 128
    %v2473 = vld [vmem:[%s2472] sm:$0xff]
    %v2474 = vld [vmem:[%s2472 + $0x8] sm:$0xff]
    %v2475 = vld [vmem:[%s2472 + $0x10] sm:$0xff]
    %v2476 = vld [vmem:[%s2472 + $0x18] sm:$0xff]
    %v2477 = vld [vmem:[%s2472 + $0x20] sm:$0xff]
    %v2478 = vld [vmem:[%s2472 + $0x28] sm:$0xff]
    %v2479 = vld [vmem:[%s2472 + $0x30] sm:$0xff]
    %v2480 = vld [vmem:[%s2472 + $0x38] sm:$0xff]
    %v2481 = vld [vmem:[%s2472 + $0x40] sm:$0xff]
    %v2482 = vld [vmem:[%s2472 + $0x48] sm:$0xff]
    %v2483 = vld [vmem:[%s2472 + $0x50] sm:$0xff]
    %v2484 = vld [vmem:[%s2472 + $0x58] sm:$0xff]
    %v2485 = vld [vmem:[%s2472 + $0x60] sm:$0xff]
    %v2486 = vld [vmem:[%s2472 + $0x68] sm:$0xff]
    %v2487 = vld [vmem:[%s2472 + $0x70] sm:$0xff]
    %v2488 = vld [vmem:[%s2472 + $0x78] sm:$0xff]
    %s2489 = scalar_lea.vmem %s11, 2
    %v2490 = vld [vmem:[%s2489] sm:$0x3]
    %v2492 = vlaneseq
    %v2493 = vshrl.u32 %v2492, 7
    %v2494 = vsub.s32 0, %v2493
    %v2495 = vrot.slane %v2490, %v2494
    %v2496 = vlaneseq
    %v2497 = vshrl.u32 %v2496, 7
    %v2498 = vsub.s32 1, %v2497
    %v2499 = vrot.slane %v2490, %v2498
    %v2518 = vunpack.c.l.b16 %v2473
    %v2519 = vunpack.c.h.b16 %v2473
    %v2520 = vunpack.c.l.b16 %v2474
    %v2521 = vunpack.c.h.b16 %v2474
    %v2522 = vunpack.c.l.b16 %v2475
    %v2523 = vunpack.c.h.b16 %v2475
    %v2524 = vunpack.c.l.b16 %v2476
    %v2525 = vunpack.c.h.b16 %v2476
    %v2526 = vunpack.c.l.b16 %v2477
    %v2527 = vunpack.c.h.b16 %v2477
    %v2528 = vunpack.c.l.b16 %v2478
    %v2529 = vunpack.c.h.b16 %v2478
    %v2530 = vunpack.c.l.b16 %v2479
    %v2531 = vunpack.c.h.b16 %v2479
    %v2532 = vunpack.c.l.b16 %v2480
    %v2533 = vunpack.c.h.b16 %v2480
    %v2534 = vunpack.c.l.b16 %v2481
    %v2535 = vunpack.c.h.b16 %v2481
    %v2536 = vunpack.c.l.b16 %v2482
    %v2537 = vunpack.c.h.b16 %v2482
    %v2538 = vunpack.c.l.b16 %v2483
    %v2539 = vunpack.c.h.b16 %v2483
    %v2540 = vunpack.c.l.b16 %v2484
    %v2541 = vunpack.c.h.b16 %v2484
    %v2542 = vunpack.c.l.b16 %v2485
    %v2543 = vunpack.c.h.b16 %v2485
    %v2544 = vunpack.c.l.b16 %v2486
    %v2545 = vunpack.c.h.b16 %v2486
    %v2546 = vunpack.c.l.b16 %v2487
    %v2547 = vunpack.c.h.b16 %v2487
    %v2548 = vunpack.c.l.b16 %v2488
    %v2549 = vunpack.c.h.b16 %v2488
    %v2550 = vpack.c.b16 %v2520, %v2518
    %v2551 = vpack.c.b16 %v2521, %v2519
    %v2552 = vpack.c.b16 %v2524, %v2522
    %v2553 = vpack.c.b16 %v2525, %v2523
    %v2554 = vpack.c.b16 %v2528, %v2526
    %v2555 = vpack.c.b16 %v2529, %v2527
    %v2556 = vpack.c.b16 %v2532, %v2530
    %v2557 = vpack.c.b16 %v2533, %v2531
    %v2558 = vpack.c.b16 %v2536, %v2534
    %v2559 = vpack.c.b16 %v2537, %v2535
    %v2560 = vpack.c.b16 %v2540, %v2538
    %v2561 = vpack.c.b16 %v2541, %v2539
    %v2562 = vpack.c.b16 %v2544, %v2542
    %v2563 = vpack.c.b16 %v2545, %v2543
    %v2564 = vpack.c.b16 %v2548, %v2546
    %v2565 = vpack.c.b16 %v2549, %v2547
    %2582 = vmatprep.subr.bf16.mxu0 %v2551
    %2583 = vmatpush1.bf16.msra.mxu0 %v2550
    %2584 = vmatprep.subr.bf16.mxu0 %v2553
    %2585 = vmatpush1.bf16.msra.mxu0 %v2552
    %2586 = vmatprep.subr.bf16.mxu0 %v2555
    %2587 = vmatpush1.bf16.msra.mxu0 %v2554
    %2588 = vmatprep.subr.bf16.mxu0 %v2557
    %2589 = vmatpush1.bf16.msra.mxu0 %v2556
    %2590 = vmatprep.subr.bf16.mxu0 %v2559
    %2591 = vmatpush1.bf16.msra.mxu0 %v2558
    %2592 = vmatprep.subr.bf16.mxu0 %v2561
    %2593 = vmatpush1.bf16.msra.mxu0 %v2560
    %2594 = vmatprep.subr.bf16.mxu0 %v2563
    %2595 = vmatpush1.bf16.msra.mxu0 %v2562
    %2596 = vmatprep.subr.bf16.mxu0 %v2565
    %2597 = vmatpush1.bf16.msra.mxu0 %v2564
    %2598 = vmatprep.subr.bf16.mxu0 0
    %2599 = vmatpush1.bf16.msra.mxu0 0
    %2600 = vmatprep.subr.bf16.mxu0 0
    %2601 = vmatpush1.bf16.msra.mxu0 0
    %2602 = vmatprep.subr.bf16.mxu0 0
    %2603 = vmatpush1.bf16.msra.mxu0 0
    %2604 = vmatprep.subr.bf16.mxu0 0
    %2605 = vmatpush1.bf16.msra.mxu0 0
    %2606 = vmatprep.subr.bf16.mxu0 0
    %2607 = vmatpush1.bf16.msra.mxu0 0
    %2608 = vmatprep.subr.bf16.mxu0 0
    %2609 = vmatpush1.bf16.msra.mxu0 0
    %2610 = vmatprep.subr.bf16.mxu0 0
    %2611 = vmatpush1.bf16.msra.mxu0 0
    %2612 = vmatprep.subr.bf16.mxu0 0
    %2613 = vmatpush1.bf16.msra.mxu0 0
    %2614 = vmatprep.mubr.bf16.mxu0 0
    %2615 = vmatmul.mubr.bf16.gmra.mrb[0].mxu0 %v2471
    %v2616 = vpop.f32.mrb[0].mxu0
    %v2617 = vadd.f32 %v2495, %v2616
    %v2618 = vpop.f32.mrb[0].mxu0
    %v2619 = vadd.f32 %v2499, %v2618
    %v2620 = vpop.f32.mrb[0].mxu0
    %v2621 = vadd.f32 %v2495, %v2620
    %v2622 = vpop.f32.mrb[0].mxu0
    %v2623 = vadd.f32 %v2499, %v2622
    %2624 = vdwg.mxu0
    %v2625 = vmul.f32 %v2617, 0.5
    %v2626 = vmul.f32 %v2619, 0.5
    %v2627 = vmul.f32 %v2621, 0.5
    %v2628 = vmul.f32 %v2623, 0.5
    %v2629 = vmul.f32 %v2617, 0.70710677
    %v2630 = vmul.f32 %v2619, 0.70710677
    %v2631 = vmul.f32 %v2621, 0.70710677
    %v2632 = vmul.f32 %v2623, 0.70710677
    %vm2633 = vcmp.ge.f32.partialorder %v2629, 0.0
    %vm2634 = vcmp.ge.f32.partialorder %v2630, 0.0
    %vm2635 = vcmp.ge.f32.partialorder %v2631, 0.0
    %vm2636 = vcmp.ge.f32.partialorder %v2632, 0.0
    %v2637 = vsel %vm2633, 1.0, -1.0
    %v2638 = vsel %vm2634, 1.0, -1.0
    %v2639 = vsel %vm2635, 1.0, -1.0
    %v2640 = vsel %vm2636, 1.0, -1.0
    %v2641 = vand.u32 2147483647, %v2629
    %v2642 = vand.u32 2147483647, %v2630
    %v2643 = vand.u32 2147483647, %v2631
    %v2644 = vand.u32 2147483647, %v2632
    %v2645 = vmul.f32 %v2641, 0.3275911
    %v2646 = vmul.f32 %v2642, 0.3275911
    %v2647 = vmul.f32 %v2643, 0.3275911
    %v2648 = vmul.f32 %v2644, 0.3275911
    %v2649 = vadd.f32 %v2645, 1.0
    %v2650 = vadd.f32 %v2646, 1.0
    %v2651 = vadd.f32 %v2647, 1.0
    %v2652 = vadd.f32 %v2648, 1.0
    %v2653 = vrcp.pop %v2649
    %v2654 = vrcp.pop %v2650
    %v2655 = vrcp.pop %v2651
    %v2656 = vrcp.pop %v2652
    %v2657 = vmul.f32 %v2653, 1.0614054
    %v2658 = vmul.f32 %v2654, 1.0614054
    %v2659 = vmul.f32 %v2655, 1.0614054
    %v2660 = vmul.f32 %v2656, 1.0614054
    %v2661 = vadd.f32 %v2657, -1.4531521
    %v2662 = vadd.f32 %v2658, -1.4531521
    %v2663 = vadd.f32 %v2659, -1.4531521
    %v2664 = vadd.f32 %v2660, -1.4531521
    %v2665 = vmul.f32 %v2661, %v2653
    %v2666 = vmul.f32 %v2662, %v2654
    %v2667 = vmul.f32 %v2663, %v2655
    %v2668 = vmul.f32 %v2664, %v2656
    %v2669 = vadd.f32 %v2665, 1.4214138
    %v2670 = vadd.f32 %v2666, 1.4214138
    %v2671 = vadd.f32 %v2667, 1.4214138
    %v2672 = vadd.f32 %v2668, 1.4214138
    %v2673 = vmul.f32 %v2669, %v2653
    %v2674 = vmul.f32 %v2670, %v2654
    %v2675 = vmul.f32 %v2671, %v2655
    %v2676 = vmul.f32 %v2672, %v2656
    %v2677 = vadd.f32 %v2673, -0.28449672
    %v2678 = vadd.f32 %v2674, -0.28449672
    %v2679 = vadd.f32 %v2675, -0.28449672
    %v2680 = vadd.f32 %v2676, -0.28449672
    %v2681 = vmul.f32 %v2677, %v2653
    %v2682 = vmul.f32 %v2678, %v2654
    %v2683 = vmul.f32 %v2679, %v2655
    %v2684 = vmul.f32 %v2680, %v2656
    %v2685 = vadd.f32 %v2681, 0.2548296
    %v2686 = vadd.f32 %v2682, 0.2548296
    %v2687 = vadd.f32 %v2683, 0.2548296
    %v2688 = vadd.f32 %v2684, 0.2548296
    %v2689 = vmul.f32 %v2685, %v2653
    %v2690 = vmul.f32 %v2686, %v2654
    %v2691 = vmul.f32 %v2687, %v2655
    %v2692 = vmul.f32 %v2688, %v2656
    %v2693 = vsub.f32 0.0, %v2641
    %v2694 = vsub.f32 0.0, %v2642
    %v2695 = vsub.f32 0.0, %v2643
    %v2696 = vsub.f32 0.0, %v2644
    %v2697 = vmul.f32 %v2693, %v2641
    %v2698 = vmul.f32 %v2694, %v2642
    %v2699 = vmul.f32 %v2695, %v2643
    %v2700 = vmul.f32 %v2696, %v2644
    %v2701 = vmul.f32 %v2697, 1.442695
    %v2702 = vpow.pop %v2701
    %v2703 = vmul.f32 %v2698, 1.442695
    %v2704 = vpow.pop %v2703
    %v2705 = vmul.f32 %v2699, 1.442695
    %v2706 = vpow.pop %v2705
    %v2707 = vmul.f32 %v2700, 1.442695
    %v2708 = vpow.pop %v2707
    %v2709 = vmul.f32 %v2689, %v2702
    %v2710 = vmul.f32 %v2690, %v2704
    %v2711 = vmul.f32 %v2691, %v2706
    %v2712 = vmul.f32 %v2692, %v2708
    %v2713 = vsub.f32 1.0, %v2709
    %v2714 = vsub.f32 1.0, %v2710
    %v2715 = vsub.f32 1.0, %v2711
    %v2716 = vsub.f32 1.0, %v2712
    %v2717 = vmul.f32 %v2637, %v2713
    %v2718 = vmul.f32 %v2638, %v2714
    %v2719 = vmul.f32 %v2639, %v2715
    %v2720 = vmul.f32 %v2640, %v2716
    %v2721 = vadd.f32 %v2717, 1.0
    %v2722 = vadd.f32 %v2718, 1.0
    %v2723 = vadd.f32 %v2719, 1.0
    %v2724 = vadd.f32 %v2720, 1.0
    %v2725 = vmul.f32 %v2625, %v2721
    %v2726 = vmul.f32 %v2626, %v2722
    %v2727 = vmul.f32 %v2627, %v2723
    %v2728 = vmul.f32 %v2628, %v2724
    %v2729 = vpack.c.bf16 %v2727, %v2725
    %v2730 = vpack.c.bf16 %v2728, %v2726
    %s2731 = scalar_lea.vmem [#allocation14], 128
    %v2732 = vld [vmem:[%s2731] sm:$0xf]
    %v2733 = vld [vmem:[%s2731 + $0x4] sm:$0xf]
    %v2734 = vld [vmem:[%s2731 + $0x8] sm:$0xf]
    %v2735 = vld [vmem:[%s2731 + $0xc] sm:$0xf]
    %v2736 = vld [vmem:[%s2731 + $0x10] sm:$0xf]
    %v2737 = vld [vmem:[%s2731 + $0x14] sm:$0xf]
    %v2738 = vld [vmem:[%s2731 + $0x18] sm:$0xf]
    %v2739 = vld [vmem:[%s2731 + $0x1c] sm:$0xf]
    %v2740 = vld [vmem:[%s2731 + $0x20] sm:$0xf]
    %v2741 = vld [vmem:[%s2731 + $0x24] sm:$0xf]
    %v2742 = vld [vmem:[%s2731 + $0x28] sm:$0xf]
    %v2743 = vld [vmem:[%s2731 + $0x2c] sm:$0xf]
    %v2744 = vld [vmem:[%s2731 + $0x30] sm:$0xf]
    %v2745 = vld [vmem:[%s2731 + $0x34] sm:$0xf]
    %v2746 = vld [vmem:[%s2731 + $0x38] sm:$0xf]
    %v2747 = vld [vmem:[%s2731 + $0x3c] sm:$0xf]
    %v2748 = vld [vmem:[%s2731 + $0x40] sm:$0xf]
    %v2749 = vld [vmem:[%s2731 + $0x44] sm:$0xf]
    %v2750 = vld [vmem:[%s2731 + $0x48] sm:$0xf]
    %v2751 = vld [vmem:[%s2731 + $0x4c] sm:$0xf]
    %v2752 = vld [vmem:[%s2731 + $0x50] sm:$0xf]
    %v2753 = vld [vmem:[%s2731 + $0x54] sm:$0xf]
    %v2754 = vld [vmem:[%s2731 + $0x58] sm:$0xf]
    %v2755 = vld [vmem:[%s2731 + $0x5c] sm:$0xf]
    %v2756 = vld [vmem:[%s2731 + $0x60] sm:$0xf]
    %v2757 = vld [vmem:[%s2731 + $0x64] sm:$0xf]
    %v2758 = vld [vmem:[%s2731 + $0x68] sm:$0xf]
    %v2759 = vld [vmem:[%s2731 + $0x6c] sm:$0xf]
    %v2760 = vld [vmem:[%s2731 + $0x70] sm:$0xf]
    %v2761 = vld [vmem:[%s2731 + $0x74] sm:$0xf]
    %v2762 = vld [vmem:[%s2731 + $0x78] sm:$0xf]
    %v2763 = vld [vmem:[%s2731 + $0x7c] sm:$0xf]
    %s2764 = scalar_lea.vmem %s13, 1
    %v2765 = vld [vmem:[%s2764] sm:$0x1]
    %v2767 = vlaneseq
    %v2768 = vshrl.u32 %v2767, 7
    %v2769 = vsub.s32 0, %v2768
    %v2770 = vrot.slane %v2765, %v2769
    %v2804 = vunpack.c.l.b16 %v2732
    %v2805 = vunpack.c.l.b16 %v2733
    %v2806 = vunpack.c.l.b16 %v2734
    %v2807 = vunpack.c.l.b16 %v2735
    %v2808 = vunpack.c.l.b16 %v2736
    %v2809 = vunpack.c.l.b16 %v2737
    %v2810 = vunpack.c.l.b16 %v2738
    %v2811 = vunpack.c.l.b16 %v2739
    %v2812 = vunpack.c.l.b16 %v2740
    %v2813 = vunpack.c.l.b16 %v2741
    %v2814 = vunpack.c.l.b16 %v2742
    %v2815 = vunpack.c.l.b16 %v2743
    %v2816 = vunpack.c.l.b16 %v2744
    %v2817 = vunpack.c.l.b16 %v2745
    %v2818 = vunpack.c.l.b16 %v2746
    %v2819 = vunpack.c.l.b16 %v2747
    %v2820 = vunpack.c.l.b16 %v2748
    %v2821 = vunpack.c.l.b16 %v2749
    %v2822 = vunpack.c.l.b16 %v2750
    %v2823 = vunpack.c.l.b16 %v2751
    %v2824 = vunpack.c.l.b16 %v2752
    %v2825 = vunpack.c.l.b16 %v2753
    %v2826 = vunpack.c.l.b16 %v2754
    %v2827 = vunpack.c.l.b16 %v2755
    %v2828 = vunpack.c.l.b16 %v2756
    %v2829 = vunpack.c.l.b16 %v2757
    %v2830 = vunpack.c.l.b16 %v2758
    %v2831 = vunpack.c.l.b16 %v2759
    %v2832 = vunpack.c.l.b16 %v2760
    %v2833 = vunpack.c.l.b16 %v2761
    %v2834 = vunpack.c.l.b16 %v2762
    %v2835 = vunpack.c.l.b16 %v2763
    %v2836 = vpack.c.b16 %v2805, %v2804
    %v2837 = vpack.c.b16 %v2807, %v2806
    %v2838 = vpack.c.b16 %v2809, %v2808
    %v2839 = vpack.c.b16 %v2811, %v2810
    %v2840 = vpack.c.b16 %v2813, %v2812
    %v2841 = vpack.c.b16 %v2815, %v2814
    %v2842 = vpack.c.b16 %v2817, %v2816
    %v2843 = vpack.c.b16 %v2819, %v2818
    %v2844 = vpack.c.b16 %v2821, %v2820
    %v2845 = vpack.c.b16 %v2823, %v2822
    %v2846 = vpack.c.b16 %v2825, %v2824
    %v2847 = vpack.c.b16 %v2827, %v2826
    %v2848 = vpack.c.b16 %v2829, %v2828
    %v2849 = vpack.c.b16 %v2831, %v2830
    %v2850 = vpack.c.b16 %v2833, %v2832
    %v2851 = vpack.c.b16 %v2835, %v2834
    %2868 = vmatprep.subr.bf16.mxu0 0
    %2869 = vmatpush1.bf16.msra.mxu0 %v2836
    %2870 = vmatprep.subr.bf16.mxu0 0
    %2871 = vmatpush1.bf16.msra.mxu0 %v2837
    %2872 = vmatprep.subr.bf16.mxu0 0
    %2873 = vmatpush1.bf16.msra.mxu0 %v2838
    %2874 = vmatprep.subr.bf16.mxu0 0
    %2875 = vmatpush1.bf16.msra.mxu0 %v2839
    %2876 = vmatprep.subr.bf16.mxu0 0
    %2877 = vmatpush1.bf16.msra.mxu0 %v2840
    %2878 = vmatprep.subr.bf16.mxu0 0
    %2879 = vmatpush1.bf16.msra.mxu0 %v2841
    %2880 = vmatprep.subr.bf16.mxu0 0
    %2881 = vmatpush1.bf16.msra.mxu0 %v2842
    %2882 = vmatprep.subr.bf16.mxu0 0
    %2883 = vmatpush1.bf16.msra.mxu0 %v2843
    %2884 = vmatprep.subr.bf16.mxu0 0
    %2885 = vmatpush1.bf16.msra.mxu0 %v2844
    %2886 = vmatprep.subr.bf16.mxu0 0
    %2887 = vmatpush1.bf16.msra.mxu0 %v2845
    %2888 = vmatprep.subr.bf16.mxu0 0
    %2889 = vmatpush1.bf16.msra.mxu0 %v2846
    %2890 = vmatprep.subr.bf16.mxu0 0
    %2891 = vmatpush1.bf16.msra.mxu0 %v2847
    %2892 = vmatprep.subr.bf16.mxu0 0
    %2893 = vmatpush1.bf16.msra.mxu0 %v2848
    %2894 = vmatprep.subr.bf16.mxu0 0
    %2895 = vmatpush1.bf16.msra.mxu0 %v2849
    %2896 = vmatprep.subr.bf16.mxu0 0
    %2897 = vmatpush1.bf16.msra.mxu0 %v2850
    %2898 = vmatprep.subr.bf16.mxu0 0
    %2899 = vmatpush1.bf16.msra.mxu0 %v2851
    %2900 = vmatprep.mubr.bf16.mxu0 %v2730
    %2901 = vmatmul.mubr.bf16.gmra.mrb[0].mxu0 %v2729
    %v2902 = vpop.f32.mrb[0].mxu0
    %v2903 = vadd.f32 %v2770, %v2902
    %v2904 = vpop.f32.mrb[0].mxu0
    %v2905 = vpop.f32.mrb[0].mxu0
    %v2906 = vadd.f32 %v2770, %v2905
    %v2907 = vpop.f32.mrb[0].mxu0
    %2908 = vdwg.mxu0
    %v2909 = vadd.f32 %v2903, %v2469
    %v2910 = vadd.f32 %v2906, %v2470
    %s2911 = scalar_lea.vmem %s14, 1
    %v2912 = vld [vmem:[%s2911] sm:$0x1]
    %s2913 = scalar_lea.vmem %s15, 1
    %v2914 = vld [vmem:[%s2913] sm:$0x1]
    %2915 = vadd.xlane.f32.xlu0 %v2909
    %v2916 = vpop.xlane.xlu0 %2915
    %2917 = vadd.xlane.f32.xlu0 %v2910
    %v2918 = vpop.xlane.xlu0 %2917
    %v2919 = vmul.f32 %v2916, %v187
    %v2920 = vmul.f32 %v2918, %v187
    %v2921 = vsub.f32 %v2909, %v2919
    %v2922 = vsub.f32 %v2910, %v2920
    %v2923 = vmul.f32 %v2921, %v2921
    %v2924 = vmul.f32 %v2922, %v2922
    %2925 = vadd.xlane.f32.xlu0 %v2923
    %v2926 = vpop.xlane.xlu0 %2925
    %2927 = vadd.xlane.f32.xlu0 %v2924
    %v2928 = vpop.xlane.xlu0 %2927
    %v2929 = vmul.f32 %v2926, %v187
    %v2930 = vmul.f32 %v2928, %v187
    %v2931 = vadd.f32 %v2929, 1e-05
    %v2932 = vadd.f32 %v2930, 1e-05
    %v2933 = vrsqrt.pop %v2931
    %v2934 = vrsqrt.pop %v2932
    %v2935 = vmul.f32 %v2921, %v2933
    %v2936 = vmul.f32 %v2922, %v2934
    %v2938 = vlaneseq
    %v2939 = vshrl.u32 %v2938, 7
    %v2940 = vsub.s32 0, %v2939
    %v2941 = vrot.slane %v2912, %v2940
    %v2943 = vmul.f32 %v2935, %v2941
    %v2944 = vmul.f32 %v2936, %v2941
    %v2946 = vlaneseq
    %v2947 = vshrl.u32 %v2946, 7
    %v2948 = vsub.s32 0, %v2947
    %v2949 = vrot.slane %v2914, %v2948
    %v2951 = vadd.f32 %v2943, %v2949
    %v2952 = vadd.f32 %v2944, %v2949
    %v2953 = vpack.c.bf16 %v2951, %v2951
    %v2954 = vpack.c.bf16 %v2952, %v2952
    %v2955 = vld [vmem:[#allocation16] sm:$0xf]
    %v2956 = vld [vmem:[#allocation16 + $0x4] sm:$0xf]
    %v2957 = vld [vmem:[#allocation16 + $0x8] sm:$0xf]
    %v2958 = vld [vmem:[#allocation16 + $0xc] sm:$0xf]
    %v2959 = vld [vmem:[#allocation16 + $0x10] sm:$0xf]
    %v2960 = vld [vmem:[#allocation16 + $0x14] sm:$0xf]
    %v2961 = vld [vmem:[#allocation16 + $0x18] sm:$0xf]
    %v2962 = vld [vmem:[#allocation16 + $0x1c] sm:$0xf]
    %v2963 = vld [vmem:[#allocation16 + $0x20] sm:$0xf]
    %v2964 = vld [vmem:[#allocation16 + $0x24] sm:$0xf]
    %v2965 = vld [vmem:[#allocation16 + $0x28] sm:$0xf]
    %v2966 = vld [vmem:[#allocation16 + $0x2c] sm:$0xf]
    %v2967 = vld [vmem:[#allocation16 + $0x30] sm:$0xf]
    %v2968 = vld [vmem:[#allocation16 + $0x34] sm:$0xf]
    %v2969 = vld [vmem:[#allocation16 + $0x38] sm:$0xf]
    %v2970 = vld [vmem:[#allocation16 + $0x3c] sm:$0xf]
    %v2971 = vld [vmem:[%s17] sm:$0x1]
    %v2973 = vlaneseq
    %v2974 = vshrl.u32 %v2973, 7
    %v2975 = vsub.s32 0, %v2974
    %v2976 = vrot.slane %v2971, %v2975
    %v2980 = vunpack.c.l.b16 %v2953
    %v2981 = vunpack.c.l.b16 %v2954
    %v2982 = vrot.slane %v2981, 7
    %vm2983 = vcmask 1041409
    %v2984 = vsel %vm2983, %v2982, %v2980
    %v2985 = vpack.c.b16 %v2984, %v2984
    %v3003 = vunpack.c.l.b16 %v2955
    %v3004 = vunpack.c.l.b16 %v2956
    %v3005 = vunpack.c.l.b16 %v2957
    %v3006 = vunpack.c.l.b16 %v2958
    %v3007 = vunpack.c.l.b16 %v2959
    %v3008 = vunpack.c.l.b16 %v2960
    %v3009 = vunpack.c.l.b16 %v2961
    %v3010 = vunpack.c.l.b16 %v2962
    %v3011 = vunpack.c.l.b16 %v2963
    %v3012 = vunpack.c.l.b16 %v2964
    %v3013 = vunpack.c.l.b16 %v2965
    %v3014 = vunpack.c.l.b16 %v2966
    %v3015 = vunpack.c.l.b16 %v2967
    %v3016 = vunpack.c.l.b16 %v2968
    %v3017 = vunpack.c.l.b16 %v2969
    %v3018 = vunpack.c.l.b16 %v2970
    %v3019 = vpack.c.b16 %v3004, %v3003
    %v3020 = vpack.c.b16 %v3006, %v3005
    %v3021 = vpack.c.b16 %v3008, %v3007
    %v3022 = vpack.c.b16 %v3010, %v3009
    %v3023 = vpack.c.b16 %v3012, %v3011
    %v3024 = vpack.c.b16 %v3014, %v3013
    %v3025 = vpack.c.b16 %v3016, %v3015
    %v3026 = vpack.c.b16 %v3018, %v3017
    %3035 = vmatprep.subr.bf16.mxu0 0
    %3036 = vmatpush1.bf16.msra.mxu0 %v3019
    %3037 = vmatprep.subr.bf16.mxu0 0
    %3038 = vmatpush1.bf16.msra.mxu0 %v3020
    %3039 = vmatprep.subr.bf16.mxu0 0
    %3040 = vmatpush1.bf16.msra.mxu0 %v3021
    %3041 = vmatprep.subr.bf16.mxu0 0
    %3042 = vmatpush1.bf16.msra.mxu0 %v3022
    %3043 = vmatprep.subr.bf16.mxu0 0
    %3044 = vmatpush1.bf16.msra.mxu0 %v3023
    %3045 = vmatprep.subr.bf16.mxu0 0
    %3046 = vmatpush1.bf16.msra.mxu0 %v3024
    %3047 = vmatprep.subr.bf16.mxu0 0
    %3048 = vmatpush1.bf16.msra.mxu0 %v3025
    %3049 = vmatprep.subr.bf16.mxu0 0
    %3050 = vmatpush1.bf16.msra.mxu0 %v3026
    %3051 = vmatprep.subr.bf16.mxu0 0
    %3052 = vmatpush1.bf16.msra.mxu0 0
    %3053 = vmatprep.subr.bf16.mxu0 0
    %3054 = vmatpush1.bf16.msra.mxu0 0
    %3055 = vmatprep.subr.bf16.mxu0 0
    %3056 = vmatpush1.bf16.msra.mxu0 0
    %3057 = vmatprep.subr.bf16.mxu0 0
    %3058 = vmatpush1.bf16.msra.mxu0 0
    %3059 = vmatprep.subr.bf16.mxu0 0
    %3060 = vmatpush1.bf16.msra.mxu0 0
    %3061 = vmatprep.subr.bf16.mxu0 0
    %3062 = vmatpush1.bf16.msra.mxu0 0
    %3063 = vmatprep.subr.bf16.mxu0 0
    %3064 = vmatpush1.bf16.msra.mxu0 0
    %3065 = vmatprep.subr.bf16.mxu0 0
    %3066 = vmatpush1.bf16.msra.mxu0 0
    %3067 = vmatprep.mubr.bf16.mxu0 0
    %3068 = vmatmul.mubr.bf16.gmra.mrb[0].mxu0 %v2985
    %v3069 = vpop.f32.mrb[0].mxu0
    %v3070 = vadd.f32 %v2976, %v3069
    %v3071 = vpop.f32.mrb[0].mxu0
    %v3072 = vpop.f32.mrb[0].mxu0
    %v3073 = vpop.f32.mrb[0].mxu0
    %3074 = vdwg.mxu0
    %3075 = vst [vmem:[#allocation17] sm:$0x3] %v3070
    // Predicated region
    $region110: #{tpu_custom_call.1} parent=1 // pred_check
      _
    $region111: #{tpu_custom_call.1} parent=1 // pred_check_branch
      %3077 = sbr.rel (0) target = $region113
    $region112: #{tpu_custom_call.1} parent=1 // pred_region
      %s3079 = ssub.s32 32, 32
      %3080 = vsyncadd [#allocation4], %s3079
      %s3082 = sshll.u32 [#allocation17], 4
      %s3083 = int_to_ptr.vmem [resolvable:$true] %s3082
      %3085 = dma.vmem_to_hbm [thread:$0]  %s3083, 32, %s18, [#allocation4]
    $region113: #{tpu_custom_call.1} parent=1 // pred_fallthru
      _
    // Predicated region
    $region114: #{tpu_custom_call.1} parent=1 // pred_check
      _
    $region115: #{tpu_custom_call.1} parent=1 // pred_check_branch
      %3087 = sbr.rel (0) target = $region117
    $region116: #{tpu_custom_call.1} parent=1 // pred_region
      %3088 = dma.done [#allocation4], 32
    $region117: #{tpu_custom_call.1} parent=1 // pred_fallthru
      _
    %3089 = vsyncpa [#allocation3], 1
    %3090 = vsyncpa [#allocation6], 1
    %3091 = vsyncpa [#allocation9], 1
    %3092 = vsyncpa [#allocation12], 1
    %3093 = vsyncpa [#allocation15], 1
    %3094 = vsyncpa [#allocation4], 1

</llo_original>
